<compile_context>
chip_gen: v7x
topology: tpu7x:2x2x1
jax: 0.10.0
libtpu: 0.0.40
codegen_flags: <defaults>
</compile_context>

<pallas_src>
import jax
import jax.numpy as jnp
from jax.experimental import pallas as pl
from jax.experimental.pallas import tpu as pltpu

HP = 128          # hidden channels padded to one full lane register
OP = 128          # linear output channels padded to one full lane register
TB = 8            # batch rows per tile (sublane-aligned)


# -----------------------------------------------------------------------------
# Kernel: one timestep of the full stacked LSTM + output Linear.
# grid = (batch_blocks, seq_len); h/c state lives in VMEM scratch across time.
# -----------------------------------------------------------------------------
def _make_lstm_kernel(num_layers):
    GP = 4 * HP

    def kernel(x_ref, wih0_ref, wihr_ref, whh_ref, b_ref, lw_ref, lb_ref,
               o_ref, h_st, c_st):
        t = pl.program_id(1)

        @pl.when(t == 0)
        def _():
            h_st[...] = jnp.zeros_like(h_st)
            c_st[...] = jnp.zeros_like(c_st)

        inp = x_ref[0]                                   # (TB, DP) for layer 0
        for l in range(num_layers):                      # tiny static loop (L=4)
            w_in = wih0_ref[...] if l == 0 else wihr_ref[l - 1]
            gates = (jnp.dot(inp, w_in, preferred_element_type=jnp.float32)
                     + jnp.dot(h_st[l], whh_ref[l],
                               preferred_element_type=jnp.float32)
                     + b_ref[l])                         # (TB, 4*HP)
            i = jax.nn.sigmoid(gates[:, 0 * HP:1 * HP])  # lane-aligned 128 slices
            f = jax.nn.sigmoid(gates[:, 1 * HP:2 * HP])
            g = jnp.tanh(gates[:, 2 * HP:3 * HP])
            o = jax.nn.sigmoid(gates[:, 3 * HP:4 * HP])
            c = f * c_st[l] + i * g
            h = o * jnp.tanh(c)
            c_st[l] = c
            h_st[l] = h
            inp = h                                      # (TB, HP)

        y = jnp.dot(inp, lw_ref[...], preferred_element_type=jnp.float32) + lb_ref[...]
        o_ref[0] = y                                     # lane-dense (TB, OP) store

    return kernel


# -----------------------------------------------------------------------------
# Weight packing: PyTorch (4H, Din) gate-stacked weights -> lane-padded (Din_p, 4*HP)
# matrices with each gate occupying its own 128-lane block (zero padded).
# Padded gate lanes stay identically zero through the recurrence:
#   pre-act = 0 -> i=f=o=0.5, g=0 -> c_pad stays 0 -> h_pad = 0.5*tanh(0) = 0.
# -----------------------------------------------------------------------------
def _pack_ih(w, din_pad, hidden):
    out = jnp.zeros((din_pad, 4 * HP), jnp.float32)
    din = w.shape[1]
    for g in range(4):
        out = out.at[:din, g * HP:g * HP + hidden].set(
            w[g * hidden:(g + 1) * hidden, :].T.astype(jnp.float32))
    return out


def _pack_bias(b_ih, b_hh, hidden):
    b = (b_ih + b_hh).astype(jnp.float32)
    out = jnp.zeros((1, 4 * HP), jnp.float32)
    for g in range(4):
        out = out.at[0, g * HP:g * HP + hidden].set(b[g * hidden:(g + 1) * hidden])
    return out


# -----------------------------------------------------------------------------
# Wrapper: full lstm.forward  (x: (B, S, input_size) -> (B, S, out_size))
# -----------------------------------------------------------------------------
def lstm_forward(x, params, *, hidden=4, num_layers=4, out_size=1):
    B, S, D = x.shape
    GP = 4 * HP
    DP = ((D + 127) // 128) * 128
    BP = ((B + TB - 1) // TB) * TB
    L = num_layers
    Lr = max(L - 1, 1)

    # input: NSD -> (S, BP, DP), zero padded, time-major so each grid step grabs
    # a full (TB, DP) lane/sublane-aligned slab.
    xp = jnp.zeros((S, BP, DP), jnp.float32)
    xp = xp.at[:, :B, :D].set(jnp.transpose(x, (1, 0, 2)).astype(jnp.float32))

    # packed weights (done once in the wrapper; tiny).
    wih0 = _pack_ih(params["w_ih_0"], DP, hidden)                          # (DP, GP)
    wihr = jnp.stack([_pack_ih(params[f"w_ih_{l}"], HP, hidden)
                      for l in range(1, L)]) if L > 1 else jnp.zeros((1, HP, GP), jnp.float32)
    whh = jnp.stack([_pack_ih(params[f"w_hh_{l}"], HP, hidden) for l in range(L)])
    bias = jnp.stack([_pack_bias(params[f"b_ih_{l}"], params[f"b_hh_{l}"], hidden)
                      for l in range(L)])                                  # (L, 1, GP)
    lw = jnp.zeros((HP, OP), jnp.float32).at[:hidden, :out_size].set(
        params["lin_w"].T.astype(jnp.float32))
    lb = jnp.zeros((1, OP), jnp.float32).at[0, :out_size].set(
        params["lin_b"].astype(jnp.float32))

    grid_b = BP // TB
    grid = (grid_b, S)

    flops = int(grid_b * S * (2 * TB * DP * GP
                              + 2 * TB * HP * GP * (2 * L - 1)
                              + 2 * TB * HP * OP))
    trans = int(grid_b * S * L * TB * 5 * HP)
    bytes_acc = int(4 * (xp.size + S * BP * OP + wih0.size + wihr.size
                         + whh.size + bias.size + lw.size + lb.size))

    out = pl.pallas_call(
        _make_lstm_kernel(L),
        out_shape=jax.ShapeDtypeStruct((S, BP, OP), jnp.float32),
        grid_spec=pltpu.PrefetchScalarGridSpec(
            num_scalar_prefetch=0,
            grid=grid,
            in_specs=[
                pl.BlockSpec((1, TB, DP), lambda b, t: (t, b, 0)),    # x (pipelined)
                pl.BlockSpec((DP, GP), lambda b, t: (0, 0)),          # W_ih layer 0
                pl.BlockSpec((Lr, HP, GP), lambda b, t: (0, 0, 0)),   # W_ih layers 1..
                pl.BlockSpec((L, HP, GP), lambda b, t: (0, 0, 0)),    # W_hh
                pl.BlockSpec((L, 1, GP), lambda b, t: (0, 0, 0)),     # biases
                pl.BlockSpec((HP, OP), lambda b, t: (0, 0)),          # Linear W
                pl.BlockSpec((1, OP), lambda b, t: (0, 0)),           # Linear b
            ],
            out_specs=pl.BlockSpec((1, TB, OP), lambda b, t: (t, b, 0)),
            scratch_shapes=[pltpu.VMEM((L, TB, HP), jnp.float32),     # h state
                            pltpu.VMEM((L, TB, HP), jnp.float32)],    # c state
        ),
        compiler_params=pltpu.CompilerParams(
            dimension_semantics=("parallel", "arbitrary")),
        cost_estimate=pl.CostEstimate(flops=flops, transcendentals=trans,
                                      bytes_accessed=bytes_acc),
    )(xp, wih0, wihr, whh, bias, lw, lb)

    y = out[:, :B, :out_size]                 # drop lane / batch padding
    return jnp.transpose(y, (1, 0, 2))        # (B, S, out_size)


# -----------------------------------------------------------------------------
# Pure-JAX reference (PyTorch nn.LSTM + Linear semantics) for a self-check.
# -----------------------------------------------------------------------------
def lstm_reference(x, params, *, hidden=4, num_layers=4):
    B, S, _ = x.shape
    H, L = hidden, num_layers
    h = [jnp.zeros((B, H), jnp.float32) for _ in range(L)]
    c = [jnp.zeros((B, H), jnp.float32) for _ in range(L)]
    outs = []
    for t in range(S):
        inp = x[:, t, :].astype(jnp.float32)
        for l in range(L):
            gates = (inp @ params[f"w_ih_{l}"].T + h[l] @ params[f"w_hh_{l}"].T
                     + params[f"b_ih_{l}"] + params[f"b_hh_{l}"])
            i = jax.nn.sigmoid(gates[:, 0 * H:1 * H])
            f = jax.nn.sigmoid(gates[:, 1 * H:2 * H])
            g = jnp.tanh(gates[:, 2 * H:3 * H])
            o = jax.nn.sigmoid(gates[:, 3 * H:4 * H])
            c[l] = f * c[l] + i * g
            h[l] = o * jnp.tanh(c[l])
            inp = h[l]
        outs.append(inp)
    v2 = jnp.stack(outs, axis=1)                               # (B, S, H)
    return v2 @ params["lin_w"].T + params["lin_b"]            # (B, S, out)


if __name__ == "__main__":
    # lstm(input_size=16, hidden_size=4, output_size=1, num_layers=4)
    input_size, hidden, num_layers, out_size = 16, 4, 4, 1
    B, S = 2, 8

    key = jax.random.PRNGKey(0)
    keys = jax.random.split(key, 4 * num_layers + 3)
    params = {}
    scale = 0.5  # ~1/sqrt(hidden)
    idx = 0
    for l in range(num_layers):
        din = input_size if l == 0 else hidden
        params[f"w_ih_{l}"] = jax.random.uniform(keys[idx], (4 * hidden, din),
                                                 jnp.float32, -scale, scale); idx += 1
        params[f"w_hh_{l}"] = jax.random.uniform(keys[idx], (4 * hidden, hidden),
                                                 jnp.float32, -scale, scale); idx += 1
        params[f"b_ih_{l}"] = jax.random.uniform(keys[idx], (4 * hidden,),
                                                 jnp.float32, -scale, scale); idx += 1
        params[f"b_hh_{l}"] = jax.random.uniform(keys[idx], (4 * hidden,),
                                                 jnp.float32, -scale, scale); idx += 1
    params["lin_w"] = jax.random.normal(keys[idx], (out_size, hidden), jnp.float32); idx += 1
    params["lin_b"] = jax.random.uniform(keys[idx], (out_size,), jnp.float32,
                                         -scale, scale); idx += 1

    x = jax.random.normal(keys[idx], (B, S, input_size), jnp.float32)

    out = jax.block_until_ready(
        lstm_forward(x, params, hidden=hidden, num_layers=num_layers, out_size=out_size))
    ref = jax.block_until_ready(
        lstm_reference(x, params, hidden=hidden, num_layers=num_layers))

    assert out.shape == (B, S, out_size), out.shape
    assert jnp.allclose(out, ref, rtol=5e-4, atol=5e-4), float(jnp.max(jnp.abs(out - ref)))
    print("KERNEL_OK")
</pallas_src>

<mosaic_0001>
module attributes {stable_mosaic.version = 11 : i64} {
  func.func @kernel(%arg0: i32, %arg1: i32, %arg2: memref<1x8x128xf32, #tpu.memory_space<vmem>>, %arg3: memref<128x512xf32, #tpu.memory_space<vmem>>, %arg4: memref<3x128x512xf32, #tpu.memory_space<vmem>>, %arg5: memref<4x128x512xf32, #tpu.memory_space<vmem>>, %arg6: memref<4x1x512xf32, #tpu.memory_space<vmem>>, %arg7: memref<128x128xf32, #tpu.memory_space<vmem>>, %arg8: memref<1x128xf32, #tpu.memory_space<vmem>>, %arg9: memref<1x8x128xf32, #tpu.memory_space<vmem>>, %arg10: memref<4x8x128xf32, #tpu.memory_space<vmem>>, %arg11: memref<4x8x128xf32, #tpu.memory_space<vmem>>) attributes {dimension_semantics = [#tpu.dimension_semantics<parallel>, #tpu.dimension_semantics<arbitrary>], iteration_bounds = array<i64: 1, 8>, scalar_prefetch = 0 : i64, scratch_operands = 2 : i64, tpu.core_type = #tpu.core_type<tc>, window_params = [{transform_indices = @transform_0, window_bounds = array<i64: 1, 8, 128>}, {pipeline_mode = #tpu.pipeline_mode<synchronous>, transform_indices = @transform_1, window_bounds = array<i64: 128, 512>}, {pipeline_mode = #tpu.pipeline_mode<synchronous>, transform_indices = @transform_2, window_bounds = array<i64: 3, 128, 512>}, {pipeline_mode = #tpu.pipeline_mode<synchronous>, transform_indices = @transform_3, window_bounds = array<i64: 4, 128, 512>}, {pipeline_mode = #tpu.pipeline_mode<synchronous>, transform_indices = @transform_4, window_bounds = array<i64: 4, 1, 512>}, {pipeline_mode = #tpu.pipeline_mode<synchronous>, transform_indices = @transform_5, window_bounds = array<i64: 128, 128>}, {pipeline_mode = #tpu.pipeline_mode<synchronous>, transform_indices = @transform_6, window_bounds = array<i64: 1, 128>}, {transform_indices = @transform_7, window_bounds = array<i64: 1, 8, 128>}]} {
    %c0_i32 = arith.constant 0 : i32
    %0 = arith.cmpi eq, %arg1, %c0_i32 : i32
    %1 = arith.extui %0 : i1 to i32
    %c0_i32_0 = arith.constant 0 : i32
    %2 = arith.cmpi ne, %1, %c0_i32_0 : i32
    scf.if %2 {
      %cst_110 = arith.constant 0.000000e+00 : f32
      %196 = vector.broadcast %cst_110 : f32 to vector<4x8x128xf32>
      %c0_111 = arith.constant 0 : index
      %c0_112 = arith.constant 0 : index
      %c0_113 = arith.constant 0 : index
      %197 = vector.load %arg10[%c0_111, %c0_112, %c0_113] : memref<4x8x128xf32, #tpu.memory_space<vmem>>, vector<4x8x128xf32>
      tpu.vector_store %arg10[%c0_111, %c0_112, %c0_113], %196 {strides = array<i32>} : memref<4x8x128xf32, #tpu.memory_space<vmem>>, vector<4x8x128xf32>,
      %cst_114 = arith.constant 0.000000e+00 : f32
      %198 = vector.broadcast %cst_114 : f32 to vector<4x8x128xf32>
      %c0_115 = arith.constant 0 : index
      %c0_116 = arith.constant 0 : index
      %c0_117 = arith.constant 0 : index
      %199 = vector.load %arg11[%c0_115, %c0_116, %c0_117] : memref<4x8x128xf32, #tpu.memory_space<vmem>>, vector<4x8x128xf32>
      tpu.vector_store %arg11[%c0_115, %c0_116, %c0_117], %198 {strides = array<i32>} : memref<4x8x128xf32, #tpu.memory_space<vmem>>, vector<4x8x128xf32>,
    } else {
    }
    %c0 = arith.constant 0 : index
    %c0_1 = arith.constant 0 : index
    %c0_2 = arith.constant 0 : index
    %3 = vector.load %arg2[%c0, %c0_1, %c0_2] : memref<1x8x128xf32, #tpu.memory_space<vmem>>, vector<1x8x128xf32>
    %4 = vector.shape_cast %3 : vector<1x8x128xf32> to vector<8x128xf32>
    %c0_3 = arith.constant 0 : index
    %c0_4 = arith.constant 0 : index
    %5 = vector.load %arg3[%c0_3, %c0_4] : memref<128x512xf32, #tpu.memory_space<vmem>>, vector<128x512xf32>
    %cst = arith.constant dense<0.000000e+00> : vector<8x512xf32>
    %6 = tpu.matmul %4, %5, %cst {dimension_numbers = #tpu.dot_dimension_numbers<[1], [0], [0], [1], [0, 0, 1, 1], [], []>} : vector<8x128xf32>, vector<128x512xf32>, vector<8x512xf32> -> vector<8x512xf32>
    %c0_5 = arith.constant 0 : index
    %c0_6 = arith.constant 0 : index
    %c0_7 = arith.constant 0 : index
    %7 = vector.load %arg10[%c0_5, %c0_6, %c0_7] : memref<4x8x128xf32, #tpu.memory_space<vmem>>, vector<1x8x128xf32>
    %8 = vector.shape_cast %7 : vector<1x8x128xf32> to vector<8x128xf32>
    %c0_8 = arith.constant 0 : index
    %c0_9 = arith.constant 0 : index
    %c0_10 = arith.constant 0 : index
    %9 = vector.load %arg5[%c0_8, %c0_9, %c0_10] : memref<4x128x512xf32, #tpu.memory_space<vmem>>, vector<1x128x512xf32>
    %10 = vector.shape_cast %9 : vector<1x128x512xf32> to vector<128x512xf32>
    %cst_11 = arith.constant dense<0.000000e+00> : vector<8x512xf32>
    %11 = tpu.matmul %8, %10, %cst_11 {dimension_numbers = #tpu.dot_dimension_numbers<[1], [0], [0], [1], [0, 0, 1, 1], [], []>} : vector<8x128xf32>, vector<128x512xf32>, vector<8x512xf32> -> vector<8x512xf32>
    %12 = arith.addf %6, %11 : vector<8x512xf32>
    %c0_12 = arith.constant 0 : index
    %c0_13 = arith.constant 0 : index
    %c0_14 = arith.constant 0 : index
    %13 = vector.load %arg6[%c0_12, %c0_13, %c0_14] : memref<4x1x512xf32, #tpu.memory_space<vmem>>, vector<1x1x512xf32>
    %14 = vector.shape_cast %13 : vector<1x1x512xf32> to vector<1x512xf32>
    %15 = vector.broadcast %14 : vector<1x512xf32> to vector<8x512xf32>
    %16 = arith.addf %12, %15 : vector<8x512xf32>
    %17 = vector.extract_strided_slice %16 {offsets = [0, 0], sizes = [8, 128], strides = [1, 1]} : vector<8x512xf32> to vector<8x128xf32>
    %18 = arith.negf %17 : vector<8x128xf32>
    %19 = math.exp %18 : vector<8x128xf32>
    %cst_15 = arith.constant 1.000000e+00 : f32
    %20 = vector.broadcast %cst_15 : f32 to vector<8x128xf32>
    %21 = arith.addf %20, %19 : vector<8x128xf32>
    %22 = arith.divf %20, %21 : vector<8x128xf32>
    %23 = vector.extract_strided_slice %16 {offsets = [0, 128], sizes = [8, 128], strides = [1, 1]} : vector<8x512xf32> to vector<8x128xf32>
    %24 = arith.negf %23 : vector<8x128xf32>
    %25 = math.exp %24 : vector<8x128xf32>
    %cst_16 = arith.constant 1.000000e+00 : f32
    %26 = vector.broadcast %cst_16 : f32 to vector<8x128xf32>
    %27 = arith.addf %26, %25 : vector<8x128xf32>
    %28 = arith.divf %26, %27 : vector<8x128xf32>
    %29 = vector.extract_strided_slice %16 {offsets = [0, 256], sizes = [8, 128], strides = [1, 1]} : vector<8x512xf32> to vector<8x128xf32>
    %30 = math.tanh %29 : vector<8x128xf32>
    %31 = vector.extract_strided_slice %16 {offsets = [0, 384], sizes = [8, 128], strides = [1, 1]} : vector<8x512xf32> to vector<8x128xf32>
    %32 = arith.negf %31 : vector<8x128xf32>
    %33 = math.exp %32 : vector<8x128xf32>
    %cst_17 = arith.constant 1.000000e+00 : f32
    %34 = vector.broadcast %cst_17 : f32 to vector<8x128xf32>
    %35 = arith.addf %34, %33 : vector<8x128xf32>
    %36 = arith.divf %34, %35 : vector<8x128xf32>
    %c0_18 = arith.constant 0 : index
    %c0_19 = arith.constant 0 : index
    %c0_20 = arith.constant 0 : index
    %37 = vector.load %arg11[%c0_18, %c0_19, %c0_20] : memref<4x8x128xf32, #tpu.memory_space<vmem>>, vector<1x8x128xf32>
    %38 = vector.shape_cast %37 : vector<1x8x128xf32> to vector<8x128xf32>
    %39 = arith.mulf %28, %38 : vector<8x128xf32>
    %40 = arith.mulf %22, %30 : vector<8x128xf32>
    %41 = arith.addf %39, %40 : vector<8x128xf32>
    %42 = math.tanh %41 : vector<8x128xf32>
    %43 = arith.mulf %36, %42 : vector<8x128xf32>
    %c0_21 = arith.constant 0 : index
    %c0_22 = arith.constant 0 : index
    %c0_23 = arith.constant 0 : index
    %44 = vector.load %arg11[%c0_21, %c0_22, %c0_23] : memref<4x8x128xf32, #tpu.memory_space<vmem>>, vector<1x8x128xf32>
    %45 = vector.shape_cast %44 : vector<1x8x128xf32> to vector<8x128xf32>
    %46 = vector.shape_cast %41 : vector<8x128xf32> to vector<1x8x128xf32>
    tpu.vector_store %arg11[%c0_21, %c0_22, %c0_23], %46 {strides = array<i32>} : memref<4x8x128xf32, #tpu.memory_space<vmem>>, vector<1x8x128xf32>,
    %c0_24 = arith.constant 0 : index
    %c0_25 = arith.constant 0 : index
    %c0_26 = arith.constant 0 : index
    %47 = vector.load %arg10[%c0_24, %c0_25, %c0_26] : memref<4x8x128xf32, #tpu.memory_space<vmem>>, vector<1x8x128xf32>
    %48 = vector.shape_cast %47 : vector<1x8x128xf32> to vector<8x128xf32>
    %49 = vector.shape_cast %43 : vector<8x128xf32> to vector<1x8x128xf32>
    tpu.vector_store %arg10[%c0_24, %c0_25, %c0_26], %49 {strides = array<i32>} : memref<4x8x128xf32, #tpu.memory_space<vmem>>, vector<1x8x128xf32>,
    %c0_27 = arith.constant 0 : index
    %c0_28 = arith.constant 0 : index
    %c0_29 = arith.constant 0 : index
    %50 = vector.load %arg4[%c0_27, %c0_28, %c0_29] : memref<3x128x512xf32, #tpu.memory_space<vmem>>, vector<1x128x512xf32>
    %51 = vector.shape_cast %50 : vector<1x128x512xf32> to vector<128x512xf32>
    %cst_30 = arith.constant dense<0.000000e+00> : vector<8x512xf32>
    %52 = tpu.matmul %43, %51, %cst_30 {dimension_numbers = #tpu.dot_dimension_numbers<[1], [0], [0], [1], [0, 0, 1, 1], [], []>} : vector<8x128xf32>, vector<128x512xf32>, vector<8x512xf32> -> vector<8x512xf32>
    %c1 = arith.constant 1 : index
    %c0_31 = arith.constant 0 : index
    %c0_32 = arith.constant 0 : index
    %53 = vector.load %arg10[%c1, %c0_31, %c0_32] : memref<4x8x128xf32, #tpu.memory_space<vmem>>, vector<1x8x128xf32>
    %54 = vector.shape_cast %53 : vector<1x8x128xf32> to vector<8x128xf32>
    %c1_33 = arith.constant 1 : index
    %c0_34 = arith.constant 0 : index
    %c0_35 = arith.constant 0 : index
    %55 = vector.load %arg5[%c1_33, %c0_34, %c0_35] : memref<4x128x512xf32, #tpu.memory_space<vmem>>, vector<1x128x512xf32>
    %56 = vector.shape_cast %55 : vector<1x128x512xf32> to vector<128x512xf32>
    %cst_36 = arith.constant dense<0.000000e+00> : vector<8x512xf32>
    %57 = tpu.matmul %54, %56, %cst_36 {dimension_numbers = #tpu.dot_dimension_numbers<[1], [0], [0], [1], [0, 0, 1, 1], [], []>} : vector<8x128xf32>, vector<128x512xf32>, vector<8x512xf32> -> vector<8x512xf32>
    %58 = arith.addf %52, %57 : vector<8x512xf32>
    %c1_37 = arith.constant 1 : index
    %c0_38 = arith.constant 0 : index
    %c0_39 = arith.constant 0 : index
    %59 = vector.load %arg6[%c1_37, %c0_38, %c0_39] : memref<4x1x512xf32, #tpu.memory_space<vmem>>, vector<1x1x512xf32>
    %60 = vector.shape_cast %59 : vector<1x1x512xf32> to vector<1x512xf32>
    %61 = vector.broadcast %60 : vector<1x512xf32> to vector<8x512xf32>
    %62 = arith.addf %58, %61 : vector<8x512xf32>
    %63 = vector.extract_strided_slice %62 {offsets = [0, 0], sizes = [8, 128], strides = [1, 1]} : vector<8x512xf32> to vector<8x128xf32>
    %64 = arith.negf %63 : vector<8x128xf32>
    %65 = math.exp %64 : vector<8x128xf32>
    %cst_40 = arith.constant 1.000000e+00 : f32
    %66 = vector.broadcast %cst_40 : f32 to vector<8x128xf32>
    %67 = arith.addf %66, %65 : vector<8x128xf32>
    %68 = arith.divf %66, %67 : vector<8x128xf32>
    %69 = vector.extract_strided_slice %62 {offsets = [0, 128], sizes = [8, 128], strides = [1, 1]} : vector<8x512xf32> to vector<8x128xf32>
    %70 = arith.negf %69 : vector<8x128xf32>
    %71 = math.exp %70 : vector<8x128xf32>
    %cst_41 = arith.constant 1.000000e+00 : f32
    %72 = vector.broadcast %cst_41 : f32 to vector<8x128xf32>
    %73 = arith.addf %72, %71 : vector<8x128xf32>
    %74 = arith.divf %72, %73 : vector<8x128xf32>
    %75 = vector.extract_strided_slice %62 {offsets = [0, 256], sizes = [8, 128], strides = [1, 1]} : vector<8x512xf32> to vector<8x128xf32>
    %76 = math.tanh %75 : vector<8x128xf32>
    %77 = vector.extract_strided_slice %62 {offsets = [0, 384], sizes = [8, 128], strides = [1, 1]} : vector<8x512xf32> to vector<8x128xf32>
    %78 = arith.negf %77 : vector<8x128xf32>
    %79 = math.exp %78 : vector<8x128xf32>
    %cst_42 = arith.constant 1.000000e+00 : f32
    %80 = vector.broadcast %cst_42 : f32 to vector<8x128xf32>
    %81 = arith.addf %80, %79 : vector<8x128xf32>
    %82 = arith.divf %80, %81 : vector<8x128xf32>
    %c1_43 = arith.constant 1 : index
    %c0_44 = arith.constant 0 : index
    %c0_45 = arith.constant 0 : index
    %83 = vector.load %arg11[%c1_43, %c0_44, %c0_45] : memref<4x8x128xf32, #tpu.memory_space<vmem>>, vector<1x8x128xf32>
    %84 = vector.shape_cast %83 : vector<1x8x128xf32> to vector<8x128xf32>
    %85 = arith.mulf %74, %84 : vector<8x128xf32>
    %86 = arith.mulf %68, %76 : vector<8x128xf32>
    %87 = arith.addf %85, %86 : vector<8x128xf32>
    %88 = math.tanh %87 : vector<8x128xf32>
    %89 = arith.mulf %82, %88 : vector<8x128xf32>
    %c1_46 = arith.constant 1 : index
    %c0_47 = arith.constant 0 : index
    %c0_48 = arith.constant 0 : index
    %90 = vector.load %arg11[%c1_46, %c0_47, %c0_48] : memref<4x8x128xf32, #tpu.memory_space<vmem>>, vector<1x8x128xf32>
    %91 = vector.shape_cast %90 : vector<1x8x128xf32> to vector<8x128xf32>
    %92 = vector.shape_cast %87 : vector<8x128xf32> to vector<1x8x128xf32>
    tpu.vector_store %arg11[%c1_46, %c0_47, %c0_48], %92 {strides = array<i32>} : memref<4x8x128xf32, #tpu.memory_space<vmem>>, vector<1x8x128xf32>,
    %c1_49 = arith.constant 1 : index
    %c0_50 = arith.constant 0 : index
    %c0_51 = arith.constant 0 : index
    %93 = vector.load %arg10[%c1_49, %c0_50, %c0_51] : memref<4x8x128xf32, #tpu.memory_space<vmem>>, vector<1x8x128xf32>
    %94 = vector.shape_cast %93 : vector<1x8x128xf32> to vector<8x128xf32>
    %95 = vector.shape_cast %89 : vector<8x128xf32> to vector<1x8x128xf32>
    tpu.vector_store %arg10[%c1_49, %c0_50, %c0_51], %95 {strides = array<i32>} : memref<4x8x128xf32, #tpu.memory_space<vmem>>, vector<1x8x128xf32>,
    %c1_52 = arith.constant 1 : index
    %c0_53 = arith.constant 0 : index
    %c0_54 = arith.constant 0 : index
    %96 = vector.load %arg4[%c1_52, %c0_53, %c0_54] : memref<3x128x512xf32, #tpu.memory_space<vmem>>, vector<1x128x512xf32>
    %97 = vector.shape_cast %96 : vector<1x128x512xf32> to vector<128x512xf32>
    %cst_55 = arith.constant dense<0.000000e+00> : vector<8x512xf32>
    %98 = tpu.matmul %89, %97, %cst_55 {dimension_numbers = #tpu.dot_dimension_numbers<[1], [0], [0], [1], [0, 0, 1, 1], [], []>} : vector<8x128xf32>, vector<128x512xf32>, vector<8x512xf32> -> vector<8x512xf32>
    %c2 = arith.constant 2 : index
    %c0_56 = arith.constant 0 : index
    %c0_57 = arith.constant 0 : index
    %99 = vector.load %arg10[%c2, %c0_56, %c0_57] : memref<4x8x128xf32, #tpu.memory_space<vmem>>, vector<1x8x128xf32>
    %100 = vector.shape_cast %99 : vector<1x8x128xf32> to vector<8x128xf32>
    %c2_58 = arith.constant 2 : index
    %c0_59 = arith.constant 0 : index
    %c0_60 = arith.constant 0 : index
    %101 = vector.load %arg5[%c2_58, %c0_59, %c0_60] : memref<4x128x512xf32, #tpu.memory_space<vmem>>, vector<1x128x512xf32>
    %102 = vector.shape_cast %101 : vector<1x128x512xf32> to vector<128x512xf32>
    %cst_61 = arith.constant dense<0.000000e+00> : vector<8x512xf32>
    %103 = tpu.matmul %100, %102, %cst_61 {dimension_numbers = #tpu.dot_dimension_numbers<[1], [0], [0], [1], [0, 0, 1, 1], [], []>} : vector<8x128xf32>, vector<128x512xf32>, vector<8x512xf32> -> vector<8x512xf32>
    %104 = arith.addf %98, %103 : vector<8x512xf32>
    %c2_62 = arith.constant 2 : index
    %c0_63 = arith.constant 0 : index
    %c0_64 = arith.constant 0 : index
    %105 = vector.load %arg6[%c2_62, %c0_63, %c0_64] : memref<4x1x512xf32, #tpu.memory_space<vmem>>, vector<1x1x512xf32>
    %106 = vector.shape_cast %105 : vector<1x1x512xf32> to vector<1x512xf32>
    %107 = vector.broadcast %106 : vector<1x512xf32> to vector<8x512xf32>
    %108 = arith.addf %104, %107 : vector<8x512xf32>
    %109 = vector.extract_strided_slice %108 {offsets = [0, 0], sizes = [8, 128], strides = [1, 1]} : vector<8x512xf32> to vector<8x128xf32>
    %110 = arith.negf %109 : vector<8x128xf32>
    %111 = math.exp %110 : vector<8x128xf32>
    %cst_65 = arith.constant 1.000000e+00 : f32
    %112 = vector.broadcast %cst_65 : f32 to vector<8x128xf32>
    %113 = arith.addf %112, %111 : vector<8x128xf32>
    %114 = arith.divf %112, %113 : vector<8x128xf32>
    %115 = vector.extract_strided_slice %108 {offsets = [0, 128], sizes = [8, 128], strides = [1, 1]} : vector<8x512xf32> to vector<8x128xf32>
    %116 = arith.negf %115 : vector<8x128xf32>
    %117 = math.exp %116 : vector<8x128xf32>
    %cst_66 = arith.constant 1.000000e+00 : f32
    %118 = vector.broadcast %cst_66 : f32 to vector<8x128xf32>
    %119 = arith.addf %118, %117 : vector<8x128xf32>
    %120 = arith.divf %118, %119 : vector<8x128xf32>
    %121 = vector.extract_strided_slice %108 {offsets = [0, 256], sizes = [8, 128], strides = [1, 1]} : vector<8x512xf32> to vector<8x128xf32>
    %122 = math.tanh %121 : vector<8x128xf32>
    %123 = vector.extract_strided_slice %108 {offsets = [0, 384], sizes = [8, 128], strides = [1, 1]} : vector<8x512xf32> to vector<8x128xf32>
    %124 = arith.negf %123 : vector<8x128xf32>
    %125 = math.exp %124 : vector<8x128xf32>
    %cst_67 = arith.constant 1.000000e+00 : f32
    %126 = vector.broadcast %cst_67 : f32 to vector<8x128xf32>
    %127 = arith.addf %126, %125 : vector<8x128xf32>
    %128 = arith.divf %126, %127 : vector<8x128xf32>
    %c2_68 = arith.constant 2 : index
    %c0_69 = arith.constant 0 : index
    %c0_70 = arith.constant 0 : index
    %129 = vector.load %arg11[%c2_68, %c0_69, %c0_70] : memref<4x8x128xf32, #tpu.memory_space<vmem>>, vector<1x8x128xf32>
    %130 = vector.shape_cast %129 : vector<1x8x128xf32> to vector<8x128xf32>
    %131 = arith.mulf %120, %130 : vector<8x128xf32>
    %132 = arith.mulf %114, %122 : vector<8x128xf32>
    %133 = arith.addf %131, %132 : vector<8x128xf32>
    %134 = math.tanh %133 : vector<8x128xf32>
    %135 = arith.mulf %128, %134 : vector<8x128xf32>
    %c2_71 = arith.constant 2 : index
    %c0_72 = arith.constant 0 : index
    %c0_73 = arith.constant 0 : index
    %136 = vector.load %arg11[%c2_71, %c0_72, %c0_73] : memref<4x8x128xf32, #tpu.memory_space<vmem>>, vector<1x8x128xf32>
    %137 = vector.shape_cast %136 : vector<1x8x128xf32> to vector<8x128xf32>
    %138 = vector.shape_cast %133 : vector<8x128xf32> to vector<1x8x128xf32>
    tpu.vector_store %arg11[%c2_71, %c0_72, %c0_73], %138 {strides = array<i32>} : memref<4x8x128xf32, #tpu.memory_space<vmem>>, vector<1x8x128xf32>,
    %c2_74 = arith.constant 2 : index
    %c0_75 = arith.constant 0 : index
    %c0_76 = arith.constant 0 : index
    %139 = vector.load %arg10[%c2_74, %c0_75, %c0_76] : memref<4x8x128xf32, #tpu.memory_space<vmem>>, vector<1x8x128xf32>
    %140 = vector.shape_cast %139 : vector<1x8x128xf32> to vector<8x128xf32>
    %141 = vector.shape_cast %135 : vector<8x128xf32> to vector<1x8x128xf32>
    tpu.vector_store %arg10[%c2_74, %c0_75, %c0_76], %141 {strides = array<i32>} : memref<4x8x128xf32, #tpu.memory_space<vmem>>, vector<1x8x128xf32>,
    %c2_77 = arith.constant 2 : index
    %c0_78 = arith.constant 0 : index
    %c0_79 = arith.constant 0 : index
    %142 = vector.load %arg4[%c2_77, %c0_78, %c0_79] : memref<3x128x512xf32, #tpu.memory_space<vmem>>, vector<1x128x512xf32>
    %143 = vector.shape_cast %142 : vector<1x128x512xf32> to vector<128x512xf32>
    %cst_80 = arith.constant dense<0.000000e+00> : vector<8x512xf32>
    %144 = tpu.matmul %135, %143, %cst_80 {dimension_numbers = #tpu.dot_dimension_numbers<[1], [0], [0], [1], [0, 0, 1, 1], [], []>} : vector<8x128xf32>, vector<128x512xf32>, vector<8x512xf32> -> vector<8x512xf32>
    %c3 = arith.constant 3 : index
    %c0_81 = arith.constant 0 : index
    %c0_82 = arith.constant 0 : index
    %145 = vector.load %arg10[%c3, %c0_81, %c0_82] : memref<4x8x128xf32, #tpu.memory_space<vmem>>, vector<1x8x128xf32>
    %146 = vector.shape_cast %145 : vector<1x8x128xf32> to vector<8x128xf32>
    %c3_83 = arith.constant 3 : index
    %c0_84 = arith.constant 0 : index
    %c0_85 = arith.constant 0 : index
    %147 = vector.load %arg5[%c3_83, %c0_84, %c0_85] : memref<4x128x512xf32, #tpu.memory_space<vmem>>, vector<1x128x512xf32>
    %148 = vector.shape_cast %147 : vector<1x128x512xf32> to vector<128x512xf32>
    %cst_86 = arith.constant dense<0.000000e+00> : vector<8x512xf32>
    %149 = tpu.matmul %146, %148, %cst_86 {dimension_numbers = #tpu.dot_dimension_numbers<[1], [0], [0], [1], [0, 0, 1, 1], [], []>} : vector<8x128xf32>, vector<128x512xf32>, vector<8x512xf32> -> vector<8x512xf32>
    %150 = arith.addf %144, %149 : vector<8x512xf32>
    %c3_87 = arith.constant 3 : index
    %c0_88 = arith.constant 0 : index
    %c0_89 = arith.constant 0 : index
    %151 = vector.load %arg6[%c3_87, %c0_88, %c0_89] : memref<4x1x512xf32, #tpu.memory_space<vmem>>, vector<1x1x512xf32>
    %152 = vector.shape_cast %151 : vector<1x1x512xf32> to vector<1x512xf32>
    %153 = vector.broadcast %152 : vector<1x512xf32> to vector<8x512xf32>
    %154 = arith.addf %150, %153 : vector<8x512xf32>
    %155 = vector.extract_strided_slice %154 {offsets = [0, 0], sizes = [8, 128], strides = [1, 1]} : vector<8x512xf32> to vector<8x128xf32>
    %156 = arith.negf %155 : vector<8x128xf32>
    %157 = math.exp %156 : vector<8x128xf32>
    %cst_90 = arith.constant 1.000000e+00 : f32
    %158 = vector.broadcast %cst_90 : f32 to vector<8x128xf32>
    %159 = arith.addf %158, %157 : vector<8x128xf32>
    %160 = arith.divf %158, %159 : vector<8x128xf32>
    %161 = vector.extract_strided_slice %154 {offsets = [0, 128], sizes = [8, 128], strides = [1, 1]} : vector<8x512xf32> to vector<8x128xf32>
    %162 = arith.negf %161 : vector<8x128xf32>
    %163 = math.exp %162 : vector<8x128xf32>
    %cst_91 = arith.constant 1.000000e+00 : f32
    %164 = vector.broadcast %cst_91 : f32 to vector<8x128xf32>
    %165 = arith.addf %164, %163 : vector<8x128xf32>
    %166 = arith.divf %164, %165 : vector<8x128xf32>
    %167 = vector.extract_strided_slice %154 {offsets = [0, 256], sizes = [8, 128], strides = [1, 1]} : vector<8x512xf32> to vector<8x128xf32>
    %168 = math.tanh %167 : vector<8x128xf32>
    %169 = vector.extract_strided_slice %154 {offsets = [0, 384], sizes = [8, 128], strides = [1, 1]} : vector<8x512xf32> to vector<8x128xf32>
    %170 = arith.negf %169 : vector<8x128xf32>
    %171 = math.exp %170 : vector<8x128xf32>
    %cst_92 = arith.constant 1.000000e+00 : f32
    %172 = vector.broadcast %cst_92 : f32 to vector<8x128xf32>
    %173 = arith.addf %172, %171 : vector<8x128xf32>
    %174 = arith.divf %172, %173 : vector<8x128xf32>
    %c3_93 = arith.constant 3 : index
    %c0_94 = arith.constant 0 : index
    %c0_95 = arith.constant 0 : index
    %175 = vector.load %arg11[%c3_93, %c0_94, %c0_95] : memref<4x8x128xf32, #tpu.memory_space<vmem>>, vector<1x8x128xf32>
    %176 = vector.shape_cast %175 : vector<1x8x128xf32> to vector<8x128xf32>
    %177 = arith.mulf %166, %176 : vector<8x128xf32>
    %178 = arith.mulf %160, %168 : vector<8x128xf32>
    %179 = arith.addf %177, %178 : vector<8x128xf32>
    %180 = math.tanh %179 : vector<8x128xf32>
    %181 = arith.mulf %174, %180 : vector<8x128xf32>
    %c3_96 = arith.constant 3 : index
    %c0_97 = arith.constant 0 : index
    %c0_98 = arith.constant 0 : index
    %182 = vector.load %arg11[%c3_96, %c0_97, %c0_98] : memref<4x8x128xf32, #tpu.memory_space<vmem>>, vector<1x8x128xf32>
    %183 = vector.shape_cast %182 : vector<1x8x128xf32> to vector<8x128xf32>
    %184 = vector.shape_cast %179 : vector<8x128xf32> to vector<1x8x128xf32>
    tpu.vector_store %arg11[%c3_96, %c0_97, %c0_98], %184 {strides = array<i32>} : memref<4x8x128xf32, #tpu.memory_space<vmem>>, vector<1x8x128xf32>,
    %c3_99 = arith.constant 3 : index
    %c0_100 = arith.constant 0 : index
    %c0_101 = arith.constant 0 : index
    %185 = vector.load %arg10[%c3_99, %c0_100, %c0_101] : memref<4x8x128xf32, #tpu.memory_space<vmem>>, vector<1x8x128xf32>
    %186 = vector.shape_cast %185 : vector<1x8x128xf32> to vector<8x128xf32>
    %187 = vector.shape_cast %181 : vector<8x128xf32> to vector<1x8x128xf32>
    tpu.vector_store %arg10[%c3_99, %c0_100, %c0_101], %187 {strides = array<i32>} : memref<4x8x128xf32, #tpu.memory_space<vmem>>, vector<1x8x128xf32>,
    %c0_102 = arith.constant 0 : index
    %c0_103 = arith.constant 0 : index
    %188 = vector.load %arg7[%c0_102, %c0_103] : memref<128x128xf32, #tpu.memory_space<vmem>>, vector<128x128xf32>
    %cst_104 = arith.constant dense<0.000000e+00> : vector<8x128xf32>
    %189 = tpu.matmul %181, %188, %cst_104 {dimension_numbers = #tpu.dot_dimension_numbers<[1], [0], [0], [1], [0, 0, 1, 1], [], []>} : vector<8x128xf32>, vector<128x128xf32>, vector<8x128xf32> -> vector<8x128xf32>
    %c0_105 = arith.constant 0 : index
    %c0_106 = arith.constant 0 : index
    %190 = vector.load %arg8[%c0_105, %c0_106] : memref<1x128xf32, #tpu.memory_space<vmem>>, vector<1x128xf32>
    %191 = vector.broadcast %190 : vector<1x128xf32> to vector<8x128xf32>
    %192 = arith.addf %189, %191 : vector<8x128xf32>
    %c0_107 = arith.constant 0 : index
    %c0_108 = arith.constant 0 : index
    %c0_109 = arith.constant 0 : index
    %193 = vector.load %arg9[%c0_107, %c0_108, %c0_109] : memref<1x8x128xf32, #tpu.memory_space<vmem>>, vector<1x8x128xf32>
    %194 = vector.shape_cast %193 : vector<1x8x128xf32> to vector<8x128xf32>
    %195 = vector.shape_cast %192 : vector<8x128xf32> to vector<1x8x128xf32>
    tpu.vector_store %arg9[%c0_107, %c0_108, %c0_109], %195 {strides = array<i32>} : memref<1x8x128xf32, #tpu.memory_space<vmem>>, vector<1x8x128xf32>,
    return
  }
  func.func @transform_0(%arg0: i32, %arg1: i32) -> (i32, i32, i32) {
    %c0_i32 = arith.constant 0 : i32
    %c0_i32_0 = arith.constant 0 : i32
    return %arg1, %arg0, %c0_i32 : i32, i32, i32
  }
  func.func @transform_1(%arg0: i32, %arg1: i32) -> (i32, i32) {
    %c0_i32 = arith.constant 0 : i32
    %c0_i32_0 = arith.constant 0 : i32
    %c0_i32_1 = arith.constant 0 : i32
    return %c0_i32, %c0_i32_0 : i32, i32
  }
  func.func @transform_2(%arg0: i32, %arg1: i32) -> (i32, i32, i32) {
    %c0_i32 = arith.constant 0 : i32
    %c0_i32_0 = arith.constant 0 : i32
    %c0_i32_1 = arith.constant 0 : i32
    %c0_i32_2 = arith.constant 0 : i32
    return %c0_i32, %c0_i32_0, %c0_i32_1 : i32, i32, i32
  }
  func.func @transform_3(%arg0: i32, %arg1: i32) -> (i32, i32, i32) {
    %c0_i32 = arith.constant 0 : i32
    %c0_i32_0 = arith.constant 0 : i32
    %c0_i32_1 = arith.constant 0 : i32
    %c0_i32_2 = arith.constant 0 : i32
    return %c0_i32, %c0_i32_0, %c0_i32_1 : i32, i32, i32
  }
  func.func @transform_4(%arg0: i32, %arg1: i32) -> (i32, i32, i32) {
    %c0_i32 = arith.constant 0 : i32
    %c0_i32_0 = arith.constant 0 : i32
    %c0_i32_1 = arith.constant 0 : i32
    %c0_i32_2 = arith.constant 0 : i32
    return %c0_i32, %c0_i32_0, %c0_i32_1 : i32, i32, i32
  }
  func.func @transform_5(%arg0: i32, %arg1: i32) -> (i32, i32) {
    %c0_i32 = arith.constant 0 : i32
    %c0_i32_0 = arith.constant 0 : i32
    %c0_i32_1 = arith.constant 0 : i32
    return %c0_i32, %c0_i32_0 : i32, i32
  }
  func.func @transform_6(%arg0: i32, %arg1: i32) -> (i32, i32) {
    %c0_i32 = arith.constant 0 : i32
    %c0_i32_0 = arith.constant 0 : i32
    %c0_i32_1 = arith.constant 0 : i32
    return %c0_i32, %c0_i32_0 : i32, i32
  }
  func.func @transform_7(%arg0: i32, %arg1: i32) -> (i32, i32, i32) {
    %c0_i32 = arith.constant 0 : i32
    %c0_i32_0 = arith.constant 0 : i32
    return %arg1, %arg0, %c0_i32 : i32, i32, i32
  }
}

</mosaic_0001>

<llo_original>
// kernel: tpu_custom_call.1
$region0: #{tpu_custom_call.1}
  #allocation0 [shape = 'u32[]', space=smem, size = 0x4, offset = 0x4, fixed_abs, tag = 'smem constant byte address 0x4 - core index']
  #allocation1 [shape = 'u32[144,128]{1,0:T(1,128)}', space=vmem, size = 0x12000, scoped, tag = 'internal scratch']
  #allocation2 [shape = 'f32[4,8,128]{2,1,0:T(8,128)}', space=vmem, size = 0x4000, scoped, tag = 'scratch operand']
  #allocation3 [shape = 'f32[4,8,128]{2,1,0:T(8,128)}', space=vmem, size = 0x4000, scoped, tag = 'scratch operand']
  %s0 = inlined_call_operand.hbm [shape: f32[8,8,128], index: 0, kind: input, shape index: {}]
  %s1 = inlined_call_operand.hbm [shape: f32[128,512], index: 1, kind: input, shape index: {}]
  %s2 = inlined_call_operand.hbm [shape: f32[3,128,512], index: 2, kind: input, shape index: {}]
  %s3 = inlined_call_operand.hbm [shape: f32[4,128,512], index: 3, kind: input, shape index: {}]
  %s4 = inlined_call_operand.hbm [shape: f32[4,1,512], index: 4, kind: input, shape index: {}]
  %s5 = inlined_call_operand.hbm [shape: f32[128,128], index: 5, kind: input, shape index: {}]
  %s6 = inlined_call_operand.vmem [shape: f32[1,128], index: 6, kind: input, shape index: {}]
  %s7 = inlined_call_operand.hbm [shape: f32[8,8,128], index: 7, kind: output, shape index: {}]
  %s8 = sld [smem:[#allocation0]]
  $region89: #{tpu_custom_call.1} parent=0
    _
  %s10 = ssub.s32 1, %s8
  %s11 = scalar_select 0, %s10, %s8
  $region1: #{tpu_custom_call.1} parent=0
    #allocation4 [shape = 'u8[8192]{0}', space=vmem, size = 0x2000, scoped, tag = 'input window, operand 0']
    #allocation5 [shape = 's32[2]{0}', space=sflag, size = 0x8, scoped, tag = 'scoped memory for tpu_custom_call.1']
    #allocation6 [shape = 's32[2]{0}', space=sflag, size = 0x8, scoped, tag = 'scoped memory for tpu_custom_call.1']
    #allocation7 [shape = 'u8[262144]{0}', space=vmem, size = 0x40000, scoped, tag = 'input window, operand 1, single buffered']
    #allocation8 [shape = 's32[1]{0}', space=sflag, size = 0x4, scoped, tag = 'scoped memory for tpu_custom_call.1']
    #allocation9 [shape = 'u8[786432]{0}', space=vmem, size = 0xc0000, scoped, tag = 'input window, operand 2, single buffered']
    #allocation10 [shape = 'u8[1048576]{0}', space=vmem, size = 0x100000, scoped, tag = 'input window, operand 3, single buffered']
    #allocation11 [shape = 's32[1]{0}', space=sflag, size = 0x4, scoped, tag = 'scoped memory for tpu_custom_call.1']
    #allocation12 [shape = 'u8[8192]{0}', space=vmem, size = 0x2000, scoped, tag = 'input window, operand 4, single buffered']
    #allocation13 [shape = 'u8[65536]{0}', space=vmem, size = 0x10000, scoped, tag = 'input window, operand 5, single buffered']
    #allocation14 [shape = 's32[1]{0}', space=sflag, size = 0x4, scoped, tag = 'scoped memory for tpu_custom_call.1']
    #allocation15 [shape = 'u8[8192]{0}', space=vmem, size = 0x2000, scoped, tag = 'output window, operand 0']
    %12 = vsyncpa [#allocation5], 0
    %s13 = scalar_lea.sflag [#allocation5], 1
    %14 = vsyncpa %s13, 0
    %15 = vsyncpa [#allocation8], 0
    %16 = vsyncpa [#allocation11], 0
    %17 = vsyncpa [#allocation14], 0
    %18 = vsyncpa [#allocation6], 0
    %s19 = scalar_lea.sflag [#allocation6], 1
    %20 = vsyncpa %s19, 0
    loop: start=0, step=1, limit=10
    $region2: #{tpu_custom_call.1} parent=1 // loop_pre_header
      _
    $region3: #{tpu_custom_call.1} parent=1 // loop_header
      %s22 = sphi 0, %s26
      %p23 = scmp.ge.s32.totalorder %s22, 10
      %s29 = sphi 0, %s41
      %s30 = sphi 0, %s37
      %s31 = sphi 0, %s29
      %s32 = sphi 0, %s30
      %s33 = sphi 0, %s31
      %s34 = sphi 0, %s32
      %s46 = sphi 0, %s48
      %s49 = sphi 0, %s46
      %s50 = sphi 0, %s49
      %s66 = sphi 0, %s50
      %s70 = sphi 0, %s70
      %s72 = sphi 0, %s70
      %s73 = sphi 0, %s72
      %s87 = sphi 0, %s73
      %s91 = sphi 0, %s91
      %s93 = sphi 0, %s91
      %s94 = sphi 0, %s93
      %s108 = sphi 0, %s94
      %s112 = sphi 0, %s112
      %s114 = sphi 0, %s112
      %s115 = sphi 0, %s114
      %s129 = sphi 0, %s115
      %s133 = sphi 0, %s133
      %s135 = sphi 0, %s133
      %s136 = sphi 0, %s135
      %s150 = sphi 0, %s136
      %s154 = sphi 0, %s154
      %s156 = sphi 0, %s154
      %s157 = sphi 0, %s156
      %s171 = sphi 0, %s157
      %s175 = sphi 0, %s175
      %s177 = sphi 0, %s175
      %s178 = sphi 0, %s177
      %s192 = sphi 0, %s178
      %s200 = sphi 0, %s202
      %s203 = sphi 0, %s200
      %s204 = sphi 0, %s203
      %s220 = sphi 0, %s204
    $region4: #{tpu_custom_call.1} parent=1 // loop_header_branch
      %25 = sbr.rel (%p23) target = $region8
    $region5: #{tpu_custom_call.1} parent=1 // loop_body
      %s27 = ssub.s32 %s22, 1
      %s28 = ssub.s32 %s22, 2
      %s35 = sadd.s32 1, %s30
      %p36 = scmp.ge.s32.totalorder %s35, 8
      %s37 = scalar_select %p36, 0, %s35
      %s38 = sadd.s32 1, %s29
      %s39 = scalar_select %p36, %s38, %s29
      %p40 = scmp.ge.s32.totalorder %s39, 1
      %s41 = scalar_select %p40, 0, %s39
      %s42 = ssub.s32 %s30, %s37
      %s43 = ssub.s32 %s29, %s41
      %s44 = sor.u32 %s42, %s43
      %p45 = scmp.eq.s32.totalorder %s44, 0
      %s47 = sadd.s32 %s46, 1
      %s48 = scalar_select %p45, %s46, %s47
      %p51 = pneg %p45
      %p52 = scmp.eq.s32.totalorder %s22, 7
      %p53 = por %p51, %p52
      %p54 = scmp.ne.s32.totalorder %s46, %s49
      %p55 = scmp.eq.s32.totalorder %s22, 0
      %p56 = por %p54, %p55
      %p57 = scmp.ne.s32.totalorder %s46, %s49
      %p58 = scmp.eq.s32.totalorder %s27, 7
      %p59 = por %p57, %p58
      %p60 = scmp.ne.s32.totalorder %s49, %s50
      %p61 = scmp.eq.s32.totalorder %s27, 0
      %p62 = por %p60, %p61
      %p63 = scmp.ne.s32.totalorder %s49, %s50
      %p64 = scmp.eq.s32.totalorder %s28, 7
      %p65 = por %p63, %p64
      %p67 = scmp.ne.s32.totalorder %s50, %s66
      %p68 = scmp.eq.s32.totalorder %s28, 0
      %p69 = por %p67, %p68
      %s71 = sadd.s32 %s70, 1
      %p74 = scmp.eq.s32.totalorder %s22, 7
      %p75 = scmp.ne.s32.totalorder %s70, %s72
      %p76 = scmp.eq.s32.totalorder %s22, 0
      %p77 = por %p75, %p76
      %p78 = scmp.ne.s32.totalorder %s70, %s72
      %p79 = scmp.eq.s32.totalorder %s27, 7
      %p80 = por %p78, %p79
      %p81 = scmp.ne.s32.totalorder %s72, %s73
      %p82 = scmp.eq.s32.totalorder %s27, 0
      %p83 = por %p81, %p82
      %p84 = scmp.ne.s32.totalorder %s72, %s73
      %p85 = scmp.eq.s32.totalorder %s28, 7
      %p86 = por %p84, %p85
      %p88 = scmp.ne.s32.totalorder %s73, %s87
      %p89 = scmp.eq.s32.totalorder %s28, 0
      %p90 = por %p88, %p89
      %s92 = sadd.s32 %s91, 1
      %p95 = scmp.eq.s32.totalorder %s22, 7
      %p96 = scmp.ne.s32.totalorder %s91, %s93
      %p97 = scmp.eq.s32.totalorder %s22, 0
      %p98 = por %p96, %p97
      %p99 = scmp.ne.s32.totalorder %s91, %s93
      %p100 = scmp.eq.s32.totalorder %s27, 7
      %p101 = por %p99, %p100
      %p102 = scmp.ne.s32.totalorder %s93, %s94
      %p103 = scmp.eq.s32.totalorder %s27, 0
      %p104 = por %p102, %p103
      %p105 = scmp.ne.s32.totalorder %s93, %s94
      %p106 = scmp.eq.s32.totalorder %s28, 7
      %p107 = por %p105, %p106
      %p109 = scmp.ne.s32.totalorder %s94, %s108
      %p110 = scmp.eq.s32.totalorder %s28, 0
      %p111 = por %p109, %p110
      %s113 = sadd.s32 %s112, 1
      %p116 = scmp.eq.s32.totalorder %s22, 7
      %p117 = scmp.ne.s32.totalorder %s112, %s114
      %p118 = scmp.eq.s32.totalorder %s22, 0
      %p119 = por %p117, %p118
      %p120 = scmp.ne.s32.totalorder %s112, %s114
      %p121 = scmp.eq.s32.totalorder %s27, 7
      %p122 = por %p120, %p121
      %p123 = scmp.ne.s32.totalorder %s114, %s115
      %p124 = scmp.eq.s32.totalorder %s27, 0
      %p125 = por %p123, %p124
      %p126 = scmp.ne.s32.totalorder %s114, %s115
      %p127 = scmp.eq.s32.totalorder %s28, 7
      %p128 = por %p126, %p127
      %p130 = scmp.ne.s32.totalorder %s115, %s129
      %p131 = scmp.eq.s32.totalorder %s28, 0
      %p132 = por %p130, %p131
      %s134 = sadd.s32 %s133, 1
      %p137 = scmp.eq.s32.totalorder %s22, 7
      %p138 = scmp.ne.s32.totalorder %s133, %s135
      %p139 = scmp.eq.s32.totalorder %s22, 0
      %p140 = por %p138, %p139
      %p141 = scmp.ne.s32.totalorder %s133, %s135
      %p142 = scmp.eq.s32.totalorder %s27, 7
      %p143 = por %p141, %p142
      %p144 = scmp.ne.s32.totalorder %s135, %s136
      %p145 = scmp.eq.s32.totalorder %s27, 0
      %p146 = por %p144, %p145
      %p147 = scmp.ne.s32.totalorder %s135, %s136
      %p148 = scmp.eq.s32.totalorder %s28, 7
      %p149 = por %p147, %p148
      %p151 = scmp.ne.s32.totalorder %s136, %s150
      %p152 = scmp.eq.s32.totalorder %s28, 0
      %p153 = por %p151, %p152
      %s155 = sadd.s32 %s154, 1
      %p158 = scmp.eq.s32.totalorder %s22, 7
      %p159 = scmp.ne.s32.totalorder %s154, %s156
      %p160 = scmp.eq.s32.totalorder %s22, 0
      %p161 = por %p159, %p160
      %p162 = scmp.ne.s32.totalorder %s154, %s156
      %p163 = scmp.eq.s32.totalorder %s27, 7
      %p164 = por %p162, %p163
      %p165 = scmp.ne.s32.totalorder %s156, %s157
      %p166 = scmp.eq.s32.totalorder %s27, 0
      %p167 = por %p165, %p166
      %p168 = scmp.ne.s32.totalorder %s156, %s157
      %p169 = scmp.eq.s32.totalorder %s28, 7
      %p170 = por %p168, %p169
      %p172 = scmp.ne.s32.totalorder %s157, %s171
      %p173 = scmp.eq.s32.totalorder %s28, 0
      %p174 = por %p172, %p173
      %s176 = sadd.s32 %s175, 1
      %p179 = scmp.eq.s32.totalorder %s22, 7
      %p180 = scmp.ne.s32.totalorder %s175, %s177
      %p181 = scmp.eq.s32.totalorder %s22, 0
      %p182 = por %p180, %p181
      %p183 = scmp.ne.s32.totalorder %s175, %s177
      %p184 = scmp.eq.s32.totalorder %s27, 7
      %p185 = por %p183, %p184
      %p186 = scmp.ne.s32.totalorder %s177, %s178
      %p187 = scmp.eq.s32.totalorder %s27, 0
      %p188 = por %p186, %p187
      %p189 = scmp.ne.s32.totalorder %s177, %s178
      %p190 = scmp.eq.s32.totalorder %s28, 7
      %p191 = por %p189, %p190
      %p193 = scmp.ne.s32.totalorder %s178, %s192
      %p194 = scmp.eq.s32.totalorder %s28, 0
      %p195 = por %p193, %p194
      %s196 = ssub.s32 %s30, %s37
      %s197 = ssub.s32 %s29, %s41
      %s198 = sor.u32 %s196, %s197
      %p199 = scmp.eq.s32.totalorder %s198, 0
      %s201 = sadd.s32 %s200, 1
      %s202 = scalar_select %p199, %s200, %s201
      %p205 = pneg %p199
      %p206 = scmp.eq.s32.totalorder %s22, 7
      %p207 = por %p205, %p206
      %p208 = scmp.ne.s32.totalorder %s200, %s203
      %p209 = scmp.eq.s32.totalorder %s22, 0
      %p210 = por %p208, %p209
      %p211 = scmp.ne.s32.totalorder %s200, %s203
      %p212 = scmp.eq.s32.totalorder %s27, 7
      %p213 = por %p211, %p212
      %p214 = scmp.ne.s32.totalorder %s203, %s204
      %p215 = scmp.eq.s32.totalorder %s27, 0
      %p216 = por %p214, %p215
      %p217 = scmp.ne.s32.totalorder %s203, %s204
      %p218 = scmp.eq.s32.totalorder %s28, 7
      %p219 = por %p217, %p218
      %p221 = scmp.ne.s32.totalorder %s204, %s220
      %p222 = scmp.eq.s32.totalorder %s28, 0
      %p223 = por %p221, %p222
      %p224 = scmp.le.s32.totalorder 1, %s22
      %p225 = scmp.lt.s32.totalorder %s22, 9
      %p226 = pnand %p224, %p225
      %p227 = pneg %p226
      // Predicated region
      $region9: #{tpu_custom_call.1} parent=5 // pred_check
        _
      $region10: #{tpu_custom_call.1} parent=5 // pred_check_branch
        %229 = sbr.rel (%p226) target = $region12
      $region11: #{tpu_custom_call.1} parent=5 // pred_region
        %s230 = ssub.s32 %s22, 1
        // Predicated region
        $region13: #{tpu_custom_call.1} parent=11 // pred_check
          %p231 = pneg %p83
        $region14: #{tpu_custom_call.1} parent=11 // pred_check_branch
          %233 = sbr.rel (%p231) target = $region16
        $region15: #{tpu_custom_call.1} parent=11 // pred_region
          %s235 = ssub.s32 8192, 8192
          %236 = vsyncadd [#allocation8], %s235
          %s237 = sshll.u32 [#allocation7], 4
          %s238 = int_to_ptr.vmem [resolvable:$true] %s237
          %243 = dma.hbm_to_vmem [thread:$0]  %s1, 8192, %s238, [#allocation8], 512, 512, 32
        $region16: #{tpu_custom_call.1} parent=11 // pred_fallthru
          _
        // Predicated region
        $region17: #{tpu_custom_call.1} parent=11 // pred_check
          %p244 = pneg %p104
        $region18: #{tpu_custom_call.1} parent=11 // pred_check_branch
          %246 = sbr.rel (%p244) target = $region20
        $region19: #{tpu_custom_call.1} parent=11 // pred_region
          %s248 = ssub.s32 24576, 24576
          %249 = vsyncadd [#allocation8], %s248
          %s250 = sshll.u32 [#allocation9], 4
          %s251 = int_to_ptr.vmem [resolvable:$true] %s250
          %256 = dma.hbm_to_vmem [thread:$0]  %s2, 24576, %s251, [#allocation8], 512, 512, 32
        $region20: #{tpu_custom_call.1} parent=11 // pred_fallthru
          _
        // Predicated region
        $region21: #{tpu_custom_call.1} parent=11 // pred_check
          %p257 = pneg %p125
        $region22: #{tpu_custom_call.1} parent=11 // pred_check_branch
          %259 = sbr.rel (%p257) target = $region24
        $region23: #{tpu_custom_call.1} parent=11 // pred_region
          %s261 = ssub.s32 32768, 32768
          %262 = vsyncadd [#allocation11], %s261
          %s263 = sshll.u32 [#allocation10], 4
          %s264 = int_to_ptr.vmem [resolvable:$true] %s263
          %269 = dma.hbm_to_vmem [thread:$0]  %s3, 32768, %s264, [#allocation11], 512, 512, 32
        $region24: #{tpu_custom_call.1} parent=11 // pred_fallthru
          _
        // Predicated region
        $region25: #{tpu_custom_call.1} parent=11 // pred_check
          %p270 = pneg %p146
        $region26: #{tpu_custom_call.1} parent=11 // pred_check_branch
          %272 = sbr.rel (%p270) target = $region28
        $region27: #{tpu_custom_call.1} parent=11 // pred_region
          %s274 = ssub.s32 256, 256
          %275 = vsyncadd [#allocation11], %s274
          %s276 = sshll.u32 [#allocation12], 4
          %s277 = int_to_ptr.vmem [resolvable:$true] %s276
          %282 = dma.hbm_to_vmem [thread:$0]  %s4, 256, %s277, [#allocation11], 64, 64, 4
        $region28: #{tpu_custom_call.1} parent=11 // pred_fallthru
          _
        // Predicated region
        $region29: #{tpu_custom_call.1} parent=11 // pred_check
          %p283 = pneg %p167
        $region30: #{tpu_custom_call.1} parent=11 // pred_check_branch
          %285 = sbr.rel (%p283) target = $region32
        $region31: #{tpu_custom_call.1} parent=11 // pred_region
          %s287 = ssub.s32 2048, 2048
          %288 = vsyncadd [#allocation14], %s287
          %s289 = sshll.u32 [#allocation13], 4
          %s290 = int_to_ptr.vmem [resolvable:$true] %s289
          %295 = dma.hbm_to_vmem [thread:$0]  %s5, 2048, %s290, [#allocation14], 128, 128, 8
        $region32: #{tpu_custom_call.1} parent=11 // pred_fallthru
          _
        // Predicated region
        $region33: #{tpu_custom_call.1} parent=11 // pred_check
          %p296 = pneg %p188
        $region34: #{tpu_custom_call.1} parent=11 // pred_check_branch
          %298 = sbr.rel (%p296) target = $region36
        $region35: #{tpu_custom_call.1} parent=11 // pred_region
          _
        $region36: #{tpu_custom_call.1} parent=11 // pred_fallthru
          _
      $region12: #{tpu_custom_call.1} parent=5 // pred_fallthru
        _
      %p299 = scmp.lt.s32.totalorder %s22, 8
      // Predicated region
      $region37: #{tpu_custom_call.1} parent=5 // pred_check
        %p300 = pneg %p299
      $region38: #{tpu_custom_call.1} parent=5 // pred_check_branch
        %302 = sbr.rel (%p300) target = $region40
      $region39: #{tpu_custom_call.1} parent=5 // pred_region
        // Predicated region
        $region41: #{tpu_custom_call.1} parent=39 // pred_check
          %p303 = pneg %p56
        $region42: #{tpu_custom_call.1} parent=39 // pred_check_branch
          %305 = sbr.rel (%p303) target = $region44
        $region43: #{tpu_custom_call.1} parent=39 // pred_region
          %s306 = sand.u32 %s46, 1
          %s307 = scalar_lea.sflag [#allocation5], %s306
          %s308 = sand.u32 %s46, 1
          %s309 = smul.addr %s308, 8
          %s310 = scalar_lea.vmem [#allocation4], %s309
          %s312 = ssub.s32 128, 128
          %313 = vsyncadd %s307, %s312
          %s314 = sadd.s32 %s29, %s30
          %s315 = smul.addr %s314, 128
          %s316 = scalar_lea.hbm %s0, %s315
          %s318 = sshll.u32 %s310, 4
          %s319 = int_to_ptr.vmem [resolvable:$true] %s318
          %321 = dma.hbm_to_vmem [thread:$0]  %s316, 128, %s319, %s307
        $region44: #{tpu_custom_call.1} parent=39 // pred_fallthru
          _
      $region40: #{tpu_custom_call.1} parent=5 // pred_fallthru
        _
      %p322 = scmp.le.s32.totalorder 1, %s22
      %p323 = scmp.lt.s32.totalorder %s22, 9
      %p324 = pnand %p322, %p323
      %p325 = pneg %p324
      // Predicated region
      $region45: #{tpu_custom_call.1} parent=5 // pred_check
        _
      $region46: #{tpu_custom_call.1} parent=5 // pred_check_branch
        %327 = sbr.rel (%p324) target = $region48
      $region47: #{tpu_custom_call.1} parent=5 // pred_region
        %s328 = ssub.s32 %s22, 1
        %s329 = sand.u32 %s49, 1
        %s330 = scalar_lea.sflag [#allocation5], %s329
        %s331 = sand.u32 %s49, 1
        %s332 = smul.addr %s331, 8
        %s333 = scalar_lea.vmem [#allocation4], %s332
        // Predicated region
        $region49: #{tpu_custom_call.1} parent=47 // pred_check
          %p334 = pneg %p62
        $region50: #{tpu_custom_call.1} parent=47 // pred_check_branch
          %336 = sbr.rel (%p334) target = $region52
        $region51: #{tpu_custom_call.1} parent=47 // pred_region
          %337 = dma.done %s330, 128
        $region52: #{tpu_custom_call.1} parent=47 // pred_fallthru
          _
        // Predicated region
        $region53: #{tpu_custom_call.1} parent=47 // pred_check
          %p338 = pneg %p83
        $region54: #{tpu_custom_call.1} parent=47 // pred_check_branch
          %340 = sbr.rel (%p338) target = $region56
        $region55: #{tpu_custom_call.1} parent=47 // pred_region
          %341 = dma.done [#allocation8], 8192
        $region56: #{tpu_custom_call.1} parent=47 // pred_fallthru
          _
        // Predicated region
        $region57: #{tpu_custom_call.1} parent=47 // pred_check
          %p342 = pneg %p104
        $region58: #{tpu_custom_call.1} parent=47 // pred_check_branch
          %344 = sbr.rel (%p342) target = $region60
        $region59: #{tpu_custom_call.1} parent=47 // pred_region
          %345 = dma.done [#allocation8], 24576
        $region60: #{tpu_custom_call.1} parent=47 // pred_fallthru
          _
        // Predicated region
        $region61: #{tpu_custom_call.1} parent=47 // pred_check
          %p346 = pneg %p125
        $region62: #{tpu_custom_call.1} parent=47 // pred_check_branch
          %348 = sbr.rel (%p346) target = $region64
        $region63: #{tpu_custom_call.1} parent=47 // pred_region
          %349 = dma.done [#allocation11], 32768
        $region64: #{tpu_custom_call.1} parent=47 // pred_fallthru
          _
        // Predicated region
        $region65: #{tpu_custom_call.1} parent=47 // pred_check
          %p350 = pneg %p146
        $region66: #{tpu_custom_call.1} parent=47 // pred_check_branch
          %352 = sbr.rel (%p350) target = $region68
        $region67: #{tpu_custom_call.1} parent=47 // pred_region
          %353 = dma.done [#allocation11], 256
        $region68: #{tpu_custom_call.1} parent=47 // pred_fallthru
          _
        // Predicated region
        $region69: #{tpu_custom_call.1} parent=47 // pred_check
          %p354 = pneg %p167
        $region70: #{tpu_custom_call.1} parent=47 // pred_check_branch
          %356 = sbr.rel (%p354) target = $region72
        $region71: #{tpu_custom_call.1} parent=47 // pred_region
          %357 = dma.done [#allocation14], 2048
        $region72: #{tpu_custom_call.1} parent=47 // pred_fallthru
          _
        %s358 = sand.u32 %s49, 1
        %s359 = scalar_lea.sflag [#allocation5], %s358
        %s360 = sand.u32 %s49, 1
        %s361 = smul.addr %s360, 8
        %s362 = scalar_lea.vmem [#allocation4], %s361
        %p363 = pneg %p62
        %p364 = pneg %p59
        %p365 = pneg %p83
        %p366 = pneg %p80
        %p367 = pneg %p104
        %p368 = pneg %p101
        %p369 = pneg %p125
        %p370 = pneg %p122
        %p371 = pneg %p146
        %p372 = pneg %p143
        %p373 = pneg %p167
        %p374 = pneg %p164
        %p375 = pneg %p188
        %p376 = pneg %p185
        %p377 = pneg %p216
        %p378 = pneg %p213
        %s379 = sand.u32 %s203, 1
        %s380 = scalar_lea.sflag [#allocation6], %s379
        %s381 = sand.u32 %s203, 1
        %s382 = smul.addr %s381, 8
        %s383 = scalar_lea.vmem [#allocation15], %s382
        %p384 = scmp.eq.s32.totalorder %s32, 0
        // Predicated region
        $region73: #{tpu_custom_call.1} parent=47 // pred_check
          %p385 = pneg %p384
        $region74: #{tpu_custom_call.1} parent=47 // pred_check_branch
          %387 = sbr.rel (%p385) target = $region76
        $region75: #{tpu_custom_call.1} parent=47 // pred_region
          %388 = vst [vmem:[#allocation2] sm:$0xff] 0.0
          %389 = vst [vmem:[#allocation2 + $0x8] sm:$0xff] 0.0
          %390 = vst [vmem:[#allocation2 + $0x10] sm:$0xff] 0.0
          %391 = vst [vmem:[#allocation2 + $0x18] sm:$0xff] 0.0
          %392 = vst [vmem:[#allocation3] sm:$0xff] 0.0
          %393 = vst [vmem:[#allocation3 + $0x8] sm:$0xff] 0.0
          %394 = vst [vmem:[#allocation3 + $0x10] sm:$0xff] 0.0
          %395 = vst [vmem:[#allocation3 + $0x18] sm:$0xff] 0.0
        $region76: #{tpu_custom_call.1} parent=47 // pred_fallthru
          _
        %v396 = vld [vmem:[%s333] sm:$0xff]
        %v397 = vld [vmem:[#allocation7] sm:$0xff]
        %v398 = vld [vmem:[#allocation7 + $0x8] sm:$0xff]
        %v399 = vld [vmem:[#allocation7 + $0x10] sm:$0xff]
        %v400 = vld [vmem:[#allocation7 + $0x18] sm:$0xff]
        %v401 = vld [vmem:[#allocation7 + $0x20] sm:$0xff]
        %v402 = vld [vmem:[#allocation7 + $0x28] sm:$0xff]
        %v403 = vld [vmem:[#allocation7 + $0x30] sm:$0xff]
        %v404 = vld [vmem:[#allocation7 + $0x38] sm:$0xff]
        %v405 = vld [vmem:[#allocation7 + $0x40] sm:$0xff]
        %v406 = vld [vmem:[#allocation7 + $0x48] sm:$0xff]
        %v407 = vld [vmem:[#allocation7 + $0x50] sm:$0xff]
        %v408 = vld [vmem:[#allocation7 + $0x58] sm:$0xff]
        %v409 = vld [vmem:[#allocation7 + $0x60] sm:$0xff]
        %v410 = vld [vmem:[#allocation7 + $0x68] sm:$0xff]
        %v411 = vld [vmem:[#allocation7 + $0x70] sm:$0xff]
        %v412 = vld [vmem:[#allocation7 + $0x78] sm:$0xff]
        %v413 = vld [vmem:[#allocation7 + $0x80] sm:$0xff]
        %v414 = vld [vmem:[#allocation7 + $0x88] sm:$0xff]
        %v415 = vld [vmem:[#allocation7 + $0x90] sm:$0xff]
        %v416 = vld [vmem:[#allocation7 + $0x98] sm:$0xff]
        %v417 = vld [vmem:[#allocation7 + $0xa0] sm:$0xff]
        %v418 = vld [vmem:[#allocation7 + $0xa8] sm:$0xff]
        %v419 = vld [vmem:[#allocation7 + $0xb0] sm:$0xff]
        %v420 = vld [vmem:[#allocation7 + $0xb8] sm:$0xff]
        %v421 = vld [vmem:[#allocation7 + $0xc0] sm:$0xff]
        %v422 = vld [vmem:[#allocation7 + $0xc8] sm:$0xff]
        %v423 = vld [vmem:[#allocation7 + $0xd0] sm:$0xff]
        %v424 = vld [vmem:[#allocation7 + $0xd8] sm:$0xff]
        %v425 = vld [vmem:[#allocation7 + $0xe0] sm:$0xff]
        %v426 = vld [vmem:[#allocation7 + $0xe8] sm:$0xff]
        %v427 = vld [vmem:[#allocation7 + $0xf0] sm:$0xff]
        %v428 = vld [vmem:[#allocation7 + $0xf8] sm:$0xff]
        %v429 = vld [vmem:[#allocation7 + $0x100] sm:$0xff]
        %v430 = vld [vmem:[#allocation7 + $0x108] sm:$0xff]
        %v431 = vld [vmem:[#allocation7 + $0x110] sm:$0xff]
        %v432 = vld [vmem:[#allocation7 + $0x118] sm:$0xff]
        %v433 = vld [vmem:[#allocation7 + $0x120] sm:$0xff]
        %v434 = vld [vmem:[#allocation7 + $0x128] sm:$0xff]
        %v435 = vld [vmem:[#allocation7 + $0x130] sm:$0xff]
        %v436 = vld [vmem:[#allocation7 + $0x138] sm:$0xff]
        %v437 = vld [vmem:[#allocation7 + $0x140] sm:$0xff]
        %v438 = vld [vmem:[#allocation7 + $0x148] sm:$0xff]
        %v439 = vld [vmem:[#allocation7 + $0x150] sm:$0xff]
        %v440 = vld [vmem:[#allocation7 + $0x158] sm:$0xff]
        %v441 = vld [vmem:[#allocation7 + $0x160] sm:$0xff]
        %v442 = vld [vmem:[#allocation7 + $0x168] sm:$0xff]
        %v443 = vld [vmem:[#allocation7 + $0x170] sm:$0xff]
        %v444 = vld [vmem:[#allocation7 + $0x178] sm:$0xff]
        %v445 = vld [vmem:[#allocation7 + $0x180] sm:$0xff]
        %v446 = vld [vmem:[#allocation7 + $0x188] sm:$0xff]
        %v447 = vld [vmem:[#allocation7 + $0x190] sm:$0xff]
        %v448 = vld [vmem:[#allocation7 + $0x198] sm:$0xff]
        %v449 = vld [vmem:[#allocation7 + $0x1a0] sm:$0xff]
        %v450 = vld [vmem:[#allocation7 + $0x1a8] sm:$0xff]
        %v451 = vld [vmem:[#allocation7 + $0x1b0] sm:$0xff]
        %v452 = vld [vmem:[#allocation7 + $0x1b8] sm:$0xff]
        %v453 = vld [vmem:[#allocation7 + $0x1c0] sm:$0xff]
        %v454 = vld [vmem:[#allocation7 + $0x1c8] sm:$0xff]
        %v455 = vld [vmem:[#allocation7 + $0x1d0] sm:$0xff]
        %v456 = vld [vmem:[#allocation7 + $0x1d8] sm:$0xff]
        %v457 = vld [vmem:[#allocation7 + $0x1e0] sm:$0xff]
        %v458 = vld [vmem:[#allocation7 + $0x1e8] sm:$0xff]
        %v459 = vld [vmem:[#allocation7 + $0x1f0] sm:$0xff]
        %v460 = vld [vmem:[#allocation7 + $0x1f8] sm:$0xff]
        %v461 = vld [vmem:[#allocation2] sm:$0xff]
        %v462 = vld [vmem:[#allocation10] sm:$0xff]
        %v463 = vld [vmem:[#allocation10 + $0x8] sm:$0xff]
        %v464 = vld [vmem:[#allocation10 + $0x10] sm:$0xff]
        %v465 = vld [vmem:[#allocation10 + $0x18] sm:$0xff]
        %v466 = vld [vmem:[#allocation10 + $0x20] sm:$0xff]
        %v467 = vld [vmem:[#allocation10 + $0x28] sm:$0xff]
        %v468 = vld [vmem:[#allocation10 + $0x30] sm:$0xff]
        %v469 = vld [vmem:[#allocation10 + $0x38] sm:$0xff]
        %v470 = vld [vmem:[#allocation10 + $0x40] sm:$0xff]
        %v471 = vld [vmem:[#allocation10 + $0x48] sm:$0xff]
        %v472 = vld [vmem:[#allocation10 + $0x50] sm:$0xff]
        %v473 = vld [vmem:[#allocation10 + $0x58] sm:$0xff]
        %v474 = vld [vmem:[#allocation10 + $0x60] sm:$0xff]
        %v475 = vld [vmem:[#allocation10 + $0x68] sm:$0xff]
        %v476 = vld [vmem:[#allocation10 + $0x70] sm:$0xff]
        %v477 = vld [vmem:[#allocation10 + $0x78] sm:$0xff]
        %v478 = vld [vmem:[#allocation10 + $0x80] sm:$0xff]
        %v479 = vld [vmem:[#allocation10 + $0x88] sm:$0xff]
        %v480 = vld [vmem:[#allocation10 + $0x90] sm:$0xff]
        %v481 = vld [vmem:[#allocation10 + $0x98] sm:$0xff]
        %v482 = vld [vmem:[#allocation10 + $0xa0] sm:$0xff]
        %v483 = vld [vmem:[#allocation10 + $0xa8] sm:$0xff]
        %v484 = vld [vmem:[#allocation10 + $0xb0] sm:$0xff]
        %v485 = vld [vmem:[#allocation10 + $0xb8] sm:$0xff]
        %v486 = vld [vmem:[#allocation10 + $0xc0] sm:$0xff]
        %v487 = vld [vmem:[#allocation10 + $0xc8] sm:$0xff]
        %v488 = vld [vmem:[#allocation10 + $0xd0] sm:$0xff]
        %v489 = vld [vmem:[#allocation10 + $0xd8] sm:$0xff]
        %v490 = vld [vmem:[#allocation10 + $0xe0] sm:$0xff]
        %v491 = vld [vmem:[#allocation10 + $0xe8] sm:$0xff]
        %v492 = vld [vmem:[#allocation10 + $0xf0] sm:$0xff]
        %v493 = vld [vmem:[#allocation10 + $0xf8] sm:$0xff]
        %v494 = vld [vmem:[#allocation10 + $0x100] sm:$0xff]
        %v495 = vld [vmem:[#allocation10 + $0x108] sm:$0xff]
        %v496 = vld [vmem:[#allocation10 + $0x110] sm:$0xff]
        %v497 = vld [vmem:[#allocation10 + $0x118] sm:$0xff]
        %v498 = vld [vmem:[#allocation10 + $0x120] sm:$0xff]
        %v499 = vld [vmem:[#allocation10 + $0x128] sm:$0xff]
        %v500 = vld [vmem:[#allocation10 + $0x130] sm:$0xff]
        %v501 = vld [vmem:[#allocation10 + $0x138] sm:$0xff]
        %v502 = vld [vmem:[#allocation10 + $0x140] sm:$0xff]
        %v503 = vld [vmem:[#allocation10 + $0x148] sm:$0xff]
        %v504 = vld [vmem:[#allocation10 + $0x150] sm:$0xff]
        %v505 = vld [vmem:[#allocation10 + $0x158] sm:$0xff]
        %v506 = vld [vmem:[#allocation10 + $0x160] sm:$0xff]
        %v507 = vld [vmem:[#allocation10 + $0x168] sm:$0xff]
        %v508 = vld [vmem:[#allocation10 + $0x170] sm:$0xff]
        %v509 = vld [vmem:[#allocation10 + $0x178] sm:$0xff]
        %v510 = vld [vmem:[#allocation10 + $0x180] sm:$0xff]
        %v511 = vld [vmem:[#allocation10 + $0x188] sm:$0xff]
        %v512 = vld [vmem:[#allocation10 + $0x190] sm:$0xff]
        %v513 = vld [vmem:[#allocation10 + $0x198] sm:$0xff]
        %v514 = vld [vmem:[#allocation10 + $0x1a0] sm:$0xff]
        %v515 = vld [vmem:[#allocation10 + $0x1a8] sm:$0xff]
        %v516 = vld [vmem:[#allocation10 + $0x1b0] sm:$0xff]
        %v517 = vld [vmem:[#allocation10 + $0x1b8] sm:$0xff]
        %v518 = vld [vmem:[#allocation10 + $0x1c0] sm:$0xff]
        %v519 = vld [vmem:[#allocation10 + $0x1c8] sm:$0xff]
        %v520 = vld [vmem:[#allocation10 + $0x1d0] sm:$0xff]
        %v521 = vld [vmem:[#allocation10 + $0x1d8] sm:$0xff]
        %v522 = vld [vmem:[#allocation10 + $0x1e0] sm:$0xff]
        %v523 = vld [vmem:[#allocation10 + $0x1e8] sm:$0xff]
        %v524 = vld [vmem:[#allocation10 + $0x1f0] sm:$0xff]
        %v525 = vld [vmem:[#allocation10 + $0x1f8] sm:$0xff]
        %526 = vmatprep.subr.mxu0 %v463
        %527 = vmatpush1.msra.mxu0 %v462
        %528 = vmatprep.subr.mxu0 %v467
        %529 = vmatpush1.msra.mxu0 %v466
        %530 = vmatprep.subr.mxu0 %v471
        %531 = vmatpush1.msra.mxu0 %v470
        %532 = vmatprep.subr.mxu0 %v475
        %533 = vmatpush1.msra.mxu0 %v474
        %534 = vmatprep.subr.mxu0 %v479
        %535 = vmatpush1.msra.mxu0 %v478
        %536 = vmatprep.subr.mxu0 %v483
        %537 = vmatpush1.msra.mxu0 %v482
        %538 = vmatprep.subr.mxu0 %v487
        %539 = vmatpush1.msra.mxu0 %v486
        %540 = vmatprep.subr.mxu0 %v491
        %541 = vmatpush1.msra.mxu0 %v490
        %542 = vmatprep.subr.mxu0 %v495
        %543 = vmatpush1.msra.mxu0 %v494
        %544 = vmatprep.subr.mxu0 %v499
        %545 = vmatpush1.msra.mxu0 %v498
        %546 = vmatprep.subr.mxu0 %v503
        %547 = vmatpush1.msra.mxu0 %v502
        %548 = vmatprep.subr.mxu0 %v507
        %549 = vmatpush1.msra.mxu0 %v506
        %550 = vmatprep.subr.mxu0 %v511
        %551 = vmatpush1.msra.mxu0 %v510
        %552 = vmatprep.subr.mxu0 %v515
        %553 = vmatpush1.msra.mxu0 %v514
        %554 = vmatprep.subr.mxu0 %v519
        %555 = vmatpush1.msra.mxu0 %v518
        %556 = vmatprep.subr.mxu0 %v523
        %557 = vmatpush1.msra.mxu0 %v522
        %558 = vmatprep.subr.mxu0 0.0
        %559 = vmatpush1.msra.mxu0 0.0
        %560 = vmatprep.subr.mxu0 0.0
        %561 = vmatpush1.msra.mxu0 0.0
        %562 = vmatprep.subr.mxu0 0.0
        %563 = vmatpush1.msra.mxu0 0.0
        %564 = vmatprep.subr.mxu0 0.0
        %565 = vmatpush1.msra.mxu0 0.0
        %566 = vmatprep.subr.mxu0 0.0
        %567 = vmatpush1.msra.mxu0 0.0
        %568 = vmatprep.subr.mxu0 0.0
        %569 = vmatpush1.msra.mxu0 0.0
        %570 = vmatprep.subr.mxu0 0.0
        %571 = vmatpush1.msra.mxu0 0.0
        %572 = vmatprep.subr.mxu0 0.0
        %573 = vmatpush1.msra.mxu0 0.0
        %574 = vmatprep.subr.mxu0 0.0
        %575 = vmatpush1.msra.mxu0 0.0
        %576 = vmatprep.subr.mxu0 0.0
        %577 = vmatpush1.msra.mxu0 0.0
        %578 = vmatprep.subr.mxu0 0.0
        %579 = vmatpush1.msra.mxu0 0.0
        %580 = vmatprep.subr.mxu0 0.0
        %581 = vmatpush1.msra.mxu0 0.0
        %582 = vmatprep.subr.mxu0 0.0
        %583 = vmatpush1.msra.mxu0 0.0
        %584 = vmatprep.subr.mxu0 0.0
        %585 = vmatpush1.msra.mxu0 0.0
        %586 = vmatprep.subr.mxu0 0.0
        %587 = vmatpush1.msra.mxu0 0.0
        %588 = vmatprep.subr.mxu0 0.0
        %589 = vmatpush1.msra.mxu0 0.0
        %590 = vmatprep.mubr.f32.mxu0 0.0
        %591 = vmatmul.mubr.f32.gmra.mrb[0].mxu0 %v461
        %v592 = vpop.f32.mrb[0].mxu0
        %v593 = vadd.f32 0.0, %v592
        %v594 = vpop.f32.mrb[0].mxu0
        %v595 = vadd.f32 0.0, %v594
        %596 = vdwg.mxu0
        %597 = vmatprep.subr.mxu0 %v465
        %598 = vmatpush1.msra.mxu0 %v464
        %599 = vmatprep.subr.mxu0 %v469
        %600 = vmatpush1.msra.mxu0 %v468
        %601 = vmatprep.subr.mxu0 %v473
        %602 = vmatpush1.msra.mxu0 %v472
        %603 = vmatprep.subr.mxu0 %v477
        %604 = vmatpush1.msra.mxu0 %v476
        %605 = vmatprep.subr.mxu0 %v481
        %606 = vmatpush1.msra.mxu0 %v480
        %607 = vmatprep.subr.mxu0 %v485
        %608 = vmatpush1.msra.mxu0 %v484
        %609 = vmatprep.subr.mxu0 %v489
        %610 = vmatpush1.msra.mxu0 %v488
        %611 = vmatprep.subr.mxu0 %v493
        %612 = vmatpush1.msra.mxu0 %v492
        %613 = vmatprep.subr.mxu0 %v497
        %614 = vmatpush1.msra.mxu0 %v496
        %615 = vmatprep.subr.mxu0 %v501
        %616 = vmatpush1.msra.mxu0 %v500
        %617 = vmatprep.subr.mxu0 %v505
        %618 = vmatpush1.msra.mxu0 %v504
        %619 = vmatprep.subr.mxu0 %v509
        %620 = vmatpush1.msra.mxu0 %v508
        %621 = vmatprep.subr.mxu0 %v513
        %622 = vmatpush1.msra.mxu0 %v512
        %623 = vmatprep.subr.mxu0 %v517
        %624 = vmatpush1.msra.mxu0 %v516
        %625 = vmatprep.subr.mxu0 %v521
        %626 = vmatpush1.msra.mxu0 %v520
        %627 = vmatprep.subr.mxu0 %v525
        %628 = vmatpush1.msra.mxu0 %v524
        %629 = vmatprep.subr.mxu0 0.0
        %630 = vmatpush1.msra.mxu0 0.0
        %631 = vmatprep.subr.mxu0 0.0
        %632 = vmatpush1.msra.mxu0 0.0
        %633 = vmatprep.subr.mxu0 0.0
        %634 = vmatpush1.msra.mxu0 0.0
        %635 = vmatprep.subr.mxu0 0.0
        %636 = vmatpush1.msra.mxu0 0.0
        %637 = vmatprep.subr.mxu0 0.0
        %638 = vmatpush1.msra.mxu0 0.0
        %639 = vmatprep.subr.mxu0 0.0
        %640 = vmatpush1.msra.mxu0 0.0
        %641 = vmatprep.subr.mxu0 0.0
        %642 = vmatpush1.msra.mxu0 0.0
        %643 = vmatprep.subr.mxu0 0.0
        %644 = vmatpush1.msra.mxu0 0.0
        %645 = vmatprep.subr.mxu0 0.0
        %646 = vmatpush1.msra.mxu0 0.0
        %647 = vmatprep.subr.mxu0 0.0
        %648 = vmatpush1.msra.mxu0 0.0
        %649 = vmatprep.subr.mxu0 0.0
        %650 = vmatpush1.msra.mxu0 0.0
        %651 = vmatprep.subr.mxu0 0.0
        %652 = vmatpush1.msra.mxu0 0.0
        %653 = vmatprep.subr.mxu0 0.0
        %654 = vmatpush1.msra.mxu0 0.0
        %655 = vmatprep.subr.mxu0 0.0
        %656 = vmatpush1.msra.mxu0 0.0
        %657 = vmatprep.subr.mxu0 0.0
        %658 = vmatpush1.msra.mxu0 0.0
        %659 = vmatprep.subr.mxu0 0.0
        %660 = vmatpush1.msra.mxu0 0.0
        %661 = vmatprep.mubr.f32.mxu0 0.0
        %662 = vmatmul.mubr.f32.gmra.mrb[0].mxu0 %v461
        %v663 = vpop.f32.mrb[0].mxu0
        %v664 = vadd.f32 0.0, %v663
        %v665 = vpop.f32.mrb[0].mxu0
        %v666 = vadd.f32 0.0, %v665
        %667 = vdwg.mxu0
        %668 = vmatprep.subr.mxu0 %v398
        %669 = vmatpush1.msra.mxu0 %v397
        %670 = vmatprep.subr.mxu0 %v402
        %671 = vmatpush1.msra.mxu0 %v401
        %672 = vmatprep.subr.mxu0 %v406
        %673 = vmatpush1.msra.mxu0 %v405
        %674 = vmatprep.subr.mxu0 %v410
        %675 = vmatpush1.msra.mxu0 %v409
        %676 = vmatprep.subr.mxu0 %v414
        %677 = vmatpush1.msra.mxu0 %v413
        %678 = vmatprep.subr.mxu0 %v418
        %679 = vmatpush1.msra.mxu0 %v417
        %680 = vmatprep.subr.mxu0 %v422
        %681 = vmatpush1.msra.mxu0 %v421
        %682 = vmatprep.subr.mxu0 %v426
        %683 = vmatpush1.msra.mxu0 %v425
        %684 = vmatprep.subr.mxu0 %v430
        %685 = vmatpush1.msra.mxu0 %v429
        %686 = vmatprep.subr.mxu0 %v434
        %687 = vmatpush1.msra.mxu0 %v433
        %688 = vmatprep.subr.mxu0 %v438
        %689 = vmatpush1.msra.mxu0 %v437
        %690 = vmatprep.subr.mxu0 %v442
        %691 = vmatpush1.msra.mxu0 %v441
        %692 = vmatprep.subr.mxu0 %v446
        %693 = vmatpush1.msra.mxu0 %v445
        %694 = vmatprep.subr.mxu0 %v450
        %695 = vmatpush1.msra.mxu0 %v449
        %696 = vmatprep.subr.mxu0 %v454
        %697 = vmatpush1.msra.mxu0 %v453
        %698 = vmatprep.subr.mxu0 %v458
        %699 = vmatpush1.msra.mxu0 %v457
        %700 = vmatprep.subr.mxu0 0.0
        %701 = vmatpush1.msra.mxu0 0.0
        %702 = vmatprep.subr.mxu0 0.0
        %703 = vmatpush1.msra.mxu0 0.0
        %704 = vmatprep.subr.mxu0 0.0
        %705 = vmatpush1.msra.mxu0 0.0
        %706 = vmatprep.subr.mxu0 0.0
        %707 = vmatpush1.msra.mxu0 0.0
        %708 = vmatprep.subr.mxu0 0.0
        %709 = vmatpush1.msra.mxu0 0.0
        %710 = vmatprep.subr.mxu0 0.0
        %711 = vmatpush1.msra.mxu0 0.0
        %712 = vmatprep.subr.mxu0 0.0
        %713 = vmatpush1.msra.mxu0 0.0
        %714 = vmatprep.subr.mxu0 0.0
        %715 = vmatpush1.msra.mxu0 0.0
        %716 = vmatprep.subr.mxu0 0.0
        %717 = vmatpush1.msra.mxu0 0.0
        %718 = vmatprep.subr.mxu0 0.0
        %719 = vmatpush1.msra.mxu0 0.0
        %720 = vmatprep.subr.mxu0 0.0
        %721 = vmatpush1.msra.mxu0 0.0
        %722 = vmatprep.subr.mxu0 0.0
        %723 = vmatpush1.msra.mxu0 0.0
        %724 = vmatprep.subr.mxu0 0.0
        %725 = vmatpush1.msra.mxu0 0.0
        %726 = vmatprep.subr.mxu0 0.0
        %727 = vmatpush1.msra.mxu0 0.0
        %728 = vmatprep.subr.mxu0 0.0
        %729 = vmatpush1.msra.mxu0 0.0
        %730 = vmatprep.subr.mxu0 0.0
        %731 = vmatpush1.msra.mxu0 0.0
        %732 = vmatprep.mubr.f32.mxu0 0.0
        %733 = vmatmul.mubr.f32.gmra.mrb[0].mxu0 %v396
        %v734 = vpop.f32.mrb[0].mxu0
        %v735 = vadd.f32 %v593, %v734
        %v736 = vpop.f32.mrb[0].mxu0
        %v737 = vadd.f32 %v595, %v736
        %738 = vdwg.mxu0
        %739 = vmatprep.subr.mxu0 %v400
        %740 = vmatpush1.msra.mxu0 %v399
        %741 = vmatprep.subr.mxu0 %v404
        %742 = vmatpush1.msra.mxu0 %v403
        %743 = vmatprep.subr.mxu0 %v408
        %744 = vmatpush1.msra.mxu0 %v407
        %745 = vmatprep.subr.mxu0 %v412
        %746 = vmatpush1.msra.mxu0 %v411
        %747 = vmatprep.subr.mxu0 %v416
        %748 = vmatpush1.msra.mxu0 %v415
        %749 = vmatprep.subr.mxu0 %v420
        %750 = vmatpush1.msra.mxu0 %v419
        %751 = vmatprep.subr.mxu0 %v424
        %752 = vmatpush1.msra.mxu0 %v423
        %753 = vmatprep.subr.mxu0 %v428
        %754 = vmatpush1.msra.mxu0 %v427
        %755 = vmatprep.subr.mxu0 %v432
        %756 = vmatpush1.msra.mxu0 %v431
        %757 = vmatprep.subr.mxu0 %v436
        %758 = vmatpush1.msra.mxu0 %v435
        %759 = vmatprep.subr.mxu0 %v440
        %760 = vmatpush1.msra.mxu0 %v439
        %761 = vmatprep.subr.mxu0 %v444
        %762 = vmatpush1.msra.mxu0 %v443
        %763 = vmatprep.subr.mxu0 %v448
        %764 = vmatpush1.msra.mxu0 %v447
        %765 = vmatprep.subr.mxu0 %v452
        %766 = vmatpush1.msra.mxu0 %v451
        %767 = vmatprep.subr.mxu0 %v456
        %768 = vmatpush1.msra.mxu0 %v455
        %769 = vmatprep.subr.mxu0 %v460
        %770 = vmatpush1.msra.mxu0 %v459
        %771 = vmatprep.subr.mxu0 0.0
        %772 = vmatpush1.msra.mxu0 0.0
        %773 = vmatprep.subr.mxu0 0.0
        %774 = vmatpush1.msra.mxu0 0.0
        %775 = vmatprep.subr.mxu0 0.0
        %776 = vmatpush1.msra.mxu0 0.0
        %777 = vmatprep.subr.mxu0 0.0
        %778 = vmatpush1.msra.mxu0 0.0
        %779 = vmatprep.subr.mxu0 0.0
        %780 = vmatpush1.msra.mxu0 0.0
        %781 = vmatprep.subr.mxu0 0.0
        %782 = vmatpush1.msra.mxu0 0.0
        %783 = vmatprep.subr.mxu0 0.0
        %784 = vmatpush1.msra.mxu0 0.0
        %785 = vmatprep.subr.mxu0 0.0
        %786 = vmatpush1.msra.mxu0 0.0
        %787 = vmatprep.subr.mxu0 0.0
        %788 = vmatpush1.msra.mxu0 0.0
        %789 = vmatprep.subr.mxu0 0.0
        %790 = vmatpush1.msra.mxu0 0.0
        %791 = vmatprep.subr.mxu0 0.0
        %792 = vmatpush1.msra.mxu0 0.0
        %793 = vmatprep.subr.mxu0 0.0
        %794 = vmatpush1.msra.mxu0 0.0
        %795 = vmatprep.subr.mxu0 0.0
        %796 = vmatpush1.msra.mxu0 0.0
        %797 = vmatprep.subr.mxu0 0.0
        %798 = vmatpush1.msra.mxu0 0.0
        %799 = vmatprep.subr.mxu0 0.0
        %800 = vmatpush1.msra.mxu0 0.0
        %801 = vmatprep.subr.mxu0 0.0
        %802 = vmatpush1.msra.mxu0 0.0
        %803 = vmatprep.mubr.f32.mxu0 0.0
        %804 = vmatmul.mubr.f32.gmra.mrb[0].mxu0 %v396
        %v805 = vpop.f32.mrb[0].mxu0
        %v806 = vadd.f32 %v664, %v805
        %v807 = vpop.f32.mrb[0].mxu0
        %v808 = vadd.f32 %v666, %v807
        %809 = vdwg.mxu0
        %v810 = vld [vmem:[#allocation12] sm:$0xf]
        %v812 = vlaneseq
        %v813 = vshrl.u32 %v812, 7
        %v814 = vsub.s32 0, %v813
        %v815 = vrot.slane %v810, %v814
        %v816 = vlaneseq
        %v817 = vshrl.u32 %v816, 7
        %v818 = vsub.s32 1, %v817
        %v819 = vrot.slane %v810, %v818
        %v820 = vlaneseq
        %v821 = vshrl.u32 %v820, 7
        %v822 = vsub.s32 2, %v821
        %v823 = vrot.slane %v810, %v822
        %v824 = vlaneseq
        %v825 = vshrl.u32 %v824, 7
        %v826 = vsub.s32 3, %v825
        %v827 = vrot.slane %v810, %v826
        %v832 = vadd.f32 %v735, %v815
        %v833 = vadd.f32 %v737, %v819
        %v834 = vadd.f32 %v806, %v823
        %v835 = vadd.f32 %v808, %v827
        %v836 = vxor.u32 %v832, 2147483648
        %v837 = vmul.f32 %v836, 1.442695
        %v838 = vpow.pop %v837
        %v839 = vadd.f32 %v838, 1.0
        %v840 = vrcp.pop %v839
        %v841 = vmul.f32 1.0, %v840
        %v842 = vxor.u32 %v833, 2147483648
        %v843 = vmul.f32 %v842, 1.442695
        %v844 = vpow.pop %v843
        %v845 = vadd.f32 %v844, 1.0
        %v846 = vrcp.pop %v845
        %v847 = vmul.f32 1.0, %v846
        %v848 = vtanh.pop %v834
        %v849 = vxor.u32 %v835, 2147483648
        %v850 = vmul.f32 %v849, 1.442695
        %v851 = vpow.pop %v850
        %v852 = vadd.f32 %v851, 1.0
        %v853 = vrcp.pop %v852
        %v854 = vmul.f32 1.0, %v853
        %v855 = vld [vmem:[#allocation3] sm:$0xff]
        %v856 = vmul.f32 %v847, %v855
        %v857 = vmul.f32 %v841, %v848
        %v858 = vadd.f32 %v856, %v857
        %v859 = vtanh.pop %v858
        %v860 = vmul.f32 %v854, %v859
        %861 = vst [vmem:[#allocation3] sm:$0xff] %v858
        %862 = vst [vmem:[#allocation2] sm:$0xff] %v860
        %v863 = vld [vmem:[#allocation9] sm:$0xff]
        %v864 = vld [vmem:[#allocation9 + $0x8] sm:$0xff]
        %v865 = vld [vmem:[#allocation9 + $0x10] sm:$0xff]
        %v866 = vld [vmem:[#allocation9 + $0x18] sm:$0xff]
        %v867 = vld [vmem:[#allocation9 + $0x20] sm:$0xff]
        %v868 = vld [vmem:[#allocation9 + $0x28] sm:$0xff]
        %v869 = vld [vmem:[#allocation9 + $0x30] sm:$0xff]
        %v870 = vld [vmem:[#allocation9 + $0x38] sm:$0xff]
        %v871 = vld [vmem:[#allocation9 + $0x40] sm:$0xff]
        %v872 = vld [vmem:[#allocation9 + $0x48] sm:$0xff]
        %v873 = vld [vmem:[#allocation9 + $0x50] sm:$0xff]
        %v874 = vld [vmem:[#allocation9 + $0x58] sm:$0xff]
        %v875 = vld [vmem:[#allocation9 + $0x60] sm:$0xff]
        %v876 = vld [vmem:[#allocation9 + $0x68] sm:$0xff]
        %v877 = vld [vmem:[#allocation9 + $0x70] sm:$0xff]
        %v878 = vld [vmem:[#allocation9 + $0x78] sm:$0xff]
        %v879 = vld [vmem:[#allocation9 + $0x80] sm:$0xff]
        %v880 = vld [vmem:[#allocation9 + $0x88] sm:$0xff]
        %v881 = vld [vmem:[#allocation9 + $0x90] sm:$0xff]
        %v882 = vld [vmem:[#allocation9 + $0x98] sm:$0xff]
        %v883 = vld [vmem:[#allocation9 + $0xa0] sm:$0xff]
        %v884 = vld [vmem:[#allocation9 + $0xa8] sm:$0xff]
        %v885 = vld [vmem:[#allocation9 + $0xb0] sm:$0xff]
        %v886 = vld [vmem:[#allocation9 + $0xb8] sm:$0xff]
        %v887 = vld [vmem:[#allocation9 + $0xc0] sm:$0xff]
        %v888 = vld [vmem:[#allocation9 + $0xc8] sm:$0xff]
        %v889 = vld [vmem:[#allocation9 + $0xd0] sm:$0xff]
        %v890 = vld [vmem:[#allocation9 + $0xd8] sm:$0xff]
        %v891 = vld [vmem:[#allocation9 + $0xe0] sm:$0xff]
        %v892 = vld [vmem:[#allocation9 + $0xe8] sm:$0xff]
        %v893 = vld [vmem:[#allocation9 + $0xf0] sm:$0xff]
        %v894 = vld [vmem:[#allocation9 + $0xf8] sm:$0xff]
        %v895 = vld [vmem:[#allocation9 + $0x100] sm:$0xff]
        %v896 = vld [vmem:[#allocation9 + $0x108] sm:$0xff]
        %v897 = vld [vmem:[#allocation9 + $0x110] sm:$0xff]
        %v898 = vld [vmem:[#allocation9 + $0x118] sm:$0xff]
        %v899 = vld [vmem:[#allocation9 + $0x120] sm:$0xff]
        %v900 = vld [vmem:[#allocation9 + $0x128] sm:$0xff]
        %v901 = vld [vmem:[#allocation9 + $0x130] sm:$0xff]
        %v902 = vld [vmem:[#allocation9 + $0x138] sm:$0xff]
        %v903 = vld [vmem:[#allocation9 + $0x140] sm:$0xff]
        %v904 = vld [vmem:[#allocation9 + $0x148] sm:$0xff]
        %v905 = vld [vmem:[#allocation9 + $0x150] sm:$0xff]
        %v906 = vld [vmem:[#allocation9 + $0x158] sm:$0xff]
        %v907 = vld [vmem:[#allocation9 + $0x160] sm:$0xff]
        %v908 = vld [vmem:[#allocation9 + $0x168] sm:$0xff]
        %v909 = vld [vmem:[#allocation9 + $0x170] sm:$0xff]
        %v910 = vld [vmem:[#allocation9 + $0x178] sm:$0xff]
        %v911 = vld [vmem:[#allocation9 + $0x180] sm:$0xff]
        %v912 = vld [vmem:[#allocation9 + $0x188] sm:$0xff]
        %v913 = vld [vmem:[#allocation9 + $0x190] sm:$0xff]
        %v914 = vld [vmem:[#allocation9 + $0x198] sm:$0xff]
        %v915 = vld [vmem:[#allocation9 + $0x1a0] sm:$0xff]
        %v916 = vld [vmem:[#allocation9 + $0x1a8] sm:$0xff]
        %v917 = vld [vmem:[#allocation9 + $0x1b0] sm:$0xff]
        %v918 = vld [vmem:[#allocation9 + $0x1b8] sm:$0xff]
        %v919 = vld [vmem:[#allocation9 + $0x1c0] sm:$0xff]
        %v920 = vld [vmem:[#allocation9 + $0x1c8] sm:$0xff]
        %v921 = vld [vmem:[#allocation9 + $0x1d0] sm:$0xff]
        %v922 = vld [vmem:[#allocation9 + $0x1d8] sm:$0xff]
        %v923 = vld [vmem:[#allocation9 + $0x1e0] sm:$0xff]
        %v924 = vld [vmem:[#allocation9 + $0x1e8] sm:$0xff]
        %v925 = vld [vmem:[#allocation9 + $0x1f0] sm:$0xff]
        %v926 = vld [vmem:[#allocation9 + $0x1f8] sm:$0xff]
        %s927 = scalar_lea.vmem [#allocation2], 8
        %v928 = vld [vmem:[%s927] sm:$0xff]
        %s929 = scalar_lea.vmem [#allocation10], 512
        %v930 = vld [vmem:[%s929] sm:$0xff]
        %v931 = vld [vmem:[%s929 + $0x8] sm:$0xff]
        %v932 = vld [vmem:[%s929 + $0x10] sm:$0xff]
        %v933 = vld [vmem:[%s929 + $0x18] sm:$0xff]
        %v934 = vld [vmem:[%s929 + $0x20] sm:$0xff]
        %v935 = vld [vmem:[%s929 + $0x28] sm:$0xff]
        %v936 = vld [vmem:[%s929 + $0x30] sm:$0xff]
        %v937 = vld [vmem:[%s929 + $0x38] sm:$0xff]
        %v938 = vld [vmem:[%s929 + $0x40] sm:$0xff]
        %v939 = vld [vmem:[%s929 + $0x48] sm:$0xff]
        %v940 = vld [vmem:[%s929 + $0x50] sm:$0xff]
        %v941 = vld [vmem:[%s929 + $0x58] sm:$0xff]
        %v942 = vld [vmem:[%s929 + $0x60] sm:$0xff]
        %v943 = vld [vmem:[%s929 + $0x68] sm:$0xff]
        %v944 = vld [vmem:[%s929 + $0x70] sm:$0xff]
        %v945 = vld [vmem:[%s929 + $0x78] sm:$0xff]
        %v946 = vld [vmem:[%s929 + $0x80] sm:$0xff]
        %v947 = vld [vmem:[%s929 + $0x88] sm:$0xff]
        %v948 = vld [vmem:[%s929 + $0x90] sm:$0xff]
        %v949 = vld [vmem:[%s929 + $0x98] sm:$0xff]
        %v950 = vld [vmem:[%s929 + $0xa0] sm:$0xff]
        %v951 = vld [vmem:[%s929 + $0xa8] sm:$0xff]
        %v952 = vld [vmem:[%s929 + $0xb0] sm:$0xff]
        %v953 = vld [vmem:[%s929 + $0xb8] sm:$0xff]
        %v954 = vld [vmem:[%s929 + $0xc0] sm:$0xff]
        %v955 = vld [vmem:[%s929 + $0xc8] sm:$0xff]
        %v956 = vld [vmem:[%s929 + $0xd0] sm:$0xff]
        %v957 = vld [vmem:[%s929 + $0xd8] sm:$0xff]
        %v958 = vld [vmem:[%s929 + $0xe0] sm:$0xff]
        %v959 = vld [vmem:[%s929 + $0xe8] sm:$0xff]
        %v960 = vld [vmem:[%s929 + $0xf0] sm:$0xff]
        %v961 = vld [vmem:[%s929 + $0xf8] sm:$0xff]
        %v962 = vld [vmem:[%s929 + $0x100] sm:$0xff]
        %v963 = vld [vmem:[%s929 + $0x108] sm:$0xff]
        %v964 = vld [vmem:[%s929 + $0x110] sm:$0xff]
        %v965 = vld [vmem:[%s929 + $0x118] sm:$0xff]
        %v966 = vld [vmem:[%s929 + $0x120] sm:$0xff]
        %v967 = vld [vmem:[%s929 + $0x128] sm:$0xff]
        %v968 = vld [vmem:[%s929 + $0x130] sm:$0xff]
        %v969 = vld [vmem:[%s929 + $0x138] sm:$0xff]
        %v970 = vld [vmem:[%s929 + $0x140] sm:$0xff]
        %v971 = vld [vmem:[%s929 + $0x148] sm:$0xff]
        %v972 = vld [vmem:[%s929 + $0x150] sm:$0xff]
        %v973 = vld [vmem:[%s929 + $0x158] sm:$0xff]
        %v974 = vld [vmem:[%s929 + $0x160] sm:$0xff]
        %v975 = vld [vmem:[%s929 + $0x168] sm:$0xff]
        %v976 = vld [vmem:[%s929 + $0x170] sm:$0xff]
        %v977 = vld [vmem:[%s929 + $0x178] sm:$0xff]
        %v978 = vld [vmem:[%s929 + $0x180] sm:$0xff]
        %v979 = vld [vmem:[%s929 + $0x188] sm:$0xff]
        %v980 = vld [vmem:[%s929 + $0x190] sm:$0xff]
        %v981 = vld [vmem:[%s929 + $0x198] sm:$0xff]
        %v982 = vld [vmem:[%s929 + $0x1a0] sm:$0xff]
        %v983 = vld [vmem:[%s929 + $0x1a8] sm:$0xff]
        %v984 = vld [vmem:[%s929 + $0x1b0] sm:$0xff]
        %v985 = vld [vmem:[%s929 + $0x1b8] sm:$0xff]
        %v986 = vld [vmem:[%s929 + $0x1c0] sm:$0xff]
        %v987 = vld [vmem:[%s929 + $0x1c8] sm:$0xff]
        %v988 = vld [vmem:[%s929 + $0x1d0] sm:$0xff]
        %v989 = vld [vmem:[%s929 + $0x1d8] sm:$0xff]
        %v990 = vld [vmem:[%s929 + $0x1e0] sm:$0xff]
        %v991 = vld [vmem:[%s929 + $0x1e8] sm:$0xff]
        %v992 = vld [vmem:[%s929 + $0x1f0] sm:$0xff]
        %v993 = vld [vmem:[%s929 + $0x1f8] sm:$0xff]
        %994 = vmatprep.subr.mxu0 %v931
        %995 = vmatpush1.msra.mxu0 %v930
        %996 = vmatprep.subr.mxu0 %v935
        %997 = vmatpush1.msra.mxu0 %v934
        %998 = vmatprep.subr.mxu0 %v939
        %999 = vmatpush1.msra.mxu0 %v938
        %1000 = vmatprep.subr.mxu0 %v943
        %1001 = vmatpush1.msra.mxu0 %v942
        %1002 = vmatprep.subr.mxu0 %v947
        %1003 = vmatpush1.msra.mxu0 %v946
        %1004 = vmatprep.subr.mxu0 %v951
        %1005 = vmatpush1.msra.mxu0 %v950
        %1006 = vmatprep.subr.mxu0 %v955
        %1007 = vmatpush1.msra.mxu0 %v954
        %1008 = vmatprep.subr.mxu0 %v959
        %1009 = vmatpush1.msra.mxu0 %v958
        %1010 = vmatprep.subr.mxu0 %v963
        %1011 = vmatpush1.msra.mxu0 %v962
        %1012 = vmatprep.subr.mxu0 %v967
        %1013 = vmatpush1.msra.mxu0 %v966
        %1014 = vmatprep.subr.mxu0 %v971
        %1015 = vmatpush1.msra.mxu0 %v970
        %1016 = vmatprep.subr.mxu0 %v975
        %1017 = vmatpush1.msra.mxu0 %v974
        %1018 = vmatprep.subr.mxu0 %v979
        %1019 = vmatpush1.msra.mxu0 %v978
        %1020 = vmatprep.subr.mxu0 %v983
        %1021 = vmatpush1.msra.mxu0 %v982
        %1022 = vmatprep.subr.mxu0 %v987
        %1023 = vmatpush1.msra.mxu0 %v986
        %1024 = vmatprep.subr.mxu0 %v991
        %1025 = vmatpush1.msra.mxu0 %v990
        %1026 = vmatprep.subr.mxu0 0.0
        %1027 = vmatpush1.msra.mxu0 0.0
        %1028 = vmatprep.subr.mxu0 0.0
        %1029 = vmatpush1.msra.mxu0 0.0
        %1030 = vmatprep.subr.mxu0 0.0
        %1031 = vmatpush1.msra.mxu0 0.0
        %1032 = vmatprep.subr.mxu0 0.0
        %1033 = vmatpush1.msra.mxu0 0.0
        %1034 = vmatprep.subr.mxu0 0.0
        %1035 = vmatpush1.msra.mxu0 0.0
        %1036 = vmatprep.subr.mxu0 0.0
        %1037 = vmatpush1.msra.mxu0 0.0
        %1038 = vmatprep.subr.mxu0 0.0
        %1039 = vmatpush1.msra.mxu0 0.0
        %1040 = vmatprep.subr.mxu0 0.0
        %1041 = vmatpush1.msra.mxu0 0.0
        %1042 = vmatprep.subr.mxu0 0.0
        %1043 = vmatpush1.msra.mxu0 0.0
        %1044 = vmatprep.subr.mxu0 0.0
        %1045 = vmatpush1.msra.mxu0 0.0
        %1046 = vmatprep.subr.mxu0 0.0
        %1047 = vmatpush1.msra.mxu0 0.0
        %1048 = vmatprep.subr.mxu0 0.0
        %1049 = vmatpush1.msra.mxu0 0.0
        %1050 = vmatprep.subr.mxu0 0.0
        %1051 = vmatpush1.msra.mxu0 0.0
        %1052 = vmatprep.subr.mxu0 0.0
        %1053 = vmatpush1.msra.mxu0 0.0
        %1054 = vmatprep.subr.mxu0 0.0
        %1055 = vmatpush1.msra.mxu0 0.0
        %1056 = vmatprep.subr.mxu0 0.0
        %1057 = vmatpush1.msra.mxu0 0.0
        %1058 = vmatprep.mubr.f32.mxu0 0.0
        %1059 = vmatmul.mubr.f32.gmra.mrb[0].mxu0 %v928
        %v1060 = vpop.f32.mrb[0].mxu0
        %v1061 = vadd.f32 0.0, %v1060
        %v1062 = vpop.f32.mrb[0].mxu0
        %v1063 = vadd.f32 0.0, %v1062
        %1064 = vdwg.mxu0
        %1065 = vmatprep.subr.mxu0 %v933
        %1066 = vmatpush1.msra.mxu0 %v932
        %1067 = vmatprep.subr.mxu0 %v937
        %1068 = vmatpush1.msra.mxu0 %v936
        %1069 = vmatprep.subr.mxu0 %v941
        %1070 = vmatpush1.msra.mxu0 %v940
        %1071 = vmatprep.subr.mxu0 %v945
        %1072 = vmatpush1.msra.mxu0 %v944
        %1073 = vmatprep.subr.mxu0 %v949
        %1074 = vmatpush1.msra.mxu0 %v948
        %1075 = vmatprep.subr.mxu0 %v953
        %1076 = vmatpush1.msra.mxu0 %v952
        %1077 = vmatprep.subr.mxu0 %v957
        %1078 = vmatpush1.msra.mxu0 %v956
        %1079 = vmatprep.subr.mxu0 %v961
        %1080 = vmatpush1.msra.mxu0 %v960
        %1081 = vmatprep.subr.mxu0 %v965
        %1082 = vmatpush1.msra.mxu0 %v964
        %1083 = vmatprep.subr.mxu0 %v969
        %1084 = vmatpush1.msra.mxu0 %v968
        %1085 = vmatprep.subr.mxu0 %v973
        %1086 = vmatpush1.msra.mxu0 %v972
        %1087 = vmatprep.subr.mxu0 %v977
        %1088 = vmatpush1.msra.mxu0 %v976
        %1089 = vmatprep.subr.mxu0 %v981
        %1090 = vmatpush1.msra.mxu0 %v980
        %1091 = vmatprep.subr.mxu0 %v985
        %1092 = vmatpush1.msra.mxu0 %v984
        %1093 = vmatprep.subr.mxu0 %v989
        %1094 = vmatpush1.msra.mxu0 %v988
        %1095 = vmatprep.subr.mxu0 %v993
        %1096 = vmatpush1.msra.mxu0 %v992
        %1097 = vmatprep.subr.mxu0 0.0
        %1098 = vmatpush1.msra.mxu0 0.0
        %1099 = vmatprep.subr.mxu0 0.0
        %1100 = vmatpush1.msra.mxu0 0.0
        %1101 = vmatprep.subr.mxu0 0.0
        %1102 = vmatpush1.msra.mxu0 0.0
        %1103 = vmatprep.subr.mxu0 0.0
        %1104 = vmatpush1.msra.mxu0 0.0
        %1105 = vmatprep.subr.mxu0 0.0
        %1106 = vmatpush1.msra.mxu0 0.0
        %1107 = vmatprep.subr.mxu0 0.0
        %1108 = vmatpush1.msra.mxu0 0.0
        %1109 = vmatprep.subr.mxu0 0.0
        %1110 = vmatpush1.msra.mxu0 0.0
        %1111 = vmatprep.subr.mxu0 0.0
        %1112 = vmatpush1.msra.mxu0 0.0
        %1113 = vmatprep.subr.mxu0 0.0
        %1114 = vmatpush1.msra.mxu0 0.0
        %1115 = vmatprep.subr.mxu0 0.0
        %1116 = vmatpush1.msra.mxu0 0.0
        %1117 = vmatprep.subr.mxu0 0.0
        %1118 = vmatpush1.msra.mxu0 0.0
        %1119 = vmatprep.subr.mxu0 0.0
        %1120 = vmatpush1.msra.mxu0 0.0
        %1121 = vmatprep.subr.mxu0 0.0
        %1122 = vmatpush1.msra.mxu0 0.0
        %1123 = vmatprep.subr.mxu0 0.0
        %1124 = vmatpush1.msra.mxu0 0.0
        %1125 = vmatprep.subr.mxu0 0.0
        %1126 = vmatpush1.msra.mxu0 0.0
        %1127 = vmatprep.subr.mxu0 0.0
        %1128 = vmatpush1.msra.mxu0 0.0
        %1129 = vmatprep.mubr.f32.mxu0 0.0
        %1130 = vmatmul.mubr.f32.gmra.mrb[0].mxu0 %v928
        %v1131 = vpop.f32.mrb[0].mxu0
        %v1132 = vadd.f32 0.0, %v1131
        %v1133 = vpop.f32.mrb[0].mxu0
        %v1134 = vadd.f32 0.0, %v1133
        %1135 = vdwg.mxu0
        %1136 = vmatprep.subr.mxu0 %v864
        %1137 = vmatpush1.msra.mxu0 %v863
        %1138 = vmatprep.subr.mxu0 %v868
        %1139 = vmatpush1.msra.mxu0 %v867
        %1140 = vmatprep.subr.mxu0 %v872
        %1141 = vmatpush1.msra.mxu0 %v871
        %1142 = vmatprep.subr.mxu0 %v876
        %1143 = vmatpush1.msra.mxu0 %v875
        %1144 = vmatprep.subr.mxu0 %v880
        %1145 = vmatpush1.msra.mxu0 %v879
        %1146 = vmatprep.subr.mxu0 %v884
        %1147 = vmatpush1.msra.mxu0 %v883
        %1148 = vmatprep.subr.mxu0 %v888
        %1149 = vmatpush1.msra.mxu0 %v887
        %1150 = vmatprep.subr.mxu0 %v892
        %1151 = vmatpush1.msra.mxu0 %v891
        %1152 = vmatprep.subr.mxu0 %v896
        %1153 = vmatpush1.msra.mxu0 %v895
        %1154 = vmatprep.subr.mxu0 %v900
        %1155 = vmatpush1.msra.mxu0 %v899
        %1156 = vmatprep.subr.mxu0 %v904
        %1157 = vmatpush1.msra.mxu0 %v903
        %1158 = vmatprep.subr.mxu0 %v908
        %1159 = vmatpush1.msra.mxu0 %v907
        %1160 = vmatprep.subr.mxu0 %v912
        %1161 = vmatpush1.msra.mxu0 %v911
        %1162 = vmatprep.subr.mxu0 %v916
        %1163 = vmatpush1.msra.mxu0 %v915
        %1164 = vmatprep.subr.mxu0 %v920
        %1165 = vmatpush1.msra.mxu0 %v919
        %1166 = vmatprep.subr.mxu0 %v924
        %1167 = vmatpush1.msra.mxu0 %v923
        %1168 = vmatprep.subr.mxu0 0.0
        %1169 = vmatpush1.msra.mxu0 0.0
        %1170 = vmatprep.subr.mxu0 0.0
        %1171 = vmatpush1.msra.mxu0 0.0
        %1172 = vmatprep.subr.mxu0 0.0
        %1173 = vmatpush1.msra.mxu0 0.0
        %1174 = vmatprep.subr.mxu0 0.0
        %1175 = vmatpush1.msra.mxu0 0.0
        %1176 = vmatprep.subr.mxu0 0.0
        %1177 = vmatpush1.msra.mxu0 0.0
        %1178 = vmatprep.subr.mxu0 0.0
        %1179 = vmatpush1.msra.mxu0 0.0
        %1180 = vmatprep.subr.mxu0 0.0
        %1181 = vmatpush1.msra.mxu0 0.0
        %1182 = vmatprep.subr.mxu0 0.0
        %1183 = vmatpush1.msra.mxu0 0.0
        %1184 = vmatprep.subr.mxu0 0.0
        %1185 = vmatpush1.msra.mxu0 0.0
        %1186 = vmatprep.subr.mxu0 0.0
        %1187 = vmatpush1.msra.mxu0 0.0
        %1188 = vmatprep.subr.mxu0 0.0
        %1189 = vmatpush1.msra.mxu0 0.0
        %1190 = vmatprep.subr.mxu0 0.0
        %1191 = vmatpush1.msra.mxu0 0.0
        %1192 = vmatprep.subr.mxu0 0.0
        %1193 = vmatpush1.msra.mxu0 0.0
        %1194 = vmatprep.subr.mxu0 0.0
        %1195 = vmatpush1.msra.mxu0 0.0
        %1196 = vmatprep.subr.mxu0 0.0
        %1197 = vmatpush1.msra.mxu0 0.0
        %1198 = vmatprep.subr.mxu0 0.0
        %1199 = vmatpush1.msra.mxu0 0.0
        %1200 = vmatprep.mubr.f32.mxu0 0.0
        %1201 = vmatmul.mubr.f32.gmra.mrb[0].mxu0 %v860
        %v1202 = vpop.f32.mrb[0].mxu0
        %v1203 = vadd.f32 %v1061, %v1202
        %v1204 = vpop.f32.mrb[0].mxu0
        %v1205 = vadd.f32 %v1063, %v1204
        %1206 = vdwg.mxu0
        %1207 = vmatprep.subr.mxu0 %v866
        %1208 = vmatpush1.msra.mxu0 %v865
        %1209 = vmatprep.subr.mxu0 %v870
        %1210 = vmatpush1.msra.mxu0 %v869
        %1211 = vmatprep.subr.mxu0 %v874
        %1212 = vmatpush1.msra.mxu0 %v873
        %1213 = vmatprep.subr.mxu0 %v878
        %1214 = vmatpush1.msra.mxu0 %v877
        %1215 = vmatprep.subr.mxu0 %v882
        %1216 = vmatpush1.msra.mxu0 %v881
        %1217 = vmatprep.subr.mxu0 %v886
        %1218 = vmatpush1.msra.mxu0 %v885
        %1219 = vmatprep.subr.mxu0 %v890
        %1220 = vmatpush1.msra.mxu0 %v889
        %1221 = vmatprep.subr.mxu0 %v894
        %1222 = vmatpush1.msra.mxu0 %v893
        %1223 = vmatprep.subr.mxu0 %v898
        %1224 = vmatpush1.msra.mxu0 %v897
        %1225 = vmatprep.subr.mxu0 %v902
        %1226 = vmatpush1.msra.mxu0 %v901
        %1227 = vmatprep.subr.mxu0 %v906
        %1228 = vmatpush1.msra.mxu0 %v905
        %1229 = vmatprep.subr.mxu0 %v910
        %1230 = vmatpush1.msra.mxu0 %v909
        %1231 = vmatprep.subr.mxu0 %v914
        %1232 = vmatpush1.msra.mxu0 %v913
        %1233 = vmatprep.subr.mxu0 %v918
        %1234 = vmatpush1.msra.mxu0 %v917
        %1235 = vmatprep.subr.mxu0 %v922
        %1236 = vmatpush1.msra.mxu0 %v921
        %1237 = vmatprep.subr.mxu0 %v926
        %1238 = vmatpush1.msra.mxu0 %v925
        %1239 = vmatprep.subr.mxu0 0.0
        %1240 = vmatpush1.msra.mxu0 0.0
        %1241 = vmatprep.subr.mxu0 0.0
        %1242 = vmatpush1.msra.mxu0 0.0
        %1243 = vmatprep.subr.mxu0 0.0
        %1244 = vmatpush1.msra.mxu0 0.0
        %1245 = vmatprep.subr.mxu0 0.0
        %1246 = vmatpush1.msra.mxu0 0.0
        %1247 = vmatprep.subr.mxu0 0.0
        %1248 = vmatpush1.msra.mxu0 0.0
        %1249 = vmatprep.subr.mxu0 0.0
        %1250 = vmatpush1.msra.mxu0 0.0
        %1251 = vmatprep.subr.mxu0 0.0
        %1252 = vmatpush1.msra.mxu0 0.0
        %1253 = vmatprep.subr.mxu0 0.0
        %1254 = vmatpush1.msra.mxu0 0.0
        %1255 = vmatprep.subr.mxu0 0.0
        %1256 = vmatpush1.msra.mxu0 0.0
        %1257 = vmatprep.subr.mxu0 0.0
        %1258 = vmatpush1.msra.mxu0 0.0
        %1259 = vmatprep.subr.mxu0 0.0
        %1260 = vmatpush1.msra.mxu0 0.0
        %1261 = vmatprep.subr.mxu0 0.0
        %1262 = vmatpush1.msra.mxu0 0.0
        %1263 = vmatprep.subr.mxu0 0.0
        %1264 = vmatpush1.msra.mxu0 0.0
        %1265 = vmatprep.subr.mxu0 0.0
        %1266 = vmatpush1.msra.mxu0 0.0
        %1267 = vmatprep.subr.mxu0 0.0
        %1268 = vmatpush1.msra.mxu0 0.0
        %1269 = vmatprep.subr.mxu0 0.0
        %1270 = vmatpush1.msra.mxu0 0.0
        %1271 = vmatprep.mubr.f32.mxu0 0.0
        %1272 = vmatmul.mubr.f32.gmra.mrb[0].mxu0 %v860
        %v1273 = vpop.f32.mrb[0].mxu0
        %v1274 = vadd.f32 %v1132, %v1273
        %v1275 = vpop.f32.mrb[0].mxu0
        %v1276 = vadd.f32 %v1134, %v1275
        %1277 = vdwg.mxu0
        %s1278 = scalar_lea.vmem [#allocation12], 4
        %v1279 = vld [vmem:[%s1278] sm:$0xf]
        %v1281 = vlaneseq
        %v1282 = vshrl.u32 %v1281, 7
        %v1283 = vsub.s32 0, %v1282
        %v1284 = vrot.slane %v1279, %v1283
        %v1285 = vlaneseq
        %v1286 = vshrl.u32 %v1285, 7
        %v1287 = vsub.s32 1, %v1286
        %v1288 = vrot.slane %v1279, %v1287
        %v1289 = vlaneseq
        %v1290 = vshrl.u32 %v1289, 7
        %v1291 = vsub.s32 2, %v1290
        %v1292 = vrot.slane %v1279, %v1291
        %v1293 = vlaneseq
        %v1294 = vshrl.u32 %v1293, 7
        %v1295 = vsub.s32 3, %v1294
        %v1296 = vrot.slane %v1279, %v1295
        %v1301 = vadd.f32 %v1203, %v1284
        %v1302 = vadd.f32 %v1205, %v1288
        %v1303 = vadd.f32 %v1274, %v1292
        %v1304 = vadd.f32 %v1276, %v1296
        %v1305 = vxor.u32 %v1301, 2147483648
        %v1306 = vmul.f32 %v1305, 1.442695
        %v1307 = vpow.pop %v1306
        %v1308 = vadd.f32 %v1307, 1.0
        %v1309 = vrcp.pop %v1308
        %v1310 = vmul.f32 1.0, %v1309
        %v1311 = vxor.u32 %v1302, 2147483648
        %v1312 = vmul.f32 %v1311, 1.442695
        %v1313 = vpow.pop %v1312
        %v1314 = vadd.f32 %v1313, 1.0
        %v1315 = vrcp.pop %v1314
        %v1316 = vmul.f32 1.0, %v1315
        %v1317 = vtanh.pop %v1303
        %v1318 = vxor.u32 %v1304, 2147483648
        %v1319 = vmul.f32 %v1318, 1.442695
        %v1320 = vpow.pop %v1319
        %v1321 = vadd.f32 %v1320, 1.0
        %v1322 = vrcp.pop %v1321
        %v1323 = vmul.f32 1.0, %v1322
        %s1324 = scalar_lea.vmem [#allocation3], 8
        %v1325 = vld [vmem:[%s1324] sm:$0xff]
        %v1326 = vmul.f32 %v1316, %v1325
        %v1327 = vmul.f32 %v1310, %v1317
        %v1328 = vadd.f32 %v1326, %v1327
        %v1329 = vtanh.pop %v1328
        %v1330 = vmul.f32 %v1323, %v1329
        %1331 = vst [vmem:[%s1324] sm:$0xff] %v1328
        %1332 = vst [vmem:[%s927] sm:$0xff] %v1330
        %s1333 = scalar_lea.vmem [#allocation9], 512
        %v1334 = vld [vmem:[%s1333] sm:$0xff]
        %v1335 = vld [vmem:[%s1333 + $0x8] sm:$0xff]
        %v1336 = vld [vmem:[%s1333 + $0x10] sm:$0xff]
        %v1337 = vld [vmem:[%s1333 + $0x18] sm:$0xff]
        %v1338 = vld [vmem:[%s1333 + $0x20] sm:$0xff]
        %v1339 = vld [vmem:[%s1333 + $0x28] sm:$0xff]
        %v1340 = vld [vmem:[%s1333 + $0x30] sm:$0xff]
        %v1341 = vld [vmem:[%s1333 + $0x38] sm:$0xff]
        %v1342 = vld [vmem:[%s1333 + $0x40] sm:$0xff]
        %v1343 = vld [vmem:[%s1333 + $0x48] sm:$0xff]
        %v1344 = vld [vmem:[%s1333 + $0x50] sm:$0xff]
        %v1345 = vld [vmem:[%s1333 + $0x58] sm:$0xff]
        %v1346 = vld [vmem:[%s1333 + $0x60] sm:$0xff]
        %v1347 = vld [vmem:[%s1333 + $0x68] sm:$0xff]
        %v1348 = vld [vmem:[%s1333 + $0x70] sm:$0xff]
        %v1349 = vld [vmem:[%s1333 + $0x78] sm:$0xff]
        %v1350 = vld [vmem:[%s1333 + $0x80] sm:$0xff]
        %v1351 = vld [vmem:[%s1333 + $0x88] sm:$0xff]
        %v1352 = vld [vmem:[%s1333 + $0x90] sm:$0xff]
        %v1353 = vld [vmem:[%s1333 + $0x98] sm:$0xff]
        %v1354 = vld [vmem:[%s1333 + $0xa0] sm:$0xff]
        %v1355 = vld [vmem:[%s1333 + $0xa8] sm:$0xff]
        %v1356 = vld [vmem:[%s1333 + $0xb0] sm:$0xff]
        %v1357 = vld [vmem:[%s1333 + $0xb8] sm:$0xff]
        %v1358 = vld [vmem:[%s1333 + $0xc0] sm:$0xff]
        %v1359 = vld [vmem:[%s1333 + $0xc8] sm:$0xff]
        %v1360 = vld [vmem:[%s1333 + $0xd0] sm:$0xff]
        %v1361 = vld [vmem:[%s1333 + $0xd8] sm:$0xff]
        %v1362 = vld [vmem:[%s1333 + $0xe0] sm:$0xff]
        %v1363 = vld [vmem:[%s1333 + $0xe8] sm:$0xff]
        %v1364 = vld [vmem:[%s1333 + $0xf0] sm:$0xff]
        %v1365 = vld [vmem:[%s1333 + $0xf8] sm:$0xff]
        %v1366 = vld [vmem:[%s1333 + $0x100] sm:$0xff]
        %v1367 = vld [vmem:[%s1333 + $0x108] sm:$0xff]
        %v1368 = vld [vmem:[%s1333 + $0x110] sm:$0xff]
        %v1369 = vld [vmem:[%s1333 + $0x118] sm:$0xff]
        %v1370 = vld [vmem:[%s1333 + $0x120] sm:$0xff]
        %v1371 = vld [vmem:[%s1333 + $0x128] sm:$0xff]
        %v1372 = vld [vmem:[%s1333 + $0x130] sm:$0xff]
        %v1373 = vld [vmem:[%s1333 + $0x138] sm:$0xff]
        %v1374 = vld [vmem:[%s1333 + $0x140] sm:$0xff]
        %v1375 = vld [vmem:[%s1333 + $0x148] sm:$0xff]
        %v1376 = vld [vmem:[%s1333 + $0x150] sm:$0xff]
        %v1377 = vld [vmem:[%s1333 + $0x158] sm:$0xff]
        %v1378 = vld [vmem:[%s1333 + $0x160] sm:$0xff]
        %v1379 = vld [vmem:[%s1333 + $0x168] sm:$0xff]
        %v1380 = vld [vmem:[%s1333 + $0x170] sm:$0xff]
        %v1381 = vld [vmem:[%s1333 + $0x178] sm:$0xff]
        %v1382 = vld [vmem:[%s1333 + $0x180] sm:$0xff]
        %v1383 = vld [vmem:[%s1333 + $0x188] sm:$0xff]
        %v1384 = vld [vmem:[%s1333 + $0x190] sm:$0xff]
        %v1385 = vld [vmem:[%s1333 + $0x198] sm:$0xff]
        %v1386 = vld [vmem:[%s1333 + $0x1a0] sm:$0xff]
        %v1387 = vld [vmem:[%s1333 + $0x1a8] sm:$0xff]
        %v1388 = vld [vmem:[%s1333 + $0x1b0] sm:$0xff]
        %v1389 = vld [vmem:[%s1333 + $0x1b8] sm:$0xff]
        %v1390 = vld [vmem:[%s1333 + $0x1c0] sm:$0xff]
        %v1391 = vld [vmem:[%s1333 + $0x1c8] sm:$0xff]
        %v1392 = vld [vmem:[%s1333 + $0x1d0] sm:$0xff]
        %v1393 = vld [vmem:[%s1333 + $0x1d8] sm:$0xff]
        %v1394 = vld [vmem:[%s1333 + $0x1e0] sm:$0xff]
        %v1395 = vld [vmem:[%s1333 + $0x1e8] sm:$0xff]
        %v1396 = vld [vmem:[%s1333 + $0x1f0] sm:$0xff]
        %v1397 = vld [vmem:[%s1333 + $0x1f8] sm:$0xff]
        %s1398 = scalar_lea.vmem [#allocation2], 16
        %v1399 = vld [vmem:[%s1398] sm:$0xff]
        %s1400 = scalar_lea.vmem [#allocation10], 1024
        %v1401 = vld [vmem:[%s1400] sm:$0xff]
        %v1402 = vld [vmem:[%s1400 + $0x8] sm:$0xff]
        %v1403 = vld [vmem:[%s1400 + $0x10] sm:$0xff]
        %v1404 = vld [vmem:[%s1400 + $0x18] sm:$0xff]
        %v1405 = vld [vmem:[%s1400 + $0x20] sm:$0xff]
        %v1406 = vld [vmem:[%s1400 + $0x28] sm:$0xff]
        %v1407 = vld [vmem:[%s1400 + $0x30] sm:$0xff]
        %v1408 = vld [vmem:[%s1400 + $0x38] sm:$0xff]
        %v1409 = vld [vmem:[%s1400 + $0x40] sm:$0xff]
        %v1410 = vld [vmem:[%s1400 + $0x48] sm:$0xff]
        %v1411 = vld [vmem:[%s1400 + $0x50] sm:$0xff]
        %v1412 = vld [vmem:[%s1400 + $0x58] sm:$0xff]
        %v1413 = vld [vmem:[%s1400 + $0x60] sm:$0xff]
        %v1414 = vld [vmem:[%s1400 + $0x68] sm:$0xff]
        %v1415 = vld [vmem:[%s1400 + $0x70] sm:$0xff]
        %v1416 = vld [vmem:[%s1400 + $0x78] sm:$0xff]
        %v1417 = vld [vmem:[%s1400 + $0x80] sm:$0xff]
        %v1418 = vld [vmem:[%s1400 + $0x88] sm:$0xff]
        %v1419 = vld [vmem:[%s1400 + $0x90] sm:$0xff]
        %v1420 = vld [vmem:[%s1400 + $0x98] sm:$0xff]
        %v1421 = vld [vmem:[%s1400 + $0xa0] sm:$0xff]
        %v1422 = vld [vmem:[%s1400 + $0xa8] sm:$0xff]
        %v1423 = vld [vmem:[%s1400 + $0xb0] sm:$0xff]
        %v1424 = vld [vmem:[%s1400 + $0xb8] sm:$0xff]
        %v1425 = vld [vmem:[%s1400 + $0xc0] sm:$0xff]
        %v1426 = vld [vmem:[%s1400 + $0xc8] sm:$0xff]
        %v1427 = vld [vmem:[%s1400 + $0xd0] sm:$0xff]
        %v1428 = vld [vmem:[%s1400 + $0xd8] sm:$0xff]
        %v1429 = vld [vmem:[%s1400 + $0xe0] sm:$0xff]
        %v1430 = vld [vmem:[%s1400 + $0xe8] sm:$0xff]
        %v1431 = vld [vmem:[%s1400 + $0xf0] sm:$0xff]
        %v1432 = vld [vmem:[%s1400 + $0xf8] sm:$0xff]
        %v1433 = vld [vmem:[%s1400 + $0x100] sm:$0xff]
        %v1434 = vld [vmem:[%s1400 + $0x108] sm:$0xff]
        %v1435 = vld [vmem:[%s1400 + $0x110] sm:$0xff]
        %v1436 = vld [vmem:[%s1400 + $0x118] sm:$0xff]
        %v1437 = vld [vmem:[%s1400 + $0x120] sm:$0xff]
        %v1438 = vld [vmem:[%s1400 + $0x128] sm:$0xff]
        %v1439 = vld [vmem:[%s1400 + $0x130] sm:$0xff]
        %v1440 = vld [vmem:[%s1400 + $0x138] sm:$0xff]
        %v1441 = vld [vmem:[%s1400 + $0x140] sm:$0xff]
        %v1442 = vld [vmem:[%s1400 + $0x148] sm:$0xff]
        %v1443 = vld [vmem:[%s1400 + $0x150] sm:$0xff]
        %v1444 = vld [vmem:[%s1400 + $0x158] sm:$0xff]
        %v1445 = vld [vmem:[%s1400 + $0x160] sm:$0xff]
        %v1446 = vld [vmem:[%s1400 + $0x168] sm:$0xff]
        %v1447 = vld [vmem:[%s1400 + $0x170] sm:$0xff]
        %v1448 = vld [vmem:[%s1400 + $0x178] sm:$0xff]
        %v1449 = vld [vmem:[%s1400 + $0x180] sm:$0xff]
        %v1450 = vld [vmem:[%s1400 + $0x188] sm:$0xff]
        %v1451 = vld [vmem:[%s1400 + $0x190] sm:$0xff]
        %v1452 = vld [vmem:[%s1400 + $0x198] sm:$0xff]
        %v1453 = vld [vmem:[%s1400 + $0x1a0] sm:$0xff]
        %v1454 = vld [vmem:[%s1400 + $0x1a8] sm:$0xff]
        %v1455 = vld [vmem:[%s1400 + $0x1b0] sm:$0xff]
        %v1456 = vld [vmem:[%s1400 + $0x1b8] sm:$0xff]
        %v1457 = vld [vmem:[%s1400 + $0x1c0] sm:$0xff]
        %v1458 = vld [vmem:[%s1400 + $0x1c8] sm:$0xff]
        %v1459 = vld [vmem:[%s1400 + $0x1d0] sm:$0xff]
        %v1460 = vld [vmem:[%s1400 + $0x1d8] sm:$0xff]
        %v1461 = vld [vmem:[%s1400 + $0x1e0] sm:$0xff]
        %v1462 = vld [vmem:[%s1400 + $0x1e8] sm:$0xff]
        %v1463 = vld [vmem:[%s1400 + $0x1f0] sm:$0xff]
        %v1464 = vld [vmem:[%s1400 + $0x1f8] sm:$0xff]
        %1465 = vmatprep.subr.mxu0 %v1402
        %1466 = vmatpush1.msra.mxu0 %v1401
        %1467 = vmatprep.subr.mxu0 %v1406
        %1468 = vmatpush1.msra.mxu0 %v1405
        %1469 = vmatprep.subr.mxu0 %v1410
        %1470 = vmatpush1.msra.mxu0 %v1409
        %1471 = vmatprep.subr.mxu0 %v1414
        %1472 = vmatpush1.msra.mxu0 %v1413
        %1473 = vmatprep.subr.mxu0 %v1418
        %1474 = vmatpush1.msra.mxu0 %v1417
        %1475 = vmatprep.subr.mxu0 %v1422
        %1476 = vmatpush1.msra.mxu0 %v1421
        %1477 = vmatprep.subr.mxu0 %v1426
        %1478 = vmatpush1.msra.mxu0 %v1425
        %1479 = vmatprep.subr.mxu0 %v1430
        %1480 = vmatpush1.msra.mxu0 %v1429
        %1481 = vmatprep.subr.mxu0 %v1434
        %1482 = vmatpush1.msra.mxu0 %v1433
        %1483 = vmatprep.subr.mxu0 %v1438
        %1484 = vmatpush1.msra.mxu0 %v1437
        %1485 = vmatprep.subr.mxu0 %v1442
        %1486 = vmatpush1.msra.mxu0 %v1441
        %1487 = vmatprep.subr.mxu0 %v1446
        %1488 = vmatpush1.msra.mxu0 %v1445
        %1489 = vmatprep.subr.mxu0 %v1450
        %1490 = vmatpush1.msra.mxu0 %v1449
        %1491 = vmatprep.subr.mxu0 %v1454
        %1492 = vmatpush1.msra.mxu0 %v1453
        %1493 = vmatprep.subr.mxu0 %v1458
        %1494 = vmatpush1.msra.mxu0 %v1457
        %1495 = vmatprep.subr.mxu0 %v1462
        %1496 = vmatpush1.msra.mxu0 %v1461
        %1497 = vmatprep.subr.mxu0 0.0
        %1498 = vmatpush1.msra.mxu0 0.0
        %1499 = vmatprep.subr.mxu0 0.0
        %1500 = vmatpush1.msra.mxu0 0.0
        %1501 = vmatprep.subr.mxu0 0.0
        %1502 = vmatpush1.msra.mxu0 0.0
        %1503 = vmatprep.subr.mxu0 0.0
        %1504 = vmatpush1.msra.mxu0 0.0
        %1505 = vmatprep.subr.mxu0 0.0
        %1506 = vmatpush1.msra.mxu0 0.0
        %1507 = vmatprep.subr.mxu0 0.0
        %1508 = vmatpush1.msra.mxu0 0.0
        %1509 = vmatprep.subr.mxu0 0.0
        %1510 = vmatpush1.msra.mxu0 0.0
        %1511 = vmatprep.subr.mxu0 0.0
        %1512 = vmatpush1.msra.mxu0 0.0
        %1513 = vmatprep.subr.mxu0 0.0
        %1514 = vmatpush1.msra.mxu0 0.0
        %1515 = vmatprep.subr.mxu0 0.0
        %1516 = vmatpush1.msra.mxu0 0.0
        %1517 = vmatprep.subr.mxu0 0.0
        %1518 = vmatpush1.msra.mxu0 0.0
        %1519 = vmatprep.subr.mxu0 0.0
        %1520 = vmatpush1.msra.mxu0 0.0
        %1521 = vmatprep.subr.mxu0 0.0
        %1522 = vmatpush1.msra.mxu0 0.0
        %1523 = vmatprep.subr.mxu0 0.0
        %1524 = vmatpush1.msra.mxu0 0.0
        %1525 = vmatprep.subr.mxu0 0.0
        %1526 = vmatpush1.msra.mxu0 0.0
        %1527 = vmatprep.subr.mxu0 0.0
        %1528 = vmatpush1.msra.mxu0 0.0
        %1529 = vmatprep.mubr.f32.mxu0 0.0
        %1530 = vmatmul.mubr.f32.gmra.mrb[0].mxu0 %v1399
        %v1531 = vpop.f32.mrb[0].mxu0
        %v1532 = vadd.f32 0.0, %v1531
        %v1533 = vpop.f32.mrb[0].mxu0
        %v1534 = vadd.f32 0.0, %v1533
        %1535 = vdwg.mxu0
        %1536 = vmatprep.subr.mxu0 %v1404
        %1537 = vmatpush1.msra.mxu0 %v1403
        %1538 = vmatprep.subr.mxu0 %v1408
        %1539 = vmatpush1.msra.mxu0 %v1407
        %1540 = vmatprep.subr.mxu0 %v1412
        %1541 = vmatpush1.msra.mxu0 %v1411
        %1542 = vmatprep.subr.mxu0 %v1416
        %1543 = vmatpush1.msra.mxu0 %v1415
        %1544 = vmatprep.subr.mxu0 %v1420
        %1545 = vmatpush1.msra.mxu0 %v1419
        %1546 = vmatprep.subr.mxu0 %v1424
        %1547 = vmatpush1.msra.mxu0 %v1423
        %1548 = vmatprep.subr.mxu0 %v1428
        %1549 = vmatpush1.msra.mxu0 %v1427
        %1550 = vmatprep.subr.mxu0 %v1432
        %1551 = vmatpush1.msra.mxu0 %v1431
        %1552 = vmatprep.subr.mxu0 %v1436
        %1553 = vmatpush1.msra.mxu0 %v1435
        %1554 = vmatprep.subr.mxu0 %v1440
        %1555 = vmatpush1.msra.mxu0 %v1439
        %1556 = vmatprep.subr.mxu0 %v1444
        %1557 = vmatpush1.msra.mxu0 %v1443
        %1558 = vmatprep.subr.mxu0 %v1448
        %1559 = vmatpush1.msra.mxu0 %v1447
        %1560 = vmatprep.subr.mxu0 %v1452
        %1561 = vmatpush1.msra.mxu0 %v1451
        %1562 = vmatprep.subr.mxu0 %v1456
        %1563 = vmatpush1.msra.mxu0 %v1455
        %1564 = vmatprep.subr.mxu0 %v1460
        %1565 = vmatpush1.msra.mxu0 %v1459
        %1566 = vmatprep.subr.mxu0 %v1464
        %1567 = vmatpush1.msra.mxu0 %v1463
        %1568 = vmatprep.subr.mxu0 0.0
        %1569 = vmatpush1.msra.mxu0 0.0
        %1570 = vmatprep.subr.mxu0 0.0
        %1571 = vmatpush1.msra.mxu0 0.0
        %1572 = vmatprep.subr.mxu0 0.0
        %1573 = vmatpush1.msra.mxu0 0.0
        %1574 = vmatprep.subr.mxu0 0.0
        %1575 = vmatpush1.msra.mxu0 0.0
        %1576 = vmatprep.subr.mxu0 0.0
        %1577 = vmatpush1.msra.mxu0 0.0
        %1578 = vmatprep.subr.mxu0 0.0
        %1579 = vmatpush1.msra.mxu0 0.0
        %1580 = vmatprep.subr.mxu0 0.0
        %1581 = vmatpush1.msra.mxu0 0.0
        %1582 = vmatprep.subr.mxu0 0.0
        %1583 = vmatpush1.msra.mxu0 0.0
        %1584 = vmatprep.subr.mxu0 0.0
        %1585 = vmatpush1.msra.mxu0 0.0
        %1586 = vmatprep.subr.mxu0 0.0
        %1587 = vmatpush1.msra.mxu0 0.0
        %1588 = vmatprep.subr.mxu0 0.0
        %1589 = vmatpush1.msra.mxu0 0.0
        %1590 = vmatprep.subr.mxu0 0.0
        %1591 = vmatpush1.msra.mxu0 0.0
        %1592 = vmatprep.subr.mxu0 0.0
        %1593 = vmatpush1.msra.mxu0 0.0
        %1594 = vmatprep.subr.mxu0 0.0
        %1595 = vmatpush1.msra.mxu0 0.0
        %1596 = vmatprep.subr.mxu0 0.0
        %1597 = vmatpush1.msra.mxu0 0.0
        %1598 = vmatprep.subr.mxu0 0.0
        %1599 = vmatpush1.msra.mxu0 0.0
        %1600 = vmatprep.mubr.f32.mxu0 0.0
        %1601 = vmatmul.mubr.f32.gmra.mrb[0].mxu0 %v1399
        %v1602 = vpop.f32.mrb[0].mxu0
        %v1603 = vadd.f32 0.0, %v1602
        %v1604 = vpop.f32.mrb[0].mxu0
        %v1605 = vadd.f32 0.0, %v1604
        %1606 = vdwg.mxu0
        %1607 = vmatprep.subr.mxu0 %v1335
        %1608 = vmatpush1.msra.mxu0 %v1334
        %1609 = vmatprep.subr.mxu0 %v1339
        %1610 = vmatpush1.msra.mxu0 %v1338
        %1611 = vmatprep.subr.mxu0 %v1343
        %1612 = vmatpush1.msra.mxu0 %v1342
        %1613 = vmatprep.subr.mxu0 %v1347
        %1614 = vmatpush1.msra.mxu0 %v1346
        %1615 = vmatprep.subr.mxu0 %v1351
        %1616 = vmatpush1.msra.mxu0 %v1350
        %1617 = vmatprep.subr.mxu0 %v1355
        %1618 = vmatpush1.msra.mxu0 %v1354
        %1619 = vmatprep.subr.mxu0 %v1359
        %1620 = vmatpush1.msra.mxu0 %v1358
        %1621 = vmatprep.subr.mxu0 %v1363
        %1622 = vmatpush1.msra.mxu0 %v1362
        %1623 = vmatprep.subr.mxu0 %v1367
        %1624 = vmatpush1.msra.mxu0 %v1366
        %1625 = vmatprep.subr.mxu0 %v1371
        %1626 = vmatpush1.msra.mxu0 %v1370
        %1627 = vmatprep.subr.mxu0 %v1375
        %1628 = vmatpush1.msra.mxu0 %v1374
        %1629 = vmatprep.subr.mxu0 %v1379
        %1630 = vmatpush1.msra.mxu0 %v1378
        %1631 = vmatprep.subr.mxu0 %v1383
        %1632 = vmatpush1.msra.mxu0 %v1382
        %1633 = vmatprep.subr.mxu0 %v1387
        %1634 = vmatpush1.msra.mxu0 %v1386
        %1635 = vmatprep.subr.mxu0 %v1391
        %1636 = vmatpush1.msra.mxu0 %v1390
        %1637 = vmatprep.subr.mxu0 %v1395
        %1638 = vmatpush1.msra.mxu0 %v1394
        %1639 = vmatprep.subr.mxu0 0.0
        %1640 = vmatpush1.msra.mxu0 0.0
        %1641 = vmatprep.subr.mxu0 0.0
        %1642 = vmatpush1.msra.mxu0 0.0
        %1643 = vmatprep.subr.mxu0 0.0
        %1644 = vmatpush1.msra.mxu0 0.0
        %1645 = vmatprep.subr.mxu0 0.0
        %1646 = vmatpush1.msra.mxu0 0.0
        %1647 = vmatprep.subr.mxu0 0.0
        %1648 = vmatpush1.msra.mxu0 0.0
        %1649 = vmatprep.subr.mxu0 0.0
        %1650 = vmatpush1.msra.mxu0 0.0
        %1651 = vmatprep.subr.mxu0 0.0
        %1652 = vmatpush1.msra.mxu0 0.0
        %1653 = vmatprep.subr.mxu0 0.0
        %1654 = vmatpush1.msra.mxu0 0.0
        %1655 = vmatprep.subr.mxu0 0.0
        %1656 = vmatpush1.msra.mxu0 0.0
        %1657 = vmatprep.subr.mxu0 0.0
        %1658 = vmatpush1.msra.mxu0 0.0
        %1659 = vmatprep.subr.mxu0 0.0
        %1660 = vmatpush1.msra.mxu0 0.0
        %1661 = vmatprep.subr.mxu0 0.0
        %1662 = vmatpush1.msra.mxu0 0.0
        %1663 = vmatprep.subr.mxu0 0.0
        %1664 = vmatpush1.msra.mxu0 0.0
        %1665 = vmatprep.subr.mxu0 0.0
        %1666 = vmatpush1.msra.mxu0 0.0
        %1667 = vmatprep.subr.mxu0 0.0
        %1668 = vmatpush1.msra.mxu0 0.0
        %1669 = vmatprep.subr.mxu0 0.0
        %1670 = vmatpush1.msra.mxu0 0.0
        %1671 = vmatprep.mubr.f32.mxu0 0.0
        %1672 = vmatmul.mubr.f32.gmra.mrb[0].mxu0 %v1330
        %v1673 = vpop.f32.mrb[0].mxu0
        %v1674 = vadd.f32 %v1532, %v1673
        %v1675 = vpop.f32.mrb[0].mxu0
        %v1676 = vadd.f32 %v1534, %v1675
        %1677 = vdwg.mxu0
        %1678 = vmatprep.subr.mxu0 %v1337
        %1679 = vmatpush1.msra.mxu0 %v1336
        %1680 = vmatprep.subr.mxu0 %v1341
        %1681 = vmatpush1.msra.mxu0 %v1340
        %1682 = vmatprep.subr.mxu0 %v1345
        %1683 = vmatpush1.msra.mxu0 %v1344
        %1684 = vmatprep.subr.mxu0 %v1349
        %1685 = vmatpush1.msra.mxu0 %v1348
        %1686 = vmatprep.subr.mxu0 %v1353
        %1687 = vmatpush1.msra.mxu0 %v1352
        %1688 = vmatprep.subr.mxu0 %v1357
        %1689 = vmatpush1.msra.mxu0 %v1356
        %1690 = vmatprep.subr.mxu0 %v1361
        %1691 = vmatpush1.msra.mxu0 %v1360
        %1692 = vmatprep.subr.mxu0 %v1365
        %1693 = vmatpush1.msra.mxu0 %v1364
        %1694 = vmatprep.subr.mxu0 %v1369
        %1695 = vmatpush1.msra.mxu0 %v1368
        %1696 = vmatprep.subr.mxu0 %v1373
        %1697 = vmatpush1.msra.mxu0 %v1372
        %1698 = vmatprep.subr.mxu0 %v1377
        %1699 = vmatpush1.msra.mxu0 %v1376
        %1700 = vmatprep.subr.mxu0 %v1381
        %1701 = vmatpush1.msra.mxu0 %v1380
        %1702 = vmatprep.subr.mxu0 %v1385
        %1703 = vmatpush1.msra.mxu0 %v1384
        %1704 = vmatprep.subr.mxu0 %v1389
        %1705 = vmatpush1.msra.mxu0 %v1388
        %1706 = vmatprep.subr.mxu0 %v1393
        %1707 = vmatpush1.msra.mxu0 %v1392
        %1708 = vmatprep.subr.mxu0 %v1397
        %1709 = vmatpush1.msra.mxu0 %v1396
        %1710 = vmatprep.subr.mxu0 0.0
        %1711 = vmatpush1.msra.mxu0 0.0
        %1712 = vmatprep.subr.mxu0 0.0
        %1713 = vmatpush1.msra.mxu0 0.0
        %1714 = vmatprep.subr.mxu0 0.0
        %1715 = vmatpush1.msra.mxu0 0.0
        %1716 = vmatprep.subr.mxu0 0.0
        %1717 = vmatpush1.msra.mxu0 0.0
        %1718 = vmatprep.subr.mxu0 0.0
        %1719 = vmatpush1.msra.mxu0 0.0
        %1720 = vmatprep.subr.mxu0 0.0
        %1721 = vmatpush1.msra.mxu0 0.0
        %1722 = vmatprep.subr.mxu0 0.0
        %1723 = vmatpush1.msra.mxu0 0.0
        %1724 = vmatprep.subr.mxu0 0.0
        %1725 = vmatpush1.msra.mxu0 0.0
        %1726 = vmatprep.subr.mxu0 0.0
        %1727 = vmatpush1.msra.mxu0 0.0
        %1728 = vmatprep.subr.mxu0 0.0
        %1729 = vmatpush1.msra.mxu0 0.0
        %1730 = vmatprep.subr.mxu0 0.0
        %1731 = vmatpush1.msra.mxu0 0.0
        %1732 = vmatprep.subr.mxu0 0.0
        %1733 = vmatpush1.msra.mxu0 0.0
        %1734 = vmatprep.subr.mxu0 0.0
        %1735 = vmatpush1.msra.mxu0 0.0
        %1736 = vmatprep.subr.mxu0 0.0
        %1737 = vmatpush1.msra.mxu0 0.0
        %1738 = vmatprep.subr.mxu0 0.0
        %1739 = vmatpush1.msra.mxu0 0.0
        %1740 = vmatprep.subr.mxu0 0.0
        %1741 = vmatpush1.msra.mxu0 0.0
        %1742 = vmatprep.mubr.f32.mxu0 0.0
        %1743 = vmatmul.mubr.f32.gmra.mrb[0].mxu0 %v1330
        %v1744 = vpop.f32.mrb[0].mxu0
        %v1745 = vadd.f32 %v1603, %v1744
        %v1746 = vpop.f32.mrb[0].mxu0
        %v1747 = vadd.f32 %v1605, %v1746
        %1748 = vdwg.mxu0
        %s1749 = scalar_lea.vmem [#allocation12], 8
        %v1750 = vld [vmem:[%s1749] sm:$0xf]
        %v1752 = vlaneseq
        %v1753 = vshrl.u32 %v1752, 7
        %v1754 = vsub.s32 0, %v1753
        %v1755 = vrot.slane %v1750, %v1754
        %v1756 = vlaneseq
        %v1757 = vshrl.u32 %v1756, 7
        %v1758 = vsub.s32 1, %v1757
        %v1759 = vrot.slane %v1750, %v1758
        %v1760 = vlaneseq
        %v1761 = vshrl.u32 %v1760, 7
        %v1762 = vsub.s32 2, %v1761
        %v1763 = vrot.slane %v1750, %v1762
        %v1764 = vlaneseq
        %v1765 = vshrl.u32 %v1764, 7
        %v1766 = vsub.s32 3, %v1765
        %v1767 = vrot.slane %v1750, %v1766
        %v1772 = vadd.f32 %v1674, %v1755
        %v1773 = vadd.f32 %v1676, %v1759
        %v1774 = vadd.f32 %v1745, %v1763
        %v1775 = vadd.f32 %v1747, %v1767
        %v1776 = vxor.u32 %v1772, 2147483648
        %v1777 = vmul.f32 %v1776, 1.442695
        %v1778 = vpow.pop %v1777
        %v1779 = vadd.f32 %v1778, 1.0
        %v1780 = vrcp.pop %v1779
        %v1781 = vmul.f32 1.0, %v1780
        %v1782 = vxor.u32 %v1773, 2147483648
        %v1783 = vmul.f32 %v1782, 1.442695
        %v1784 = vpow.pop %v1783
        %v1785 = vadd.f32 %v1784, 1.0
        %v1786 = vrcp.pop %v1785
        %v1787 = vmul.f32 1.0, %v1786
        %v1788 = vtanh.pop %v1774
        %v1789 = vxor.u32 %v1775, 2147483648
        %v1790 = vmul.f32 %v1789, 1.442695
        %v1791 = vpow.pop %v1790
        %v1792 = vadd.f32 %v1791, 1.0
        %v1793 = vrcp.pop %v1792
        %v1794 = vmul.f32 1.0, %v1793
        %s1795 = scalar_lea.vmem [#allocation3], 16
        %v1796 = vld [vmem:[%s1795] sm:$0xff]
        %v1797 = vmul.f32 %v1787, %v1796
        %v1798 = vmul.f32 %v1781, %v1788
        %v1799 = vadd.f32 %v1797, %v1798
        %v1800 = vtanh.pop %v1799
        %v1801 = vmul.f32 %v1794, %v1800
        %1802 = vst [vmem:[%s1795] sm:$0xff] %v1799
        %1803 = vst [vmem:[%s1398] sm:$0xff] %v1801
        %s1804 = scalar_lea.vmem [#allocation9], 1024
        %v1805 = vld [vmem:[%s1804] sm:$0xff]
        %v1806 = vld [vmem:[%s1804 + $0x8] sm:$0xff]
        %v1807 = vld [vmem:[%s1804 + $0x10] sm:$0xff]
        %v1808 = vld [vmem:[%s1804 + $0x18] sm:$0xff]
        %v1809 = vld [vmem:[%s1804 + $0x20] sm:$0xff]
        %v1810 = vld [vmem:[%s1804 + $0x28] sm:$0xff]
        %v1811 = vld [vmem:[%s1804 + $0x30] sm:$0xff]
        %v1812 = vld [vmem:[%s1804 + $0x38] sm:$0xff]
        %v1813 = vld [vmem:[%s1804 + $0x40] sm:$0xff]
        %v1814 = vld [vmem:[%s1804 + $0x48] sm:$0xff]
        %v1815 = vld [vmem:[%s1804 + $0x50] sm:$0xff]
        %v1816 = vld [vmem:[%s1804 + $0x58] sm:$0xff]
        %v1817 = vld [vmem:[%s1804 + $0x60] sm:$0xff]
        %v1818 = vld [vmem:[%s1804 + $0x68] sm:$0xff]
        %v1819 = vld [vmem:[%s1804 + $0x70] sm:$0xff]
        %v1820 = vld [vmem:[%s1804 + $0x78] sm:$0xff]
        %v1821 = vld [vmem:[%s1804 + $0x80] sm:$0xff]
        %v1822 = vld [vmem:[%s1804 + $0x88] sm:$0xff]
        %v1823 = vld [vmem:[%s1804 + $0x90] sm:$0xff]
        %v1824 = vld [vmem:[%s1804 + $0x98] sm:$0xff]
        %v1825 = vld [vmem:[%s1804 + $0xa0] sm:$0xff]
        %v1826 = vld [vmem:[%s1804 + $0xa8] sm:$0xff]
        %v1827 = vld [vmem:[%s1804 + $0xb0] sm:$0xff]
        %v1828 = vld [vmem:[%s1804 + $0xb8] sm:$0xff]
        %v1829 = vld [vmem:[%s1804 + $0xc0] sm:$0xff]
        %v1830 = vld [vmem:[%s1804 + $0xc8] sm:$0xff]
        %v1831 = vld [vmem:[%s1804 + $0xd0] sm:$0xff]
        %v1832 = vld [vmem:[%s1804 + $0xd8] sm:$0xff]
        %v1833 = vld [vmem:[%s1804 + $0xe0] sm:$0xff]
        %v1834 = vld [vmem:[%s1804 + $0xe8] sm:$0xff]
        %v1835 = vld [vmem:[%s1804 + $0xf0] sm:$0xff]
        %v1836 = vld [vmem:[%s1804 + $0xf8] sm:$0xff]
        %v1837 = vld [vmem:[%s1804 + $0x100] sm:$0xff]
        %v1838 = vld [vmem:[%s1804 + $0x108] sm:$0xff]
        %v1839 = vld [vmem:[%s1804 + $0x110] sm:$0xff]
        %v1840 = vld [vmem:[%s1804 + $0x118] sm:$0xff]
        %v1841 = vld [vmem:[%s1804 + $0x120] sm:$0xff]
        %v1842 = vld [vmem:[%s1804 + $0x128] sm:$0xff]
        %v1843 = vld [vmem:[%s1804 + $0x130] sm:$0xff]
        %v1844 = vld [vmem:[%s1804 + $0x138] sm:$0xff]
        %v1845 = vld [vmem:[%s1804 + $0x140] sm:$0xff]
        %v1846 = vld [vmem:[%s1804 + $0x148] sm:$0xff]
        %v1847 = vld [vmem:[%s1804 + $0x150] sm:$0xff]
        %v1848 = vld [vmem:[%s1804 + $0x158] sm:$0xff]
        %v1849 = vld [vmem:[%s1804 + $0x160] sm:$0xff]
        %v1850 = vld [vmem:[%s1804 + $0x168] sm:$0xff]
        %v1851 = vld [vmem:[%s1804 + $0x170] sm:$0xff]
        %v1852 = vld [vmem:[%s1804 + $0x178] sm:$0xff]
        %v1853 = vld [vmem:[%s1804 + $0x180] sm:$0xff]
        %v1854 = vld [vmem:[%s1804 + $0x188] sm:$0xff]
        %v1855 = vld [vmem:[%s1804 + $0x190] sm:$0xff]
        %v1856 = vld [vmem:[%s1804 + $0x198] sm:$0xff]
        %v1857 = vld [vmem:[%s1804 + $0x1a0] sm:$0xff]
        %v1858 = vld [vmem:[%s1804 + $0x1a8] sm:$0xff]
        %v1859 = vld [vmem:[%s1804 + $0x1b0] sm:$0xff]
        %v1860 = vld [vmem:[%s1804 + $0x1b8] sm:$0xff]
        %v1861 = vld [vmem:[%s1804 + $0x1c0] sm:$0xff]
        %v1862 = vld [vmem:[%s1804 + $0x1c8] sm:$0xff]
        %v1863 = vld [vmem:[%s1804 + $0x1d0] sm:$0xff]
        %v1864 = vld [vmem:[%s1804 + $0x1d8] sm:$0xff]
        %v1865 = vld [vmem:[%s1804 + $0x1e0] sm:$0xff]
        %v1866 = vld [vmem:[%s1804 + $0x1e8] sm:$0xff]
        %v1867 = vld [vmem:[%s1804 + $0x1f0] sm:$0xff]
        %v1868 = vld [vmem:[%s1804 + $0x1f8] sm:$0xff]
        %s1869 = scalar_lea.vmem [#allocation2], 24
        %v1870 = vld [vmem:[%s1869] sm:$0xff]
        %s1871 = scalar_lea.vmem [#allocation10], 1536
        %v1872 = vld [vmem:[%s1871] sm:$0xff]
        %v1873 = vld [vmem:[%s1871 + $0x8] sm:$0xff]
        %v1874 = vld [vmem:[%s1871 + $0x10] sm:$0xff]
        %v1875 = vld [vmem:[%s1871 + $0x18] sm:$0xff]
        %v1876 = vld [vmem:[%s1871 + $0x20] sm:$0xff]
        %v1877 = vld [vmem:[%s1871 + $0x28] sm:$0xff]
        %v1878 = vld [vmem:[%s1871 + $0x30] sm:$0xff]
        %v1879 = vld [vmem:[%s1871 + $0x38] sm:$0xff]
        %v1880 = vld [vmem:[%s1871 + $0x40] sm:$0xff]
        %v1881 = vld [vmem:[%s1871 + $0x48] sm:$0xff]
        %v1882 = vld [vmem:[%s1871 + $0x50] sm:$0xff]
        %v1883 = vld [vmem:[%s1871 + $0x58] sm:$0xff]
        %v1884 = vld [vmem:[%s1871 + $0x60] sm:$0xff]
        %v1885 = vld [vmem:[%s1871 + $0x68] sm:$0xff]
        %v1886 = vld [vmem:[%s1871 + $0x70] sm:$0xff]
        %v1887 = vld [vmem:[%s1871 + $0x78] sm:$0xff]
        %v1888 = vld [vmem:[%s1871 + $0x80] sm:$0xff]
        %v1889 = vld [vmem:[%s1871 + $0x88] sm:$0xff]
        %v1890 = vld [vmem:[%s1871 + $0x90] sm:$0xff]
        %v1891 = vld [vmem:[%s1871 + $0x98] sm:$0xff]
        %v1892 = vld [vmem:[%s1871 + $0xa0] sm:$0xff]
        %v1893 = vld [vmem:[%s1871 + $0xa8] sm:$0xff]
        %v1894 = vld [vmem:[%s1871 + $0xb0] sm:$0xff]
        %v1895 = vld [vmem:[%s1871 + $0xb8] sm:$0xff]
        %v1896 = vld [vmem:[%s1871 + $0xc0] sm:$0xff]
        %v1897 = vld [vmem:[%s1871 + $0xc8] sm:$0xff]
        %v1898 = vld [vmem:[%s1871 + $0xd0] sm:$0xff]
        %v1899 = vld [vmem:[%s1871 + $0xd8] sm:$0xff]
        %v1900 = vld [vmem:[%s1871 + $0xe0] sm:$0xff]
        %v1901 = vld [vmem:[%s1871 + $0xe8] sm:$0xff]
        %v1902 = vld [vmem:[%s1871 + $0xf0] sm:$0xff]
        %v1903 = vld [vmem:[%s1871 + $0xf8] sm:$0xff]
        %v1904 = vld [vmem:[%s1871 + $0x100] sm:$0xff]
        %v1905 = vld [vmem:[%s1871 + $0x108] sm:$0xff]
        %v1906 = vld [vmem:[%s1871 + $0x110] sm:$0xff]
        %v1907 = vld [vmem:[%s1871 + $0x118] sm:$0xff]
        %v1908 = vld [vmem:[%s1871 + $0x120] sm:$0xff]
        %v1909 = vld [vmem:[%s1871 + $0x128] sm:$0xff]
        %v1910 = vld [vmem:[%s1871 + $0x130] sm:$0xff]
        %v1911 = vld [vmem:[%s1871 + $0x138] sm:$0xff]
        %v1912 = vld [vmem:[%s1871 + $0x140] sm:$0xff]
        %v1913 = vld [vmem:[%s1871 + $0x148] sm:$0xff]
        %v1914 = vld [vmem:[%s1871 + $0x150] sm:$0xff]
        %v1915 = vld [vmem:[%s1871 + $0x158] sm:$0xff]
        %v1916 = vld [vmem:[%s1871 + $0x160] sm:$0xff]
        %v1917 = vld [vmem:[%s1871 + $0x168] sm:$0xff]
        %v1918 = vld [vmem:[%s1871 + $0x170] sm:$0xff]
        %v1919 = vld [vmem:[%s1871 + $0x178] sm:$0xff]
        %v1920 = vld [vmem:[%s1871 + $0x180] sm:$0xff]
        %v1921 = vld [vmem:[%s1871 + $0x188] sm:$0xff]
        %v1922 = vld [vmem:[%s1871 + $0x190] sm:$0xff]
        %v1923 = vld [vmem:[%s1871 + $0x198] sm:$0xff]
        %v1924 = vld [vmem:[%s1871 + $0x1a0] sm:$0xff]
        %v1925 = vld [vmem:[%s1871 + $0x1a8] sm:$0xff]
        %v1926 = vld [vmem:[%s1871 + $0x1b0] sm:$0xff]
        %v1927 = vld [vmem:[%s1871 + $0x1b8] sm:$0xff]
        %v1928 = vld [vmem:[%s1871 + $0x1c0] sm:$0xff]
        %v1929 = vld [vmem:[%s1871 + $0x1c8] sm:$0xff]
        %v1930 = vld [vmem:[%s1871 + $0x1d0] sm:$0xff]
        %v1931 = vld [vmem:[%s1871 + $0x1d8] sm:$0xff]
        %v1932 = vld [vmem:[%s1871 + $0x1e0] sm:$0xff]
        %v1933 = vld [vmem:[%s1871 + $0x1e8] sm:$0xff]
        %v1934 = vld [vmem:[%s1871 + $0x1f0] sm:$0xff]
        %v1935 = vld [vmem:[%s1871 + $0x1f8] sm:$0xff]
        %1936 = vmatprep.subr.mxu0 %v1873
        %1937 = vmatpush1.msra.mxu0 %v1872
        %1938 = vmatprep.subr.mxu0 %v1877
        %1939 = vmatpush1.msra.mxu0 %v1876
        %1940 = vmatprep.subr.mxu0 %v1881
        %1941 = vmatpush1.msra.mxu0 %v1880
        %1942 = vmatprep.subr.mxu0 %v1885
        %1943 = vmatpush1.msra.mxu0 %v1884
        %1944 = vmatprep.subr.mxu0 %v1889
        %1945 = vmatpush1.msra.mxu0 %v1888
        %1946 = vmatprep.subr.mxu0 %v1893
        %1947 = vmatpush1.msra.mxu0 %v1892
        %1948 = vmatprep.subr.mxu0 %v1897
        %1949 = vmatpush1.msra.mxu0 %v1896
        %1950 = vmatprep.subr.mxu0 %v1901
        %1951 = vmatpush1.msra.mxu0 %v1900
        %1952 = vmatprep.subr.mxu0 %v1905
        %1953 = vmatpush1.msra.mxu0 %v1904
        %1954 = vmatprep.subr.mxu0 %v1909
        %1955 = vmatpush1.msra.mxu0 %v1908
        %1956 = vmatprep.subr.mxu0 %v1913
        %1957 = vmatpush1.msra.mxu0 %v1912
        %1958 = vmatprep.subr.mxu0 %v1917
        %1959 = vmatpush1.msra.mxu0 %v1916
        %1960 = vmatprep.subr.mxu0 %v1921
        %1961 = vmatpush1.msra.mxu0 %v1920
        %1962 = vmatprep.subr.mxu0 %v1925
        %1963 = vmatpush1.msra.mxu0 %v1924
        %1964 = vmatprep.subr.mxu0 %v1929
        %1965 = vmatpush1.msra.mxu0 %v1928
        %1966 = vmatprep.subr.mxu0 %v1933
        %1967 = vmatpush1.msra.mxu0 %v1932
        %1968 = vmatprep.subr.mxu0 0.0
        %1969 = vmatpush1.msra.mxu0 0.0
        %1970 = vmatprep.subr.mxu0 0.0
        %1971 = vmatpush1.msra.mxu0 0.0
        %1972 = vmatprep.subr.mxu0 0.0
        %1973 = vmatpush1.msra.mxu0 0.0
        %1974 = vmatprep.subr.mxu0 0.0
        %1975 = vmatpush1.msra.mxu0 0.0
        %1976 = vmatprep.subr.mxu0 0.0
        %1977 = vmatpush1.msra.mxu0 0.0
        %1978 = vmatprep.subr.mxu0 0.0
        %1979 = vmatpush1.msra.mxu0 0.0
        %1980 = vmatprep.subr.mxu0 0.0
        %1981 = vmatpush1.msra.mxu0 0.0
        %1982 = vmatprep.subr.mxu0 0.0
        %1983 = vmatpush1.msra.mxu0 0.0
        %1984 = vmatprep.subr.mxu0 0.0
        %1985 = vmatpush1.msra.mxu0 0.0
        %1986 = vmatprep.subr.mxu0 0.0
        %1987 = vmatpush1.msra.mxu0 0.0
        %1988 = vmatprep.subr.mxu0 0.0
        %1989 = vmatpush1.msra.mxu0 0.0
        %1990 = vmatprep.subr.mxu0 0.0
        %1991 = vmatpush1.msra.mxu0 0.0
        %1992 = vmatprep.subr.mxu0 0.0
        %1993 = vmatpush1.msra.mxu0 0.0
        %1994 = vmatprep.subr.mxu0 0.0
        %1995 = vmatpush1.msra.mxu0 0.0
        %1996 = vmatprep.subr.mxu0 0.0
        %1997 = vmatpush1.msra.mxu0 0.0
        %1998 = vmatprep.subr.mxu0 0.0
        %1999 = vmatpush1.msra.mxu0 0.0
        %2000 = vmatprep.mubr.f32.mxu0 0.0
        %2001 = vmatmul.mubr.f32.gmra.mrb[0].mxu0 %v1870
        %v2002 = vpop.f32.mrb[0].mxu0
        %v2003 = vadd.f32 0.0, %v2002
        %v2004 = vpop.f32.mrb[0].mxu0
        %v2005 = vadd.f32 0.0, %v2004
        %2006 = vdwg.mxu0
        %2007 = vmatprep.subr.mxu0 %v1875
        %2008 = vmatpush1.msra.mxu0 %v1874
        %2009 = vmatprep.subr.mxu0 %v1879
        %2010 = vmatpush1.msra.mxu0 %v1878
        %2011 = vmatprep.subr.mxu0 %v1883
        %2012 = vmatpush1.msra.mxu0 %v1882
        %2013 = vmatprep.subr.mxu0 %v1887
        %2014 = vmatpush1.msra.mxu0 %v1886
        %2015 = vmatprep.subr.mxu0 %v1891
        %2016 = vmatpush1.msra.mxu0 %v1890
        %2017 = vmatprep.subr.mxu0 %v1895
        %2018 = vmatpush1.msra.mxu0 %v1894
        %2019 = vmatprep.subr.mxu0 %v1899
        %2020 = vmatpush1.msra.mxu0 %v1898
        %2021 = vmatprep.subr.mxu0 %v1903
        %2022 = vmatpush1.msra.mxu0 %v1902
        %2023 = vmatprep.subr.mxu0 %v1907
        %2024 = vmatpush1.msra.mxu0 %v1906
        %2025 = vmatprep.subr.mxu0 %v1911
        %2026 = vmatpush1.msra.mxu0 %v1910
        %2027 = vmatprep.subr.mxu0 %v1915
        %2028 = vmatpush1.msra.mxu0 %v1914
        %2029 = vmatprep.subr.mxu0 %v1919
        %2030 = vmatpush1.msra.mxu0 %v1918
        %2031 = vmatprep.subr.mxu0 %v1923
        %2032 = vmatpush1.msra.mxu0 %v1922
        %2033 = vmatprep.subr.mxu0 %v1927
        %2034 = vmatpush1.msra.mxu0 %v1926
        %2035 = vmatprep.subr.mxu0 %v1931
        %2036 = vmatpush1.msra.mxu0 %v1930
        %2037 = vmatprep.subr.mxu0 %v1935
        %2038 = vmatpush1.msra.mxu0 %v1934
        %2039 = vmatprep.subr.mxu0 0.0
        %2040 = vmatpush1.msra.mxu0 0.0
        %2041 = vmatprep.subr.mxu0 0.0
        %2042 = vmatpush1.msra.mxu0 0.0
        %2043 = vmatprep.subr.mxu0 0.0
        %2044 = vmatpush1.msra.mxu0 0.0
        %2045 = vmatprep.subr.mxu0 0.0
        %2046 = vmatpush1.msra.mxu0 0.0
        %2047 = vmatprep.subr.mxu0 0.0
        %2048 = vmatpush1.msra.mxu0 0.0
        %2049 = vmatprep.subr.mxu0 0.0
        %2050 = vmatpush1.msra.mxu0 0.0
        %2051 = vmatprep.subr.mxu0 0.0
        %2052 = vmatpush1.msra.mxu0 0.0
        %2053 = vmatprep.subr.mxu0 0.0
        %2054 = vmatpush1.msra.mxu0 0.0
        %2055 = vmatprep.subr.mxu0 0.0
        %2056 = vmatpush1.msra.mxu0 0.0
        %2057 = vmatprep.subr.mxu0 0.0
        %2058 = vmatpush1.msra.mxu0 0.0
        %2059 = vmatprep.subr.mxu0 0.0
        %2060 = vmatpush1.msra.mxu0 0.0
        %2061 = vmatprep.subr.mxu0 0.0
        %2062 = vmatpush1.msra.mxu0 0.0
        %2063 = vmatprep.subr.mxu0 0.0
        %2064 = vmatpush1.msra.mxu0 0.0
        %2065 = vmatprep.subr.mxu0 0.0
        %2066 = vmatpush1.msra.mxu0 0.0
        %2067 = vmatprep.subr.mxu0 0.0
        %2068 = vmatpush1.msra.mxu0 0.0
        %2069 = vmatprep.subr.mxu0 0.0
        %2070 = vmatpush1.msra.mxu0 0.0
        %2071 = vmatprep.mubr.f32.mxu0 0.0
        %2072 = vmatmul.mubr.f32.gmra.mrb[0].mxu0 %v1870
        %v2073 = vpop.f32.mrb[0].mxu0
        %v2074 = vadd.f32 0.0, %v2073
        %v2075 = vpop.f32.mrb[0].mxu0
        %v2076 = vadd.f32 0.0, %v2075
        %2077 = vdwg.mxu0
        %2078 = vmatprep.subr.mxu0 %v1806
        %2079 = vmatpush1.msra.mxu0 %v1805
        %2080 = vmatprep.subr.mxu0 %v1810
        %2081 = vmatpush1.msra.mxu0 %v1809
        %2082 = vmatprep.subr.mxu0 %v1814
        %2083 = vmatpush1.msra.mxu0 %v1813
        %2084 = vmatprep.subr.mxu0 %v1818
        %2085 = vmatpush1.msra.mxu0 %v1817
        %2086 = vmatprep.subr.mxu0 %v1822
        %2087 = vmatpush1.msra.mxu0 %v1821
        %2088 = vmatprep.subr.mxu0 %v1826
        %2089 = vmatpush1.msra.mxu0 %v1825
        %2090 = vmatprep.subr.mxu0 %v1830
        %2091 = vmatpush1.msra.mxu0 %v1829
        %2092 = vmatprep.subr.mxu0 %v1834
        %2093 = vmatpush1.msra.mxu0 %v1833
        %2094 = vmatprep.subr.mxu0 %v1838
        %2095 = vmatpush1.msra.mxu0 %v1837
        %2096 = vmatprep.subr.mxu0 %v1842
        %2097 = vmatpush1.msra.mxu0 %v1841
        %2098 = vmatprep.subr.mxu0 %v1846
        %2099 = vmatpush1.msra.mxu0 %v1845
        %2100 = vmatprep.subr.mxu0 %v1850
        %2101 = vmatpush1.msra.mxu0 %v1849
        %2102 = vmatprep.subr.mxu0 %v1854
        %2103 = vmatpush1.msra.mxu0 %v1853
        %2104 = vmatprep.subr.mxu0 %v1858
        %2105 = vmatpush1.msra.mxu0 %v1857
        %2106 = vmatprep.subr.mxu0 %v1862
        %2107 = vmatpush1.msra.mxu0 %v1861
        %2108 = vmatprep.subr.mxu0 %v1866
        %2109 = vmatpush1.msra.mxu0 %v1865
        %2110 = vmatprep.subr.mxu0 0.0
        %2111 = vmatpush1.msra.mxu0 0.0
        %2112 = vmatprep.subr.mxu0 0.0
        %2113 = vmatpush1.msra.mxu0 0.0
        %2114 = vmatprep.subr.mxu0 0.0
        %2115 = vmatpush1.msra.mxu0 0.0
        %2116 = vmatprep.subr.mxu0 0.0
        %2117 = vmatpush1.msra.mxu0 0.0
        %2118 = vmatprep.subr.mxu0 0.0
        %2119 = vmatpush1.msra.mxu0 0.0
        %2120 = vmatprep.subr.mxu0 0.0
        %2121 = vmatpush1.msra.mxu0 0.0
        %2122 = vmatprep.subr.mxu0 0.0
        %2123 = vmatpush1.msra.mxu0 0.0
        %2124 = vmatprep.subr.mxu0 0.0
        %2125 = vmatpush1.msra.mxu0 0.0
        %2126 = vmatprep.subr.mxu0 0.0
        %2127 = vmatpush1.msra.mxu0 0.0
        %2128 = vmatprep.subr.mxu0 0.0
        %2129 = vmatpush1.msra.mxu0 0.0
        %2130 = vmatprep.subr.mxu0 0.0
        %2131 = vmatpush1.msra.mxu0 0.0
        %2132 = vmatprep.subr.mxu0 0.0
        %2133 = vmatpush1.msra.mxu0 0.0
        %2134 = vmatprep.subr.mxu0 0.0
        %2135 = vmatpush1.msra.mxu0 0.0
        %2136 = vmatprep.subr.mxu0 0.0
        %2137 = vmatpush1.msra.mxu0 0.0
        %2138 = vmatprep.subr.mxu0 0.0
        %2139 = vmatpush1.msra.mxu0 0.0
        %2140 = vmatprep.subr.mxu0 0.0
        %2141 = vmatpush1.msra.mxu0 0.0
        %2142 = vmatprep.mubr.f32.mxu0 0.0
        %2143 = vmatmul.mubr.f32.gmra.mrb[0].mxu0 %v1801
        %v2144 = vpop.f32.mrb[0].mxu0
        %v2145 = vadd.f32 %v2003, %v2144
        %v2146 = vpop.f32.mrb[0].mxu0
        %v2147 = vadd.f32 %v2005, %v2146
        %2148 = vdwg.mxu0
        %2149 = vmatprep.subr.mxu0 %v1808
        %2150 = vmatpush1.msra.mxu0 %v1807
        %2151 = vmatprep.subr.mxu0 %v1812
        %2152 = vmatpush1.msra.mxu0 %v1811
        %2153 = vmatprep.subr.mxu0 %v1816
        %2154 = vmatpush1.msra.mxu0 %v1815
        %2155 = vmatprep.subr.mxu0 %v1820
        %2156 = vmatpush1.msra.mxu0 %v1819
        %2157 = vmatprep.subr.mxu0 %v1824
        %2158 = vmatpush1.msra.mxu0 %v1823
        %2159 = vmatprep.subr.mxu0 %v1828
        %2160 = vmatpush1.msra.mxu0 %v1827
        %2161 = vmatprep.subr.mxu0 %v1832
        %2162 = vmatpush1.msra.mxu0 %v1831
        %2163 = vmatprep.subr.mxu0 %v1836
        %2164 = vmatpush1.msra.mxu0 %v1835
        %2165 = vmatprep.subr.mxu0 %v1840
        %2166 = vmatpush1.msra.mxu0 %v1839
        %2167 = vmatprep.subr.mxu0 %v1844
        %2168 = vmatpush1.msra.mxu0 %v1843
        %2169 = vmatprep.subr.mxu0 %v1848
        %2170 = vmatpush1.msra.mxu0 %v1847
        %2171 = vmatprep.subr.mxu0 %v1852
        %2172 = vmatpush1.msra.mxu0 %v1851
        %2173 = vmatprep.subr.mxu0 %v1856
        %2174 = vmatpush1.msra.mxu0 %v1855
        %2175 = vmatprep.subr.mxu0 %v1860
        %2176 = vmatpush1.msra.mxu0 %v1859
        %2177 = vmatprep.subr.mxu0 %v1864
        %2178 = vmatpush1.msra.mxu0 %v1863
        %2179 = vmatprep.subr.mxu0 %v1868
        %2180 = vmatpush1.msra.mxu0 %v1867
        %2181 = vmatprep.subr.mxu0 0.0
        %2182 = vmatpush1.msra.mxu0 0.0
        %2183 = vmatprep.subr.mxu0 0.0
        %2184 = vmatpush1.msra.mxu0 0.0
        %2185 = vmatprep.subr.mxu0 0.0
        %2186 = vmatpush1.msra.mxu0 0.0
        %2187 = vmatprep.subr.mxu0 0.0
        %2188 = vmatpush1.msra.mxu0 0.0
        %2189 = vmatprep.subr.mxu0 0.0
        %2190 = vmatpush1.msra.mxu0 0.0
        %2191 = vmatprep.subr.mxu0 0.0
        %2192 = vmatpush1.msra.mxu0 0.0
        %2193 = vmatprep.subr.mxu0 0.0
        %2194 = vmatpush1.msra.mxu0 0.0
        %2195 = vmatprep.subr.mxu0 0.0
        %2196 = vmatpush1.msra.mxu0 0.0
        %2197 = vmatprep.subr.mxu0 0.0
        %2198 = vmatpush1.msra.mxu0 0.0
        %2199 = vmatprep.subr.mxu0 0.0
        %2200 = vmatpush1.msra.mxu0 0.0
        %2201 = vmatprep.subr.mxu0 0.0
        %2202 = vmatpush1.msra.mxu0 0.0
        %2203 = vmatprep.subr.mxu0 0.0
        %2204 = vmatpush1.msra.mxu0 0.0
        %2205 = vmatprep.subr.mxu0 0.0
        %2206 = vmatpush1.msra.mxu0 0.0
        %2207 = vmatprep.subr.mxu0 0.0
        %2208 = vmatpush1.msra.mxu0 0.0
        %2209 = vmatprep.subr.mxu0 0.0
        %2210 = vmatpush1.msra.mxu0 0.0
        %2211 = vmatprep.subr.mxu0 0.0
        %2212 = vmatpush1.msra.mxu0 0.0
        %2213 = vmatprep.mubr.f32.mxu0 0.0
        %2214 = vmatmul.mubr.f32.gmra.mrb[0].mxu0 %v1801
        %v2215 = vpop.f32.mrb[0].mxu0
        %v2216 = vadd.f32 %v2074, %v2215
        %v2217 = vpop.f32.mrb[0].mxu0
        %v2218 = vadd.f32 %v2076, %v2217
        %2219 = vdwg.mxu0
        %s2220 = scalar_lea.vmem [#allocation12], 12
        %v2221 = vld [vmem:[%s2220] sm:$0xf]
        %v2223 = vlaneseq
        %v2224 = vshrl.u32 %v2223, 7
        %v2225 = vsub.s32 0, %v2224
        %v2226 = vrot.slane %v2221, %v2225
        %v2227 = vlaneseq
        %v2228 = vshrl.u32 %v2227, 7
        %v2229 = vsub.s32 1, %v2228
        %v2230 = vrot.slane %v2221, %v2229
        %v2231 = vlaneseq
        %v2232 = vshrl.u32 %v2231, 7
        %v2233 = vsub.s32 2, %v2232
        %v2234 = vrot.slane %v2221, %v2233
        %v2235 = vlaneseq
        %v2236 = vshrl.u32 %v2235, 7
        %v2237 = vsub.s32 3, %v2236
        %v2238 = vrot.slane %v2221, %v2237
        %v2243 = vadd.f32 %v2145, %v2226
        %v2244 = vadd.f32 %v2147, %v2230
        %v2245 = vadd.f32 %v2216, %v2234
        %v2246 = vadd.f32 %v2218, %v2238
        %v2247 = vxor.u32 %v2243, 2147483648
        %v2248 = vmul.f32 %v2247, 1.442695
        %v2249 = vpow.pop %v2248
        %v2250 = vadd.f32 %v2249, 1.0
        %v2251 = vrcp.pop %v2250
        %v2252 = vmul.f32 1.0, %v2251
        %v2253 = vxor.u32 %v2244, 2147483648
        %v2254 = vmul.f32 %v2253, 1.442695
        %v2255 = vpow.pop %v2254
        %v2256 = vadd.f32 %v2255, 1.0
        %v2257 = vrcp.pop %v2256
        %v2258 = vmul.f32 1.0, %v2257
        %v2259 = vtanh.pop %v2245
        %v2260 = vxor.u32 %v2246, 2147483648
        %v2261 = vmul.f32 %v2260, 1.442695
        %v2262 = vpow.pop %v2261
        %v2263 = vadd.f32 %v2262, 1.0
        %v2264 = vrcp.pop %v2263
        %v2265 = vmul.f32 1.0, %v2264
        %s2266 = scalar_lea.vmem [#allocation3], 24
        %v2267 = vld [vmem:[%s2266] sm:$0xff]
        %v2268 = vmul.f32 %v2258, %v2267
        %v2269 = vmul.f32 %v2252, %v2259
        %v2270 = vadd.f32 %v2268, %v2269
        %v2271 = vtanh.pop %v2270
        %v2272 = vmul.f32 %v2265, %v2271
        %2273 = vst [vmem:[%s2266] sm:$0xff] %v2270
        %2274 = vst [vmem:[%s1869] sm:$0xff] %v2272
        %v2275 = vld [vmem:[#allocation13] sm:$0xff]
        %v2276 = vld [vmem:[#allocation13 + $0x8] sm:$0xff]
        %v2277 = vld [vmem:[#allocation13 + $0x10] sm:$0xff]
        %v2278 = vld [vmem:[#allocation13 + $0x18] sm:$0xff]
        %v2279 = vld [vmem:[#allocation13 + $0x20] sm:$0xff]
        %v2280 = vld [vmem:[#allocation13 + $0x28] sm:$0xff]
        %v2281 = vld [vmem:[#allocation13 + $0x30] sm:$0xff]
        %v2282 = vld [vmem:[#allocation13 + $0x38] sm:$0xff]
        %v2283 = vld [vmem:[#allocation13 + $0x40] sm:$0xff]
        %v2284 = vld [vmem:[#allocation13 + $0x48] sm:$0xff]
        %v2285 = vld [vmem:[#allocation13 + $0x50] sm:$0xff]
        %v2286 = vld [vmem:[#allocation13 + $0x58] sm:$0xff]
        %v2287 = vld [vmem:[#allocation13 + $0x60] sm:$0xff]
        %v2288 = vld [vmem:[#allocation13 + $0x68] sm:$0xff]
        %v2289 = vld [vmem:[#allocation13 + $0x70] sm:$0xff]
        %v2290 = vld [vmem:[#allocation13 + $0x78] sm:$0xff]
        %v2291 = vld [vmem:[%s6] sm:$0x1]
        %v2293 = vlaneseq
        %v2294 = vshrl.u32 %v2293, 7
        %v2295 = vsub.s32 0, %v2294
        %v2296 = vrot.slane %v2291, %v2295
        %2298 = vmatprep.subr.mxu0 0.0
        %2299 = vmatpush1.msra.mxu0 %v2275
        %2300 = vmatprep.subr.mxu0 0.0
        %2301 = vmatpush1.msra.mxu0 %v2276
        %2302 = vmatprep.subr.mxu0 0.0
        %2303 = vmatpush1.msra.mxu0 %v2277
        %2304 = vmatprep.subr.mxu0 0.0
        %2305 = vmatpush1.msra.mxu0 %v2278
        %2306 = vmatprep.subr.mxu0 0.0
        %2307 = vmatpush1.msra.mxu0 %v2279
        %2308 = vmatprep.subr.mxu0 0.0
        %2309 = vmatpush1.msra.mxu0 %v2280
        %2310 = vmatprep.subr.mxu0 0.0
        %2311 = vmatpush1.msra.mxu0 %v2281
        %2312 = vmatprep.subr.mxu0 0.0
        %2313 = vmatpush1.msra.mxu0 %v2282
        %2314 = vmatprep.subr.mxu0 0.0
        %2315 = vmatpush1.msra.mxu0 %v2283
        %2316 = vmatprep.subr.mxu0 0.0
        %2317 = vmatpush1.msra.mxu0 %v2284
        %2318 = vmatprep.subr.mxu0 0.0
        %2319 = vmatpush1.msra.mxu0 %v2285
        %2320 = vmatprep.subr.mxu0 0.0
        %2321 = vmatpush1.msra.mxu0 %v2286
        %2322 = vmatprep.subr.mxu0 0.0
        %2323 = vmatpush1.msra.mxu0 %v2287
        %2324 = vmatprep.subr.mxu0 0.0
        %2325 = vmatpush1.msra.mxu0 %v2288
        %2326 = vmatprep.subr.mxu0 0.0
        %2327 = vmatpush1.msra.mxu0 %v2289
        %2328 = vmatprep.subr.mxu0 0.0
        %2329 = vmatpush1.msra.mxu0 %v2290
        %2330 = vmatprep.subr.mxu0 0.0
        %2331 = vmatpush1.msra.mxu0 0.0
        %2332 = vmatprep.subr.mxu0 0.0
        %2333 = vmatpush1.msra.mxu0 0.0
        %2334 = vmatprep.subr.mxu0 0.0
        %2335 = vmatpush1.msra.mxu0 0.0
        %2336 = vmatprep.subr.mxu0 0.0
        %2337 = vmatpush1.msra.mxu0 0.0
        %2338 = vmatprep.subr.mxu0 0.0
        %2339 = vmatpush1.msra.mxu0 0.0
        %2340 = vmatprep.subr.mxu0 0.0
        %2341 = vmatpush1.msra.mxu0 0.0
        %2342 = vmatprep.subr.mxu0 0.0
        %2343 = vmatpush1.msra.mxu0 0.0
        %2344 = vmatprep.subr.mxu0 0.0
        %2345 = vmatpush1.msra.mxu0 0.0
        %2346 = vmatprep.subr.mxu0 0.0
        %2347 = vmatpush1.msra.mxu0 0.0
        %2348 = vmatprep.subr.mxu0 0.0
        %2349 = vmatpush1.msra.mxu0 0.0
        %2350 = vmatprep.subr.mxu0 0.0
        %2351 = vmatpush1.msra.mxu0 0.0
        %2352 = vmatprep.subr.mxu0 0.0
        %2353 = vmatpush1.msra.mxu0 0.0
        %2354 = vmatprep.subr.mxu0 0.0
        %2355 = vmatpush1.msra.mxu0 0.0
        %2356 = vmatprep.subr.mxu0 0.0
        %2357 = vmatpush1.msra.mxu0 0.0
        %2358 = vmatprep.subr.mxu0 0.0
        %2359 = vmatpush1.msra.mxu0 0.0
        %2360 = vmatprep.subr.mxu0 0.0
        %2361 = vmatpush1.msra.mxu0 0.0
        %2362 = vmatprep.mubr.f32.mxu0 0.0
        %2363 = vmatmul.mubr.f32.gmra.mrb[0].mxu0 %v2272
        %v2364 = vpop.f32.mrb[0].mxu0
        %v2365 = vadd.f32 %v2296, %v2364
        %v2366 = vpop.f32.mrb[0].mxu0
        %2367 = vdwg.mxu0
        %2368 = vst [vmem:[%s383] sm:$0xff] %v2365
        %s2369 = sand.u32 %s203, 1
        %s2370 = scalar_lea.sflag [#allocation6], %s2369
        %s2371 = sand.u32 %s203, 1
        %s2372 = smul.addr %s2371, 8
        %s2373 = scalar_lea.vmem [#allocation15], %s2372
        // Predicated region
        $region77: #{tpu_custom_call.1} parent=47 // pred_check
          %p2374 = pneg %p213
        $region78: #{tpu_custom_call.1} parent=47 // pred_check_branch
          %2376 = sbr.rel (%p2374) target = $region80
        $region79: #{tpu_custom_call.1} parent=47 // pred_region
          %s2378 = ssub.s32 128, 128
          %2379 = vsyncadd %s2370, %s2378
          %s2380 = sadd.s32 %s31, %s32
          %s2381 = smul.addr %s2380, 128
          %s2382 = scalar_lea.hbm %s7, %s2381
          %s2384 = sshll.u32 %s2373, 4
          %s2385 = int_to_ptr.vmem [resolvable:$true] %s2384
          %2387 = dma.vmem_to_hbm [thread:$0]  %s2385, 128, %s2382, %s2370
        $region80: #{tpu_custom_call.1} parent=47 // pred_fallthru
          _
      $region48: #{tpu_custom_call.1} parent=5 // pred_fallthru
        _
      %p2388 = scmp.le.s32.totalorder 2, %s22
      // Predicated region
      $region81: #{tpu_custom_call.1} parent=5 // pred_check
        %p2389 = pneg %p2388
      $region82: #{tpu_custom_call.1} parent=5 // pred_check_branch
        %2391 = sbr.rel (%p2389) target = $region84
      $region83: #{tpu_custom_call.1} parent=5 // pred_region
        %s2392 = ssub.s32 %s22, 2
        // Predicated region
        $region85: #{tpu_custom_call.1} parent=83 // pred_check
          %p2393 = pneg %p219
        $region86: #{tpu_custom_call.1} parent=83 // pred_check_branch
          %2395 = sbr.rel (%p2393) target = $region88
        $region87: #{tpu_custom_call.1} parent=83 // pred_region
          %s2396 = sand.u32 %s204, 1
          %s2397 = scalar_lea.sflag [#allocation6], %s2396
          %s2398 = sand.u32 %s204, 1
          %s2399 = smul.addr %s2398, 8
          %s2400 = scalar_lea.vmem [#allocation15], %s2399
          %2401 = dma.done %s2397, 128
        $region88: #{tpu_custom_call.1} parent=83 // pred_fallthru
          _
      $region84: #{tpu_custom_call.1} parent=5 // pred_fallthru
        _
    $region6: #{tpu_custom_call.1} parent=1 // loop_footer
      %s26 = sadd.s32 1, %s22
    $region7: #{tpu_custom_call.1} parent=1 // loop_footer_branch
      %21 = sbr.rel target = $region3
    $region8: #{tpu_custom_call.1} parent=1 // loop_exit
      _
    %2402 = vsyncpa [#allocation5], 1
    %s2403 = scalar_lea.sflag [#allocation5], 1
    %2404 = vsyncpa %s2403, 1
    %2405 = vsyncpa [#allocation8], 1
    %2406 = vsyncpa [#allocation11], 1
    %2407 = vsyncpa [#allocation14], 1
    %2408 = vsyncpa [#allocation6], 1
    %s2409 = scalar_lea.sflag [#allocation6], 1
    %2410 = vsyncpa %s2409, 1

</llo_original>
